<compile_context>
chip_gen: v7x
topology: tpu7x:2x2x1
jax: 0.10.0
libtpu: 0.0.40
codegen_flags: <defaults>
</compile_context>

<pallas_src>
import jax
import jax.numpy as jnp
import numpy as np
from jax.experimental import pallas as pl
from jax.experimental.pallas import tpu as pltpu


# ------------------------------- constants ----------------------------------

EMBEDDING_SIZE = 220
NUM_FACTORS = 220
NUM_LAYERS = 4

FM_FEAT = NUM_FACTORS * 3 + 18 + 1 + 1        # 680
FM_FEAT_P = 768                               # padded to 128-multiple
EMB_P = 256                                   # 220 -> 256

MLP_IN = EMBEDDING_SIZE * 2 ** (NUM_LAYERS - 1) * 3 + 20   # 5300
MLP_DIMS = [5300, 1760, 880, 440, 220]
MLP_DIMS_P = [5376, 1792, 896, 512, 256]


# ------------------------------- helpers ------------------------------------

def _pad_to(a, shape):
    pads = [(0, t - s) for s, t in zip(a.shape, shape)]
    if all(p == (0, 0) for p in pads):
        return a
    return jnp.pad(a, pads)


def _pad_batch(a, mult=8):
    return _pad_to(a, ((-(-a.shape[0] // mult)) * mult,) + a.shape[1:])


# --------------------- layer-1 dense kernel (N-tiled) ------------------------
# x:(Bp, Kp) f32 resident, W:(Kp, tn) bf16 streamed per grid step, ReLU output.

def dense_n_kernel(x_ref, w_ref, b_ref, o_ref):
    x = x_ref[...].astype(jnp.bfloat16)
    acc = jnp.dot(x, w_ref[...], preferred_element_type=jnp.float32)
    o_ref[...] = jnp.maximum(acc + b_ref[...], 0.0)


def dense_layer1(x, w_bf16, b, *, tn=256):
    """x:(B, 5300) f32, w_bf16:(5376, 1792) bf16 (pre-padded), b:(1, 1792) f32."""
    B = x.shape[0]
    Kp, Np = w_bf16.shape
    xp = _pad_batch(_pad_to(x, (B, Kp)))
    Bp = xp.shape[0]
    out = pl.pallas_call(
        dense_n_kernel,
        out_shape=jax.ShapeDtypeStruct((Bp, Np), jnp.float32),
        grid_spec=pltpu.PrefetchScalarGridSpec(
            num_scalar_prefetch=0,
            grid=(Np // tn,),
            in_specs=[
                pl.BlockSpec((Bp, Kp), lambda n: (0, 0)),
                pl.BlockSpec((Kp, tn), lambda n: (0, n)),
                pl.BlockSpec((1, tn), lambda n: (0, n)),
            ],
            out_specs=pl.BlockSpec((Bp, tn), lambda n: (0, n)),
        ),
        compiler_params=pltpu.CompilerParams(
            dimension_semantics=("parallel",),
            vmem_limit_bytes=32 * 1024 * 1024,
        ),
    )(xp, w_bf16, b)
    return out                                   # (Bp, 1792), padded


# ------------------- fused tail kernel: FM + MLP 2-4 + final -----------------
# All weights involved (~5 MB) fit VMEM on v5e/v6e/v7x, so a single un-gridded
# pallas_call does the FM branch, the last three ReLU layers and the final
# Linear(222,1) (whose scalars are pre-folded into lane vectors).

def tail_kernel(x_fm_ref, wfm_ref, v_ref, iscale_ref, h1_ref,
                w2_ref, b2_ref, w3_ref, b3_ref, w4_ref, b4_ref,
                fwh_ref, fb_ref, out_ref):
    # ---- FM branch (kept f32; tiny) ----
    x = x_fm_ref[...]                                          # (Bp, 768)
    v = v_ref[...]                                             # (768, 256)
    lin_c = jnp.sum(x * wfm_ref[...], axis=1, keepdims=True)   # fw0 * linear
    xv = jnp.dot(x, v, preferred_element_type=jnp.float32)
    x2v2 = jnp.dot(x * x, v * v, preferred_element_type=jnp.float32)
    inter_c = jnp.sum((xv * xv - x2v2) * iscale_ref[...],      # 0.5*fw1*inter
                      axis=1, keepdims=True)

    # ---- MLP layers 2-4 (bf16 weights, f32 accumulate, ReLU) ----
    h = h1_ref[...]                                            # (Bp, 1792)
    h = jnp.maximum(
        jnp.dot(h.astype(jnp.bfloat16), w2_ref[...],
                preferred_element_type=jnp.float32) + b2_ref[...], 0.0)
    h = jnp.maximum(
        jnp.dot(h.astype(jnp.bfloat16), w3_ref[...],
                preferred_element_type=jnp.float32) + b3_ref[...], 0.0)
    h = jnp.maximum(
        jnp.dot(h.astype(jnp.bfloat16), w4_ref[...],
                preferred_element_type=jnp.float32) + b4_ref[...], 0.0)

    # ---- final Linear(222, 1): fw0*lin + fw1*inter + h . fw[2:] + fb ----
    head_c = jnp.sum(h * fwh_ref[...], axis=1, keepdims=True)  # (Bp, 1)
    rating = lin_c + inter_c + head_c                          # (Bp, 1)
    # lane-dense output slab: every lane holds rating + bias
    out_ref[...] = rating + fb_ref[...]                        # (Bp, 128)


def neumf_tail(x_fm, h1, kp):
    B = x_fm.shape[0]
    Bp = h1.shape[0]
    x_fm_p = _pad_to(x_fm, (Bp, FM_FEAT_P))
    out = pl.pallas_call(
        tail_kernel,
        out_shape=jax.ShapeDtypeStruct((Bp, 128), jnp.float32),
        compiler_params=pltpu.CompilerParams(
            vmem_limit_bytes=48 * 1024 * 1024),
    )(x_fm_p, kp['w_fm_eff'], kp['v_fm'], kp['inter_scale'], h1,
      kp['mlp_w'][1], kp['mlp_b'][1],
      kp['mlp_w'][2], kp['mlp_b'][2],
      kp['mlp_w'][3], kp['mlp_b'][3],
      kp['fwh'], kp['fb_vec'])
    return out[:B, 0]                                          # (B,)


# ------------------------------- parameters ----------------------------------

def init_params(key, num_users, num_items, num_occ):
    mlp_dim = EMBEDDING_SIZE * 2 ** (NUM_LAYERS - 1)           # 1760
    keys = jax.random.split(key, 32)
    ki = iter(range(32))
    n = lambda shp, std: std * jax.random.normal(keys[next(ki)], shp, jnp.float32)

    p = {
        'user_fm': n((num_users, NUM_FACTORS), 0.01),
        'item_fm': n((num_items, NUM_FACTORS), 0.01),
        'occ_fm': n((num_occ, NUM_FACTORS), 0.01),
        'w': n((FM_FEAT,), 0.01),
        'v': n((FM_FEAT, EMBEDDING_SIZE), 0.01),
        'user_mlp': n((num_users, mlp_dim), 0.01),
        'item_mlp': n((num_items, mlp_dim), 0.01),
        'occ_mlp': n((num_occ, mlp_dim), 0.01),
    }
    # MLP tower: 5300 -> 1760 -> 880 -> 440 -> 220 (Linear + ReLU each)
    in_size = MLP_IN
    mlp = []
    for i in range(NUM_LAYERS):
        out_size = EMBEDDING_SIZE * 2 ** (NUM_LAYERS - i - 1)
        std = 1.0 / np.sqrt(in_size)
        mlp.append((n((in_size, out_size), std), n((out_size,), std)))
        in_size = out_size
    p['mlp'] = mlp
    p['final_w'] = n((222, 1), float(np.sqrt(2.0 / 222.0)))
    p['final_b'] = jnp.zeros((1,), jnp.float32)
    return p


def prepare_kernel_params(p):
    """One-time padding / bf16 casting / scalar folding of weights."""
    kp = {}
    fw = p['final_w'][:, 0]                                    # (222,)
    fb = p['final_b'][0]

    # FM branch (kept f32, it is tiny); fold final_w[0] into the linear term
    # and 0.5*final_w[1] into the interaction reduction.
    kp['w_fm_eff'] = _pad_to((p['w'] * fw[0]).reshape(1, -1), (1, FM_FEAT_P))
    kp['v_fm'] = _pad_to(p['v'], (FM_FEAT_P, EMB_P))
    kp['inter_scale'] = jnp.full((1, EMB_P), 0.5 * fw[1], jnp.float32)

    # MLP weights: pre-padded, bf16; biases f32 (zero padding keeps ReLU(0)=0
    # in the padded lanes, so padding stays exactly zero through the tower).
    ws, bs = [], []
    for (W, b), ki, ko in zip(p['mlp'], MLP_DIMS_P[:-1], MLP_DIMS_P[1:]):
        ws.append(_pad_to(W, (ki, ko)).astype(jnp.bfloat16))
        bs.append(_pad_to(b.reshape(1, -1), (1, ko)))
    kp['mlp_w'], kp['mlp_b'] = ws, bs

    # final-layer weights for the MLP part, padded to the lane width; bias as
    # a lane-dense vector added to the output slab.
    kp['fwh'] = _pad_to(fw[2:].reshape(1, -1), (1, EMB_P))
    kp['fb_vec'] = jnp.full((1, 128), fb, jnp.float32)
    return kp


# ------------------------------- forward -------------------------------------

def neumf_forward(params, kparams, user, item, occ, gender, genre, age):
    # embedding lookups + concatenations are glue (plain JAX)
    g = gender[:, None]
    a = age[:, None]

    # FM branch input
    x = jnp.concatenate([params['user_fm'][user], params['item_fm'][item],
                         params['occ_fm'][occ], g, genre, a], axis=1)   # (B, 680)

    # MLP branch input + layer 1 (5300 -> 1760), N-tiled Pallas kernel
    h = jnp.concatenate([params['user_mlp'][user], params['item_mlp'][item],
                         params['occ_mlp'][occ], g, genre, a], axis=1)  # (B, 5300)
    h1 = dense_layer1(h, kparams['mlp_w'][0], kparams['mlp_b'][0])      # (Bp,1792)

    # fused: FM + MLP layers 2-4 + final Linear(222, 1)
    return neumf_tail(x, h1, kparams)                                   # (B,)


def neumf_reference(params, user, item, occ, gender, genre, age):
    # pure-JAX f32 reference for correctness checking
    g = gender[:, None]
    a = age[:, None]
    x = jnp.concatenate([params['user_fm'][user], params['item_fm'][item],
                         params['occ_fm'][occ], g, genre, a], axis=1)
    lin = jnp.sum(x * params['w'], axis=1, keepdims=True)
    xv = x @ params['v']
    x2v2 = (x * x) @ (params['v'] * params['v'])
    inter = 0.5 * jnp.sum(xv * xv - x2v2, axis=1, keepdims=True)
    predict = jnp.concatenate([lin, inter], axis=1)
    h = jnp.concatenate([params['user_mlp'][user], params['item_mlp'][item],
                         params['occ_mlp'][occ], g, genre, a], axis=1)
    for (W, bvec) in params['mlp']:
        h = jnp.maximum(h @ W + bvec, 0.0)
    vec = jnp.concatenate([predict, h], axis=1)
    return jnp.squeeze(vec @ params['final_w'] + params['final_b'], axis=-1)


# --------------------------------- main ---------------------------------------

if __name__ == "__main__":
    B = 8
    num_users, num_items, num_occ = 12, 12, 12

    key = jax.random.PRNGKey(0)
    pkey, k1, k2, k3, k4, k5, k6 = jax.random.split(key, 7)

    params = init_params(pkey, num_users, num_items, num_occ)
    kparams = prepare_kernel_params(params)          # one-time pad / bf16 cast

    user = jax.random.randint(k1, (B,), 0, num_users)
    item = jax.random.randint(k2, (B,), 0, num_items)
    occ = jax.random.randint(k3, (B,), 0, num_occ)
    gender = jax.random.bernoulli(k4, 0.5, (B,)).astype(jnp.float32)
    genre = jax.random.bernoulli(k5, 0.3, (B, 18)).astype(jnp.float32)
    age = jax.random.uniform(k6, (B,), jnp.float32)

    out = neumf_forward(params, kparams, user, item, occ, gender, genre, age)
    out = jax.block_until_ready(out)

    ref = jax.block_until_ready(
        neumf_reference(params, user, item, occ, gender, genre, age))

    np.testing.assert_allclose(np.asarray(out), np.asarray(ref),
                               rtol=5e-2, atol=5e-2)
    assert out.shape == (B,)
    print("KERNEL_OK")
</pallas_src>

<mosaic_0001>
module attributes {stable_mosaic.version = 11 : i64} {
  func.func @dense_n_kernel(%arg0: i32, %arg1: memref<8x5376xf32, #tpu.memory_space<vmem>>, %arg2: memref<5376x256xbf16, #tpu.memory_space<vmem>>, %arg3: memref<1x256xf32, #tpu.memory_space<vmem>>, %arg4: memref<8x256xf32, #tpu.memory_space<vmem>>) attributes {dimension_semantics = [#tpu.dimension_semantics<parallel>], iteration_bounds = array<i64: 7>, scalar_prefetch = 0 : i64, scratch_operands = 0 : i64, tpu.core_type = #tpu.core_type<tc>, window_params = [{pipeline_mode = #tpu.pipeline_mode<synchronous>, transform_indices = @transform_0, window_bounds = array<i64: 8, 5376>}, {transform_indices = @transform_1, window_bounds = array<i64: 5376, 256>}, {transform_indices = @transform_2, window_bounds = array<i64: 1, 256>}, {transform_indices = @transform_3, window_bounds = array<i64: 8, 256>}]} {
    %c0 = arith.constant 0 : index
    %c0_0 = arith.constant 0 : index
    %0 = vector.load %arg1[%c0, %c0_0] : memref<8x5376xf32, #tpu.memory_space<vmem>>, vector<8x5376xf32>
    %1 = arith.truncf %0 : vector<8x5376xf32> to vector<8x5376xbf16>
    %c0_1 = arith.constant 0 : index
    %c0_2 = arith.constant 0 : index
    %2 = vector.load %arg2[%c0_1, %c0_2] : memref<5376x256xbf16, #tpu.memory_space<vmem>>, vector<5376x256xbf16>
    %cst = arith.constant dense<0.000000e+00> : vector<8x256xf32>
    %3 = tpu.matmul %1, %2, %cst {dimension_numbers = #tpu.dot_dimension_numbers<[1], [0], [0], [1], [0, 0, 1, 1], [], []>} : vector<8x5376xbf16>, vector<5376x256xbf16>, vector<8x256xf32> -> vector<8x256xf32>
    %c0_3 = arith.constant 0 : index
    %c0_4 = arith.constant 0 : index
    %4 = vector.load %arg3[%c0_3, %c0_4] : memref<1x256xf32, #tpu.memory_space<vmem>>, vector<1x256xf32>
    %5 = vector.broadcast %4 : vector<1x256xf32> to vector<8x256xf32>
    %6 = arith.addf %3, %5 : vector<8x256xf32>
    %cst_5 = arith.constant 0.000000e+00 : f32
    %7 = vector.broadcast %cst_5 : f32 to vector<8x256xf32>
    %8 = arith.maximumf %6, %7 : vector<8x256xf32>
    %c0_6 = arith.constant 0 : index
    %c0_7 = arith.constant 0 : index
    %9 = vector.load %arg4[%c0_6, %c0_7] : memref<8x256xf32, #tpu.memory_space<vmem>>, vector<8x256xf32>
    tpu.vector_store %arg4[%c0_6, %c0_7], %8 {strides = array<i32>} : memref<8x256xf32, #tpu.memory_space<vmem>>, vector<8x256xf32>,
    return
  }
  func.func @transform_0(%arg0: i32) -> (i32, i32) {
    %c0_i32 = arith.constant 0 : i32
    %c0_i32_0 = arith.constant 0 : i32
    %c0_i32_1 = arith.constant 0 : i32
    return %c0_i32, %c0_i32_0 : i32, i32
  }
  func.func @transform_1(%arg0: i32) -> (i32, i32) {
    %c0_i32 = arith.constant 0 : i32
    %c0_i32_0 = arith.constant 0 : i32
    return %c0_i32, %arg0 : i32, i32
  }
  func.func @transform_2(%arg0: i32) -> (i32, i32) {
    %c0_i32 = arith.constant 0 : i32
    %c0_i32_0 = arith.constant 0 : i32
    return %c0_i32, %arg0 : i32, i32
  }
  func.func @transform_3(%arg0: i32) -> (i32, i32) {
    %c0_i32 = arith.constant 0 : i32
    %c0_i32_0 = arith.constant 0 : i32
    return %c0_i32, %arg0 : i32, i32
  }
}

</mosaic_0001>

<llo_original>
// kernel: tpu_custom_call.1
$region0: #{tpu_custom_call.1}
  #allocation0 [shape = 'u32[]', space=smem, size = 0x4, offset = 0x4, fixed_abs, tag = 'smem constant byte address 0x4 - core index']
  #allocation1 [shape = 'u32[144,128]{1,0:T(1,128)}', space=vmem, size = 0x12000, scoped, tag = 'internal scratch']
  %s0 = inlined_call_operand.hbm [shape: f32[8,5376], index: 0, kind: input, shape index: {}]
  %s1 = inlined_call_operand.hbm [shape: bf16[5376,1792], index: 1, kind: input, shape index: {}]
  %s2 = inlined_call_operand.hbm [shape: f32[1,1792], index: 2, kind: input, shape index: {}]
  %s3 = inlined_call_operand.hbm [shape: f32[8,1792], index: 3, kind: output, shape index: {}]
  %s4 = sld [smem:[#allocation0]]
  $region57: #{tpu_custom_call.1} parent=0
    _
  %s6 = ssub.s32 1, %s4
  %s7 = scalar_select 0, %s6, %s4
  $region1: #{tpu_custom_call.1} parent=0
    #allocation2 [shape = 'u8[172032]{0}', space=vmem, size = 0x2a000, scoped, tag = 'input window, operand 0, single buffered']
    #allocation3 [shape = 's32[2]{0}', space=sflag, size = 0x8, scoped, tag = 'scoped memory for tpu_custom_call.1']
    #allocation4 [shape = 's32[2]{0}', space=sflag, size = 0x8, scoped, tag = 'scoped memory for tpu_custom_call.1']
    #allocation5 [shape = 'u8[5505024]{0}', space=vmem, size = 0x540000, scoped, tag = 'input window, operand 1']
    #allocation6 [shape = 's32[2]{0}', space=sflag, size = 0x8, scoped, tag = 'scoped memory for tpu_custom_call.1']
    #allocation7 [shape = 'u8[2048]{0}', space=vmem, size = 0x800, scoped, tag = 'input window, operand 2']
    #allocation8 [shape = 'u8[16384]{0}', space=vmem, size = 0x4000, scoped, tag = 'output window, operand 0']
    %8 = vsyncpa [#allocation3], 0
    %9 = vsyncpa [#allocation6], 0
    %s10 = scalar_lea.sflag [#allocation6], 1
    %11 = vsyncpa %s10, 0
    %12 = vsyncpa [#allocation4], 0
    %s13 = scalar_lea.sflag [#allocation4], 1
    %14 = vsyncpa %s13, 0
    loop: start=0, step=1, limit=9
    $region2: #{tpu_custom_call.1} parent=1 // loop_pre_header
      _
    $region3: #{tpu_custom_call.1} parent=1 // loop_header
      %s16 = sphi 0, %s20
      %p17 = scmp.ge.s32.totalorder %s16, 9
      %s24 = sphi 0, %s24
      %s26 = sphi 0, %s24
      %s27 = sphi 0, %s26
      %s41 = sphi 0, %s27
      %s47 = sphi 0, %s49
      %s50 = sphi 0, %s47
      %s51 = sphi 0, %s50
      %s67 = sphi 0, %s51
      %s73 = sphi 0, %s75
      %s76 = sphi 0, %s73
      %s77 = sphi 0, %s76
      %s93 = sphi 0, %s77
      %s99 = sphi 0, %s101
      %s102 = sphi 0, %s99
      %s103 = sphi 0, %s102
      %s119 = sphi 0, %s103
    $region4: #{tpu_custom_call.1} parent=1 // loop_header_branch
      %19 = sbr.rel (%p17) target = $region8
    $region5: #{tpu_custom_call.1} parent=1 // loop_body
      %s21 = ssub.s32 %s16, 1
      %s22 = ssub.s32 %s16, 2
      %s23 = sadd.s32 %s16, 1
      %s25 = sadd.s32 %s24, 1
      %p28 = scmp.eq.s32.totalorder %s16, 6
      %p29 = scmp.ne.s32.totalorder %s24, %s26
      %p30 = scmp.eq.s32.totalorder %s16, 0
      %p31 = por %p29, %p30
      %p32 = scmp.ne.s32.totalorder %s24, %s26
      %p33 = scmp.eq.s32.totalorder %s21, 6
      %p34 = por %p32, %p33
      %p35 = scmp.ne.s32.totalorder %s26, %s27
      %p36 = scmp.eq.s32.totalorder %s21, 0
      %p37 = por %p35, %p36
      %p38 = scmp.ne.s32.totalorder %s26, %s27
      %p39 = scmp.eq.s32.totalorder %s22, 6
      %p40 = por %p38, %p39
      %p42 = scmp.ne.s32.totalorder %s27, %s41
      %p43 = scmp.eq.s32.totalorder %s22, 0
      %p44 = por %p42, %p43
      %s45 = ssub.s32 %s16, %s23
      %p46 = scmp.eq.s32.totalorder %s45, 0
      %s48 = sadd.s32 %s47, 1
      %s49 = scalar_select %p46, %s47, %s48
      %p52 = pneg %p46
      %p53 = scmp.eq.s32.totalorder %s16, 6
      %p54 = por %p52, %p53
      %p55 = scmp.ne.s32.totalorder %s47, %s50
      %p56 = scmp.eq.s32.totalorder %s16, 0
      %p57 = por %p55, %p56
      %p58 = scmp.ne.s32.totalorder %s47, %s50
      %p59 = scmp.eq.s32.totalorder %s21, 6
      %p60 = por %p58, %p59
      %p61 = scmp.ne.s32.totalorder %s50, %s51
      %p62 = scmp.eq.s32.totalorder %s21, 0
      %p63 = por %p61, %p62
      %p64 = scmp.ne.s32.totalorder %s50, %s51
      %p65 = scmp.eq.s32.totalorder %s22, 6
      %p66 = por %p64, %p65
      %p68 = scmp.ne.s32.totalorder %s51, %s67
      %p69 = scmp.eq.s32.totalorder %s22, 0
      %p70 = por %p68, %p69
      %s71 = ssub.s32 %s16, %s23
      %p72 = scmp.eq.s32.totalorder %s71, 0
      %s74 = sadd.s32 %s73, 1
      %s75 = scalar_select %p72, %s73, %s74
      %p78 = pneg %p72
      %p79 = scmp.eq.s32.totalorder %s16, 6
      %p80 = por %p78, %p79
      %p81 = scmp.ne.s32.totalorder %s73, %s76
      %p82 = scmp.eq.s32.totalorder %s16, 0
      %p83 = por %p81, %p82
      %p84 = scmp.ne.s32.totalorder %s73, %s76
      %p85 = scmp.eq.s32.totalorder %s21, 6
      %p86 = por %p84, %p85
      %p87 = scmp.ne.s32.totalorder %s76, %s77
      %p88 = scmp.eq.s32.totalorder %s21, 0
      %p89 = por %p87, %p88
      %p90 = scmp.ne.s32.totalorder %s76, %s77
      %p91 = scmp.eq.s32.totalorder %s22, 6
      %p92 = por %p90, %p91
      %p94 = scmp.ne.s32.totalorder %s77, %s93
      %p95 = scmp.eq.s32.totalorder %s22, 0
      %p96 = por %p94, %p95
      %s97 = ssub.s32 %s16, %s23
      %p98 = scmp.eq.s32.totalorder %s97, 0
      %s100 = sadd.s32 %s99, 1
      %s101 = scalar_select %p98, %s99, %s100
      %p104 = pneg %p98
      %p105 = scmp.eq.s32.totalorder %s16, 6
      %p106 = por %p104, %p105
      %p107 = scmp.ne.s32.totalorder %s99, %s102
      %p108 = scmp.eq.s32.totalorder %s16, 0
      %p109 = por %p107, %p108
      %p110 = scmp.ne.s32.totalorder %s99, %s102
      %p111 = scmp.eq.s32.totalorder %s21, 6
      %p112 = por %p110, %p111
      %p113 = scmp.ne.s32.totalorder %s102, %s103
      %p114 = scmp.eq.s32.totalorder %s21, 0
      %p115 = por %p113, %p114
      %p116 = scmp.ne.s32.totalorder %s102, %s103
      %p117 = scmp.eq.s32.totalorder %s22, 6
      %p118 = por %p116, %p117
      %p120 = scmp.ne.s32.totalorder %s103, %s119
      %p121 = scmp.eq.s32.totalorder %s22, 0
      %p122 = por %p120, %p121
      %p123 = scmp.le.s32.totalorder 1, %s16
      %p124 = scmp.lt.s32.totalorder %s16, 8
      %p125 = pnand %p123, %p124
      %p126 = pneg %p125
      // Predicated region
      $region9: #{tpu_custom_call.1} parent=5 // pred_check
        _
      $region10: #{tpu_custom_call.1} parent=5 // pred_check_branch
        %128 = sbr.rel (%p125) target = $region12
      $region11: #{tpu_custom_call.1} parent=5 // pred_region
        %s129 = ssub.s32 %s16, 1
        // Predicated region
        $region13: #{tpu_custom_call.1} parent=11 // pred_check
          %p130 = pneg %p37
        $region14: #{tpu_custom_call.1} parent=11 // pred_check_branch
          %132 = sbr.rel (%p130) target = $region16
        $region15: #{tpu_custom_call.1} parent=11 // pred_region
          %s134 = ssub.s32 5376, 5376
          %135 = vsyncadd [#allocation3], %s134
          %s137 = sshll.u32 [#allocation2], 4
          %s138 = int_to_ptr.vmem [resolvable:$true] %s137
          %140 = dma.hbm_to_vmem [thread:$0]  %s0, 5376, %s138, [#allocation3]
        $region16: #{tpu_custom_call.1} parent=11 // pred_fallthru
          _
      $region12: #{tpu_custom_call.1} parent=5 // pred_fallthru
        _
      %p141 = scmp.lt.s32.totalorder %s16, 7
      // Predicated region
      $region17: #{tpu_custom_call.1} parent=5 // pred_check
        %p142 = pneg %p141
      $region18: #{tpu_custom_call.1} parent=5 // pred_check_branch
        %144 = sbr.rel (%p142) target = $region20
      $region19: #{tpu_custom_call.1} parent=5 // pred_region
        // Predicated region
        $region21: #{tpu_custom_call.1} parent=19 // pred_check
          %p145 = pneg %p57
        $region22: #{tpu_custom_call.1} parent=19 // pred_check_branch
          %147 = sbr.rel (%p145) target = $region24
        $region23: #{tpu_custom_call.1} parent=19 // pred_region
          %s148 = sand.u32 %s16, 1
          %s149 = scalar_lea.sflag [#allocation6], %s148
          %s150 = sand.u32 %s47, 1
          %s151 = smul.addr %s150, 5376
          %s152 = scalar_lea.vmem [#allocation5], %s151
          %s153 = smul.u32 2, %s16
          %s155 = ssub.s32 86016, 86016
          %156 = vsyncadd %s149, %s155
          %s157 = smul.addr %s153, 64
          %s158 = scalar_lea.hbm %s1, %s157
          %s159 = sshll.u32 %s152, 4
          %s160 = int_to_ptr.vmem [resolvable:$true] %s159
          %165 = dma.hbm_to_vmem [thread:$0]  %s158, 86016, %s160, %s149, 896, 128, 8
        $region24: #{tpu_custom_call.1} parent=19 // pred_fallthru
          _
        // Predicated region
        $region25: #{tpu_custom_call.1} parent=19 // pred_check
          %p166 = pneg %p83
        $region26: #{tpu_custom_call.1} parent=19 // pred_check_branch
          %168 = sbr.rel (%p166) target = $region28
        $region27: #{tpu_custom_call.1} parent=19 // pred_region
          %s169 = sand.u32 %s16, 1
          %s170 = scalar_lea.sflag [#allocation6], %s169
          %s171 = sand.u32 %s73, 1
          %s172 = smul.addr %s171, 2
          %s173 = scalar_lea.vmem [#allocation7], %s172
          %s174 = smul.u32 2, %s16
          %s176 = ssub.s32 32, 32
          %177 = vsyncadd %s170, %s176
          %s178 = smul.addr %s174, 16
          %s179 = scalar_lea.hbm %s2, %s178
          %s181 = sshll.u32 %s173, 4
          %s182 = int_to_ptr.vmem [resolvable:$true] %s181
          %184 = dma.hbm_to_vmem [thread:$0]  %s179, 32, %s182, %s170
        $region28: #{tpu_custom_call.1} parent=19 // pred_fallthru
          _
      $region20: #{tpu_custom_call.1} parent=5 // pred_fallthru
        _
      %p185 = scmp.le.s32.totalorder 1, %s16
      %p186 = scmp.lt.s32.totalorder %s16, 8
      %p187 = pnand %p185, %p186
      %p188 = pneg %p187
      // Predicated region
      $region29: #{tpu_custom_call.1} parent=5 // pred_check
        _
      $region30: #{tpu_custom_call.1} parent=5 // pred_check_branch
        %190 = sbr.rel (%p187) target = $region32
      $region31: #{tpu_custom_call.1} parent=5 // pred_region
        %s191 = ssub.s32 %s16, 1
        // Predicated region
        $region33: #{tpu_custom_call.1} parent=31 // pred_check
          %p192 = pneg %p37
        $region34: #{tpu_custom_call.1} parent=31 // pred_check_branch
          %194 = sbr.rel (%p192) target = $region36
        $region35: #{tpu_custom_call.1} parent=31 // pred_region
          %195 = dma.done [#allocation3], 5376
        $region36: #{tpu_custom_call.1} parent=31 // pred_fallthru
          _
        %s196 = sand.u32 %s21, 1
        %s197 = scalar_lea.sflag [#allocation6], %s196
        %s198 = sand.u32 %s50, 1
        %s199 = smul.addr %s198, 5376
        %s200 = scalar_lea.vmem [#allocation5], %s199
        // Predicated region
        $region37: #{tpu_custom_call.1} parent=31 // pred_check
          %p201 = pneg %p63
        $region38: #{tpu_custom_call.1} parent=31 // pred_check_branch
          %203 = sbr.rel (%p201) target = $region40
        $region39: #{tpu_custom_call.1} parent=31 // pred_region
          %204 = dma.done %s197, 86016
        $region40: #{tpu_custom_call.1} parent=31 // pred_fallthru
          _
        %s205 = sand.u32 %s21, 1
        %s206 = scalar_lea.sflag [#allocation6], %s205
        %s207 = sand.u32 %s76, 1
        %s208 = smul.addr %s207, 2
        %s209 = scalar_lea.vmem [#allocation7], %s208
        // Predicated region
        $region41: #{tpu_custom_call.1} parent=31 // pred_check
          %p210 = pneg %p89
        $region42: #{tpu_custom_call.1} parent=31 // pred_check_branch
          %212 = sbr.rel (%p210) target = $region44
        $region43: #{tpu_custom_call.1} parent=31 // pred_region
          %213 = dma.done %s206, 32
        $region44: #{tpu_custom_call.1} parent=31 // pred_fallthru
          _
        %p214 = pneg %p37
        %p215 = pneg %p34
        %s216 = sand.u32 %s21, 1
        %s217 = scalar_lea.sflag [#allocation6], %s216
        %s218 = sand.u32 %s50, 1
        %s219 = smul.addr %s218, 5376
        %s220 = scalar_lea.vmem [#allocation5], %s219
        %p221 = pneg %p63
        %p222 = pneg %p60
        %s223 = sand.u32 %s21, 1
        %s224 = scalar_lea.sflag [#allocation6], %s223
        %s225 = sand.u32 %s76, 1
        %s226 = smul.addr %s225, 2
        %s227 = scalar_lea.vmem [#allocation7], %s226
        %p228 = pneg %p89
        %p229 = pneg %p86
        %p230 = pneg %p115
        %p231 = pneg %p112
        %s232 = sand.u32 %s102, 1
        %s233 = scalar_lea.sflag [#allocation4], %s232
        %s234 = sand.u32 %s102, 1
        %s235 = smul.addr %s234, 16
        %s236 = scalar_lea.vmem [#allocation8], %s235
        %s237 = smul.u32 2, %s21
        %s238 = smul.u32 2, %s21
        %s239 = smul.u32 2, %s21
        %v240 = vld [vmem:[#allocation2] sm:$0xff]
        %v241 = vld [vmem:[#allocation2 + $0x8] sm:$0xff]
        %v242 = vld [vmem:[#allocation2 + $0x10] sm:$0xff]
        %v243 = vld [vmem:[#allocation2 + $0x18] sm:$0xff]
        %v244 = vld [vmem:[#allocation2 + $0x20] sm:$0xff]
        %v245 = vld [vmem:[#allocation2 + $0x28] sm:$0xff]
        %v246 = vld [vmem:[#allocation2 + $0x30] sm:$0xff]
        %v247 = vld [vmem:[#allocation2 + $0x38] sm:$0xff]
        %v248 = vld [vmem:[#allocation2 + $0x40] sm:$0xff]
        %v249 = vld [vmem:[#allocation2 + $0x48] sm:$0xff]
        %v250 = vld [vmem:[#allocation2 + $0x50] sm:$0xff]
        %v251 = vld [vmem:[#allocation2 + $0x58] sm:$0xff]
        %v252 = vld [vmem:[#allocation2 + $0x60] sm:$0xff]
        %v253 = vld [vmem:[#allocation2 + $0x68] sm:$0xff]
        %v254 = vld [vmem:[#allocation2 + $0x70] sm:$0xff]
        %v255 = vld [vmem:[#allocation2 + $0x78] sm:$0xff]
        %v256 = vld [vmem:[#allocation2 + $0x80] sm:$0xff]
        %v257 = vld [vmem:[#allocation2 + $0x88] sm:$0xff]
        %v258 = vld [vmem:[#allocation2 + $0x90] sm:$0xff]
        %v259 = vld [vmem:[#allocation2 + $0x98] sm:$0xff]
        %v260 = vld [vmem:[#allocation2 + $0xa0] sm:$0xff]
        %v261 = vld [vmem:[#allocation2 + $0xa8] sm:$0xff]
        %v262 = vld [vmem:[#allocation2 + $0xb0] sm:$0xff]
        %v263 = vld [vmem:[#allocation2 + $0xb8] sm:$0xff]
        %v264 = vld [vmem:[#allocation2 + $0xc0] sm:$0xff]
        %v265 = vld [vmem:[#allocation2 + $0xc8] sm:$0xff]
        %v266 = vld [vmem:[#allocation2 + $0xd0] sm:$0xff]
        %v267 = vld [vmem:[#allocation2 + $0xd8] sm:$0xff]
        %v268 = vld [vmem:[#allocation2 + $0xe0] sm:$0xff]
        %v269 = vld [vmem:[#allocation2 + $0xe8] sm:$0xff]
        %v270 = vld [vmem:[#allocation2 + $0xf0] sm:$0xff]
        %v271 = vld [vmem:[#allocation2 + $0xf8] sm:$0xff]
        %v272 = vld [vmem:[#allocation2 + $0x100] sm:$0xff]
        %v273 = vld [vmem:[#allocation2 + $0x108] sm:$0xff]
        %v274 = vld [vmem:[#allocation2 + $0x110] sm:$0xff]
        %v275 = vld [vmem:[#allocation2 + $0x118] sm:$0xff]
        %v276 = vld [vmem:[#allocation2 + $0x120] sm:$0xff]
        %v277 = vld [vmem:[#allocation2 + $0x128] sm:$0xff]
        %v278 = vld [vmem:[#allocation2 + $0x130] sm:$0xff]
        %v279 = vld [vmem:[#allocation2 + $0x138] sm:$0xff]
        %v280 = vld [vmem:[#allocation2 + $0x140] sm:$0xff]
        %v281 = vld [vmem:[#allocation2 + $0x148] sm:$0xff]
        %v282 = vpack.c.bf16 %v240, %v240
        %v283 = vpack.c.bf16 %v241, %v241
        %v284 = vpack.c.bf16 %v242, %v242
        %v285 = vpack.c.bf16 %v243, %v243
        %v286 = vpack.c.bf16 %v244, %v244
        %v287 = vpack.c.bf16 %v245, %v245
        %v288 = vpack.c.bf16 %v246, %v246
        %v289 = vpack.c.bf16 %v247, %v247
        %v290 = vpack.c.bf16 %v248, %v248
        %v291 = vpack.c.bf16 %v249, %v249
        %v292 = vpack.c.bf16 %v250, %v250
        %v293 = vpack.c.bf16 %v251, %v251
        %v294 = vpack.c.bf16 %v252, %v252
        %v295 = vpack.c.bf16 %v253, %v253
        %v296 = vpack.c.bf16 %v254, %v254
        %v297 = vpack.c.bf16 %v255, %v255
        %v298 = vpack.c.bf16 %v256, %v256
        %v299 = vpack.c.bf16 %v257, %v257
        %v300 = vpack.c.bf16 %v258, %v258
        %v301 = vpack.c.bf16 %v259, %v259
        %v302 = vpack.c.bf16 %v260, %v260
        %v303 = vpack.c.bf16 %v261, %v261
        %v304 = vpack.c.bf16 %v262, %v262
        %v305 = vpack.c.bf16 %v263, %v263
        %v306 = vpack.c.bf16 %v264, %v264
        %v307 = vpack.c.bf16 %v265, %v265
        %v308 = vpack.c.bf16 %v266, %v266
        %v309 = vpack.c.bf16 %v267, %v267
        %v310 = vpack.c.bf16 %v268, %v268
        %v311 = vpack.c.bf16 %v269, %v269
        %v312 = vpack.c.bf16 %v270, %v270
        %v313 = vpack.c.bf16 %v271, %v271
        %v314 = vpack.c.bf16 %v272, %v272
        %v315 = vpack.c.bf16 %v273, %v273
        %v316 = vpack.c.bf16 %v274, %v274
        %v317 = vpack.c.bf16 %v275, %v275
        %v318 = vpack.c.bf16 %v276, %v276
        %v319 = vpack.c.bf16 %v277, %v277
        %v320 = vpack.c.bf16 %v278, %v278
        %v321 = vpack.c.bf16 %v279, %v279
        %v322 = vpack.c.bf16 %v280, %v280
        %v323 = vpack.c.bf16 %v281, %v281
        %v324 = vld [vmem:[%s200] sm:$0xff]
        %v325 = vld [vmem:[%s200 + $0x8] sm:$0xff]
        %v326 = vld [vmem:[%s200 + $0x10] sm:$0xff]
        %v327 = vld [vmem:[%s200 + $0x18] sm:$0xff]
        %v328 = vld [vmem:[%s200 + $0x20] sm:$0xff]
        %v329 = vld [vmem:[%s200 + $0x28] sm:$0xff]
        %v330 = vld [vmem:[%s200 + $0x30] sm:$0xff]
        %v331 = vld [vmem:[%s200 + $0x38] sm:$0xff]
        %v332 = vld [vmem:[%s200 + $0x40] sm:$0xff]
        %v333 = vld [vmem:[%s200 + $0x48] sm:$0xff]
        %v334 = vld [vmem:[%s200 + $0x50] sm:$0xff]
        %v335 = vld [vmem:[%s200 + $0x58] sm:$0xff]
        %v336 = vld [vmem:[%s200 + $0x60] sm:$0xff]
        %v337 = vld [vmem:[%s200 + $0x68] sm:$0xff]
        %v338 = vld [vmem:[%s200 + $0x70] sm:$0xff]
        %v339 = vld [vmem:[%s200 + $0x78] sm:$0xff]
        %v340 = vld [vmem:[%s200 + $0x80] sm:$0xff]
        %v341 = vld [vmem:[%s200 + $0x88] sm:$0xff]
        %v342 = vld [vmem:[%s200 + $0x90] sm:$0xff]
        %v343 = vld [vmem:[%s200 + $0x98] sm:$0xff]
        %v344 = vld [vmem:[%s200 + $0xa0] sm:$0xff]
        %v345 = vld [vmem:[%s200 + $0xa8] sm:$0xff]
        %v346 = vld [vmem:[%s200 + $0xb0] sm:$0xff]
        %v347 = vld [vmem:[%s200 + $0xb8] sm:$0xff]
        %v348 = vld [vmem:[%s200 + $0xc0] sm:$0xff]
        %v349 = vld [vmem:[%s200 + $0xc8] sm:$0xff]
        %v350 = vld [vmem:[%s200 + $0xd0] sm:$0xff]
        %v351 = vld [vmem:[%s200 + $0xd8] sm:$0xff]
        %v352 = vld [vmem:[%s200 + $0xe0] sm:$0xff]
        %v353 = vld [vmem:[%s200 + $0xe8] sm:$0xff]
        %v354 = vld [vmem:[%s200 + $0xf0] sm:$0xff]
        %v355 = vld [vmem:[%s200 + $0xf8] sm:$0xff]
        %v356 = vld [vmem:[%s200 + $0x100] sm:$0xff]
        %v357 = vld [vmem:[%s200 + $0x108] sm:$0xff]
        %v358 = vld [vmem:[%s200 + $0x110] sm:$0xff]
        %v359 = vld [vmem:[%s200 + $0x118] sm:$0xff]
        %v360 = vld [vmem:[%s200 + $0x120] sm:$0xff]
        %v361 = vld [vmem:[%s200 + $0x128] sm:$0xff]
        %v362 = vld [vmem:[%s200 + $0x130] sm:$0xff]
        %v363 = vld [vmem:[%s200 + $0x138] sm:$0xff]
        %v364 = vld [vmem:[%s200 + $0x140] sm:$0xff]
        %v365 = vld [vmem:[%s200 + $0x148] sm:$0xff]
        %v366 = vld [vmem:[%s200 + $0x150] sm:$0xff]
        %v367 = vld [vmem:[%s200 + $0x158] sm:$0xff]
        %v368 = vld [vmem:[%s200 + $0x160] sm:$0xff]
        %v369 = vld [vmem:[%s200 + $0x168] sm:$0xff]
        %v370 = vld [vmem:[%s200 + $0x170] sm:$0xff]
        %v371 = vld [vmem:[%s200 + $0x178] sm:$0xff]
        %v372 = vld [vmem:[%s200 + $0x180] sm:$0xff]
        %v373 = vld [vmem:[%s200 + $0x188] sm:$0xff]
        %v374 = vld [vmem:[%s200 + $0x190] sm:$0xff]
        %v375 = vld [vmem:[%s200 + $0x198] sm:$0xff]
        %v376 = vld [vmem:[%s200 + $0x1a0] sm:$0xff]
        %v377 = vld [vmem:[%s200 + $0x1a8] sm:$0xff]
        %v378 = vld [vmem:[%s200 + $0x1b0] sm:$0xff]
        %v379 = vld [vmem:[%s200 + $0x1b8] sm:$0xff]
        %v380 = vld [vmem:[%s200 + $0x1c0] sm:$0xff]
        %v381 = vld [vmem:[%s200 + $0x1c8] sm:$0xff]
        %v382 = vld [vmem:[%s200 + $0x1d0] sm:$0xff]
        %v383 = vld [vmem:[%s200 + $0x1d8] sm:$0xff]
        %v384 = vld [vmem:[%s200 + $0x1e0] sm:$0xff]
        %v385 = vld [vmem:[%s200 + $0x1e8] sm:$0xff]
        %v386 = vld [vmem:[%s200 + $0x1f0] sm:$0xff]
        %v387 = vld [vmem:[%s200 + $0x1f8] sm:$0xff]
        %v388 = vld [vmem:[%s200 + $0x200] sm:$0xff]
        %v389 = vld [vmem:[%s200 + $0x208] sm:$0xff]
        %v390 = vld [vmem:[%s200 + $0x210] sm:$0xff]
        %v391 = vld [vmem:[%s200 + $0x218] sm:$0xff]
        %v392 = vld [vmem:[%s200 + $0x220] sm:$0xff]
        %v393 = vld [vmem:[%s200 + $0x228] sm:$0xff]
        %v394 = vld [vmem:[%s200 + $0x230] sm:$0xff]
        %v395 = vld [vmem:[%s200 + $0x238] sm:$0xff]
        %v396 = vld [vmem:[%s200 + $0x240] sm:$0xff]
        %v397 = vld [vmem:[%s200 + $0x248] sm:$0xff]
        %v398 = vld [vmem:[%s200 + $0x250] sm:$0xff]
        %v399 = vld [vmem:[%s200 + $0x258] sm:$0xff]
        %v400 = vld [vmem:[%s200 + $0x260] sm:$0xff]
        %v401 = vld [vmem:[%s200 + $0x268] sm:$0xff]
        %v402 = vld [vmem:[%s200 + $0x270] sm:$0xff]
        %v403 = vld [vmem:[%s200 + $0x278] sm:$0xff]
        %v404 = vld [vmem:[%s200 + $0x280] sm:$0xff]
        %v405 = vld [vmem:[%s200 + $0x288] sm:$0xff]
        %v406 = vld [vmem:[%s200 + $0x290] sm:$0xff]
        %v407 = vld [vmem:[%s200 + $0x298] sm:$0xff]
        %v408 = vld [vmem:[%s200 + $0x2a0] sm:$0xff]
        %v409 = vld [vmem:[%s200 + $0x2a8] sm:$0xff]
        %v410 = vld [vmem:[%s200 + $0x2b0] sm:$0xff]
        %v411 = vld [vmem:[%s200 + $0x2b8] sm:$0xff]
        %v412 = vld [vmem:[%s200 + $0x2c0] sm:$0xff]
        %v413 = vld [vmem:[%s200 + $0x2c8] sm:$0xff]
        %v414 = vld [vmem:[%s200 + $0x2d0] sm:$0xff]
        %v415 = vld [vmem:[%s200 + $0x2d8] sm:$0xff]
        %v416 = vld [vmem:[%s200 + $0x2e0] sm:$0xff]
        %v417 = vld [vmem:[%s200 + $0x2e8] sm:$0xff]
        %v418 = vld [vmem:[%s200 + $0x2f0] sm:$0xff]
        %v419 = vld [vmem:[%s200 + $0x2f8] sm:$0xff]
        %v420 = vld [vmem:[%s200 + $0x300] sm:$0xff]
        %v421 = vld [vmem:[%s200 + $0x308] sm:$0xff]
        %v422 = vld [vmem:[%s200 + $0x310] sm:$0xff]
        %v423 = vld [vmem:[%s200 + $0x318] sm:$0xff]
        %v424 = vld [vmem:[%s200 + $0x320] sm:$0xff]
        %v425 = vld [vmem:[%s200 + $0x328] sm:$0xff]
        %v426 = vld [vmem:[%s200 + $0x330] sm:$0xff]
        %v427 = vld [vmem:[%s200 + $0x338] sm:$0xff]
        %v428 = vld [vmem:[%s200 + $0x340] sm:$0xff]
        %v429 = vld [vmem:[%s200 + $0x348] sm:$0xff]
        %v430 = vld [vmem:[%s200 + $0x350] sm:$0xff]
        %v431 = vld [vmem:[%s200 + $0x358] sm:$0xff]
        %v432 = vld [vmem:[%s200 + $0x360] sm:$0xff]
        %v433 = vld [vmem:[%s200 + $0x368] sm:$0xff]
        %v434 = vld [vmem:[%s200 + $0x370] sm:$0xff]
        %v435 = vld [vmem:[%s200 + $0x378] sm:$0xff]
        %v436 = vld [vmem:[%s200 + $0x380] sm:$0xff]
        %v437 = vld [vmem:[%s200 + $0x388] sm:$0xff]
        %v438 = vld [vmem:[%s200 + $0x390] sm:$0xff]
        %v439 = vld [vmem:[%s200 + $0x398] sm:$0xff]
        %v440 = vld [vmem:[%s200 + $0x3a0] sm:$0xff]
        %v441 = vld [vmem:[%s200 + $0x3a8] sm:$0xff]
        %v442 = vld [vmem:[%s200 + $0x3b0] sm:$0xff]
        %v443 = vld [vmem:[%s200 + $0x3b8] sm:$0xff]
        %v444 = vld [vmem:[%s200 + $0x3c0] sm:$0xff]
        %v445 = vld [vmem:[%s200 + $0x3c8] sm:$0xff]
        %v446 = vld [vmem:[%s200 + $0x3d0] sm:$0xff]
        %v447 = vld [vmem:[%s200 + $0x3d8] sm:$0xff]
        %v448 = vld [vmem:[%s200 + $0x3e0] sm:$0xff]
        %v449 = vld [vmem:[%s200 + $0x3e8] sm:$0xff]
        %v450 = vld [vmem:[%s200 + $0x3f0] sm:$0xff]
        %v451 = vld [vmem:[%s200 + $0x3f8] sm:$0xff]
        %v452 = vld [vmem:[%s200 + $0x400] sm:$0xff]
        %v453 = vld [vmem:[%s200 + $0x408] sm:$0xff]
        %v454 = vld [vmem:[%s200 + $0x410] sm:$0xff]
        %v455 = vld [vmem:[%s200 + $0x418] sm:$0xff]
        %v456 = vld [vmem:[%s200 + $0x420] sm:$0xff]
        %v457 = vld [vmem:[%s200 + $0x428] sm:$0xff]
        %v458 = vld [vmem:[%s200 + $0x430] sm:$0xff]
        %v459 = vld [vmem:[%s200 + $0x438] sm:$0xff]
        %v460 = vld [vmem:[%s200 + $0x440] sm:$0xff]
        %v461 = vld [vmem:[%s200 + $0x448] sm:$0xff]
        %v462 = vld [vmem:[%s200 + $0x450] sm:$0xff]
        %v463 = vld [vmem:[%s200 + $0x458] sm:$0xff]
        %v464 = vld [vmem:[%s200 + $0x460] sm:$0xff]
        %v465 = vld [vmem:[%s200 + $0x468] sm:$0xff]
        %v466 = vld [vmem:[%s200 + $0x470] sm:$0xff]
        %v467 = vld [vmem:[%s200 + $0x478] sm:$0xff]
        %v468 = vld [vmem:[%s200 + $0x480] sm:$0xff]
        %v469 = vld [vmem:[%s200 + $0x488] sm:$0xff]
        %v470 = vld [vmem:[%s200 + $0x490] sm:$0xff]
        %v471 = vld [vmem:[%s200 + $0x498] sm:$0xff]
        %v472 = vld [vmem:[%s200 + $0x4a0] sm:$0xff]
        %v473 = vld [vmem:[%s200 + $0x4a8] sm:$0xff]
        %v474 = vld [vmem:[%s200 + $0x4b0] sm:$0xff]
        %v475 = vld [vmem:[%s200 + $0x4b8] sm:$0xff]
        %v476 = vld [vmem:[%s200 + $0x4c0] sm:$0xff]
        %v477 = vld [vmem:[%s200 + $0x4c8] sm:$0xff]
        %v478 = vld [vmem:[%s200 + $0x4d0] sm:$0xff]
        %v479 = vld [vmem:[%s200 + $0x4d8] sm:$0xff]
        %v480 = vld [vmem:[%s200 + $0x4e0] sm:$0xff]
        %v481 = vld [vmem:[%s200 + $0x4e8] sm:$0xff]
        %v482 = vld [vmem:[%s200 + $0x4f0] sm:$0xff]
        %v483 = vld [vmem:[%s200 + $0x4f8] sm:$0xff]
        %v484 = vld [vmem:[%s200 + $0x500] sm:$0xff]
        %v485 = vld [vmem:[%s200 + $0x508] sm:$0xff]
        %v486 = vld [vmem:[%s200 + $0x510] sm:$0xff]
        %v487 = vld [vmem:[%s200 + $0x518] sm:$0xff]
        %v488 = vld [vmem:[%s200 + $0x520] sm:$0xff]
        %v489 = vld [vmem:[%s200 + $0x528] sm:$0xff]
        %v490 = vld [vmem:[%s200 + $0x530] sm:$0xff]
        %v491 = vld [vmem:[%s200 + $0x538] sm:$0xff]
        %v492 = vld [vmem:[%s200 + $0x540] sm:$0xff]
        %v493 = vld [vmem:[%s200 + $0x548] sm:$0xff]
        %v494 = vld [vmem:[%s200 + $0x550] sm:$0xff]
        %v495 = vld [vmem:[%s200 + $0x558] sm:$0xff]
        %v496 = vld [vmem:[%s200 + $0x560] sm:$0xff]
        %v497 = vld [vmem:[%s200 + $0x568] sm:$0xff]
        %v498 = vld [vmem:[%s200 + $0x570] sm:$0xff]
        %v499 = vld [vmem:[%s200 + $0x578] sm:$0xff]
        %v500 = vld [vmem:[%s200 + $0x580] sm:$0xff]
        %v501 = vld [vmem:[%s200 + $0x588] sm:$0xff]
        %v502 = vld [vmem:[%s200 + $0x590] sm:$0xff]
        %v503 = vld [vmem:[%s200 + $0x598] sm:$0xff]
        %v504 = vld [vmem:[%s200 + $0x5a0] sm:$0xff]
        %v505 = vld [vmem:[%s200 + $0x5a8] sm:$0xff]
        %v506 = vld [vmem:[%s200 + $0x5b0] sm:$0xff]
        %v507 = vld [vmem:[%s200 + $0x5b8] sm:$0xff]
        %v508 = vld [vmem:[%s200 + $0x5c0] sm:$0xff]
        %v509 = vld [vmem:[%s200 + $0x5c8] sm:$0xff]
        %v510 = vld [vmem:[%s200 + $0x5d0] sm:$0xff]
        %v511 = vld [vmem:[%s200 + $0x5d8] sm:$0xff]
        %v512 = vld [vmem:[%s200 + $0x5e0] sm:$0xff]
        %v513 = vld [vmem:[%s200 + $0x5e8] sm:$0xff]
        %v514 = vld [vmem:[%s200 + $0x5f0] sm:$0xff]
        %v515 = vld [vmem:[%s200 + $0x5f8] sm:$0xff]
        %v516 = vld [vmem:[%s200 + $0x600] sm:$0xff]
        %v517 = vld [vmem:[%s200 + $0x608] sm:$0xff]
        %v518 = vld [vmem:[%s200 + $0x610] sm:$0xff]
        %v519 = vld [vmem:[%s200 + $0x618] sm:$0xff]
        %v520 = vld [vmem:[%s200 + $0x620] sm:$0xff]
        %v521 = vld [vmem:[%s200 + $0x628] sm:$0xff]
        %v522 = vld [vmem:[%s200 + $0x630] sm:$0xff]
        %v523 = vld [vmem:[%s200 + $0x638] sm:$0xff]
        %v524 = vld [vmem:[%s200 + $0x640] sm:$0xff]
        %v525 = vld [vmem:[%s200 + $0x648] sm:$0xff]
        %v526 = vld [vmem:[%s200 + $0x650] sm:$0xff]
        %v527 = vld [vmem:[%s200 + $0x658] sm:$0xff]
        %v528 = vld [vmem:[%s200 + $0x660] sm:$0xff]
        %v529 = vld [vmem:[%s200 + $0x668] sm:$0xff]
        %v530 = vld [vmem:[%s200 + $0x670] sm:$0xff]
        %v531 = vld [vmem:[%s200 + $0x678] sm:$0xff]
        %v532 = vld [vmem:[%s200 + $0x680] sm:$0xff]
        %v533 = vld [vmem:[%s200 + $0x688] sm:$0xff]
        %v534 = vld [vmem:[%s200 + $0x690] sm:$0xff]
        %v535 = vld [vmem:[%s200 + $0x698] sm:$0xff]
        %v536 = vld [vmem:[%s200 + $0x6a0] sm:$0xff]
        %v537 = vld [vmem:[%s200 + $0x6a8] sm:$0xff]
        %v538 = vld [vmem:[%s200 + $0x6b0] sm:$0xff]
        %v539 = vld [vmem:[%s200 + $0x6b8] sm:$0xff]
        %v540 = vld [vmem:[%s200 + $0x6c0] sm:$0xff]
        %v541 = vld [vmem:[%s200 + $0x6c8] sm:$0xff]
        %v542 = vld [vmem:[%s200 + $0x6d0] sm:$0xff]
        %v543 = vld [vmem:[%s200 + $0x6d8] sm:$0xff]
        %v544 = vld [vmem:[%s200 + $0x6e0] sm:$0xff]
        %v545 = vld [vmem:[%s200 + $0x6e8] sm:$0xff]
        %v546 = vld [vmem:[%s200 + $0x6f0] sm:$0xff]
        %v547 = vld [vmem:[%s200 + $0x6f8] sm:$0xff]
        %v548 = vld [vmem:[%s200 + $0x700] sm:$0xff]
        %v549 = vld [vmem:[%s200 + $0x708] sm:$0xff]
        %v550 = vld [vmem:[%s200 + $0x710] sm:$0xff]
        %v551 = vld [vmem:[%s200 + $0x718] sm:$0xff]
        %v552 = vld [vmem:[%s200 + $0x720] sm:$0xff]
        %v553 = vld [vmem:[%s200 + $0x728] sm:$0xff]
        %v554 = vld [vmem:[%s200 + $0x730] sm:$0xff]
        %v555 = vld [vmem:[%s200 + $0x738] sm:$0xff]
        %v556 = vld [vmem:[%s200 + $0x740] sm:$0xff]
        %v557 = vld [vmem:[%s200 + $0x748] sm:$0xff]
        %v558 = vld [vmem:[%s200 + $0x750] sm:$0xff]
        %v559 = vld [vmem:[%s200 + $0x758] sm:$0xff]
        %v560 = vld [vmem:[%s200 + $0x760] sm:$0xff]
        %v561 = vld [vmem:[%s200 + $0x768] sm:$0xff]
        %v562 = vld [vmem:[%s200 + $0x770] sm:$0xff]
        %v563 = vld [vmem:[%s200 + $0x778] sm:$0xff]
        %v564 = vld [vmem:[%s200 + $0x780] sm:$0xff]
        %v565 = vld [vmem:[%s200 + $0x788] sm:$0xff]
        %v566 = vld [vmem:[%s200 + $0x790] sm:$0xff]
        %v567 = vld [vmem:[%s200 + $0x798] sm:$0xff]
        %v568 = vld [vmem:[%s200 + $0x7a0] sm:$0xff]
        %v569 = vld [vmem:[%s200 + $0x7a8] sm:$0xff]
        %v570 = vld [vmem:[%s200 + $0x7b0] sm:$0xff]
        %v571 = vld [vmem:[%s200 + $0x7b8] sm:$0xff]
        %v572 = vld [vmem:[%s200 + $0x7c0] sm:$0xff]
        %v573 = vld [vmem:[%s200 + $0x7c8] sm:$0xff]
        %v574 = vld [vmem:[%s200 + $0x7d0] sm:$0xff]
        %v575 = vld [vmem:[%s200 + $0x7d8] sm:$0xff]
        %v576 = vld [vmem:[%s200 + $0x7e0] sm:$0xff]
        %v577 = vld [vmem:[%s200 + $0x7e8] sm:$0xff]
        %v578 = vld [vmem:[%s200 + $0x7f0] sm:$0xff]
        %v579 = vld [vmem:[%s200 + $0x7f8] sm:$0xff]
        %v580 = vld [vmem:[%s200 + $0x800] sm:$0xff]
        %v581 = vld [vmem:[%s200 + $0x808] sm:$0xff]
        %v582 = vld [vmem:[%s200 + $0x810] sm:$0xff]
        %v583 = vld [vmem:[%s200 + $0x818] sm:$0xff]
        %v584 = vld [vmem:[%s200 + $0x820] sm:$0xff]
        %v585 = vld [vmem:[%s200 + $0x828] sm:$0xff]
        %v586 = vld [vmem:[%s200 + $0x830] sm:$0xff]
        %v587 = vld [vmem:[%s200 + $0x838] sm:$0xff]
        %v588 = vld [vmem:[%s200 + $0x840] sm:$0xff]
        %v589 = vld [vmem:[%s200 + $0x848] sm:$0xff]
        %v590 = vld [vmem:[%s200 + $0x850] sm:$0xff]
        %v591 = vld [vmem:[%s200 + $0x858] sm:$0xff]
        %v592 = vld [vmem:[%s200 + $0x860] sm:$0xff]
        %v593 = vld [vmem:[%s200 + $0x868] sm:$0xff]
        %v594 = vld [vmem:[%s200 + $0x870] sm:$0xff]
        %v595 = vld [vmem:[%s200 + $0x878] sm:$0xff]
        %v596 = vld [vmem:[%s200 + $0x880] sm:$0xff]
        %v597 = vld [vmem:[%s200 + $0x888] sm:$0xff]
        %v598 = vld [vmem:[%s200 + $0x890] sm:$0xff]
        %v599 = vld [vmem:[%s200 + $0x898] sm:$0xff]
        %v600 = vld [vmem:[%s200 + $0x8a0] sm:$0xff]
        %v601 = vld [vmem:[%s200 + $0x8a8] sm:$0xff]
        %v602 = vld [vmem:[%s200 + $0x8b0] sm:$0xff]
        %v603 = vld [vmem:[%s200 + $0x8b8] sm:$0xff]
        %v604 = vld [vmem:[%s200 + $0x8c0] sm:$0xff]
        %v605 = vld [vmem:[%s200 + $0x8c8] sm:$0xff]
        %v606 = vld [vmem:[%s200 + $0x8d0] sm:$0xff]
        %v607 = vld [vmem:[%s200 + $0x8d8] sm:$0xff]
        %v608 = vld [vmem:[%s200 + $0x8e0] sm:$0xff]
        %v609 = vld [vmem:[%s200 + $0x8e8] sm:$0xff]
        %v610 = vld [vmem:[%s200 + $0x8f0] sm:$0xff]
        %v611 = vld [vmem:[%s200 + $0x8f8] sm:$0xff]
        %v612 = vld [vmem:[%s200 + $0x900] sm:$0xff]
        %v613 = vld [vmem:[%s200 + $0x908] sm:$0xff]
        %v614 = vld [vmem:[%s200 + $0x910] sm:$0xff]
        %v615 = vld [vmem:[%s200 + $0x918] sm:$0xff]
        %v616 = vld [vmem:[%s200 + $0x920] sm:$0xff]
        %v617 = vld [vmem:[%s200 + $0x928] sm:$0xff]
        %v618 = vld [vmem:[%s200 + $0x930] sm:$0xff]
        %v619 = vld [vmem:[%s200 + $0x938] sm:$0xff]
        %v620 = vld [vmem:[%s200 + $0x940] sm:$0xff]
        %v621 = vld [vmem:[%s200 + $0x948] sm:$0xff]
        %v622 = vld [vmem:[%s200 + $0x950] sm:$0xff]
        %v623 = vld [vmem:[%s200 + $0x958] sm:$0xff]
        %v624 = vld [vmem:[%s200 + $0x960] sm:$0xff]
        %v625 = vld [vmem:[%s200 + $0x968] sm:$0xff]
        %v626 = vld [vmem:[%s200 + $0x970] sm:$0xff]
        %v627 = vld [vmem:[%s200 + $0x978] sm:$0xff]
        %v628 = vld [vmem:[%s200 + $0x980] sm:$0xff]
        %v629 = vld [vmem:[%s200 + $0x988] sm:$0xff]
        %v630 = vld [vmem:[%s200 + $0x990] sm:$0xff]
        %v631 = vld [vmem:[%s200 + $0x998] sm:$0xff]
        %v632 = vld [vmem:[%s200 + $0x9a0] sm:$0xff]
        %v633 = vld [vmem:[%s200 + $0x9a8] sm:$0xff]
        %v634 = vld [vmem:[%s200 + $0x9b0] sm:$0xff]
        %v635 = vld [vmem:[%s200 + $0x9b8] sm:$0xff]
        %v636 = vld [vmem:[%s200 + $0x9c0] sm:$0xff]
        %v637 = vld [vmem:[%s200 + $0x9c8] sm:$0xff]
        %v638 = vld [vmem:[%s200 + $0x9d0] sm:$0xff]
        %v639 = vld [vmem:[%s200 + $0x9d8] sm:$0xff]
        %v640 = vld [vmem:[%s200 + $0x9e0] sm:$0xff]
        %v641 = vld [vmem:[%s200 + $0x9e8] sm:$0xff]
        %v642 = vld [vmem:[%s200 + $0x9f0] sm:$0xff]
        %v643 = vld [vmem:[%s200 + $0x9f8] sm:$0xff]
        %v644 = vld [vmem:[%s200 + $0xa00] sm:$0xff]
        %v645 = vld [vmem:[%s200 + $0xa08] sm:$0xff]
        %v646 = vld [vmem:[%s200 + $0xa10] sm:$0xff]
        %v647 = vld [vmem:[%s200 + $0xa18] sm:$0xff]
        %v648 = vld [vmem:[%s200 + $0xa20] sm:$0xff]
        %v649 = vld [vmem:[%s200 + $0xa28] sm:$0xff]
        %v650 = vld [vmem:[%s200 + $0xa30] sm:$0xff]
        %v651 = vld [vmem:[%s200 + $0xa38] sm:$0xff]
        %v652 = vld [vmem:[%s200 + $0xa40] sm:$0xff]
        %v653 = vld [vmem:[%s200 + $0xa48] sm:$0xff]
        %v654 = vld [vmem:[%s200 + $0xa50] sm:$0xff]
        %v655 = vld [vmem:[%s200 + $0xa58] sm:$0xff]
        %v656 = vld [vmem:[%s200 + $0xa60] sm:$0xff]
        %v657 = vld [vmem:[%s200 + $0xa68] sm:$0xff]
        %v658 = vld [vmem:[%s200 + $0xa70] sm:$0xff]
        %v659 = vld [vmem:[%s200 + $0xa78] sm:$0xff]
        %v660 = vld [vmem:[%s200 + $0xa80] sm:$0xff]
        %v661 = vld [vmem:[%s200 + $0xa88] sm:$0xff]
        %v662 = vld [vmem:[%s200 + $0xa90] sm:$0xff]
        %v663 = vld [vmem:[%s200 + $0xa98] sm:$0xff]
        %v664 = vld [vmem:[%s200 + $0xaa0] sm:$0xff]
        %v665 = vld [vmem:[%s200 + $0xaa8] sm:$0xff]
        %v666 = vld [vmem:[%s200 + $0xab0] sm:$0xff]
        %v667 = vld [vmem:[%s200 + $0xab8] sm:$0xff]
        %v668 = vld [vmem:[%s200 + $0xac0] sm:$0xff]
        %v669 = vld [vmem:[%s200 + $0xac8] sm:$0xff]
        %v670 = vld [vmem:[%s200 + $0xad0] sm:$0xff]
        %v671 = vld [vmem:[%s200 + $0xad8] sm:$0xff]
        %v672 = vld [vmem:[%s200 + $0xae0] sm:$0xff]
        %v673 = vld [vmem:[%s200 + $0xae8] sm:$0xff]
        %v674 = vld [vmem:[%s200 + $0xaf0] sm:$0xff]
        %v675 = vld [vmem:[%s200 + $0xaf8] sm:$0xff]
        %v676 = vld [vmem:[%s200 + $0xb00] sm:$0xff]
        %v677 = vld [vmem:[%s200 + $0xb08] sm:$0xff]
        %v678 = vld [vmem:[%s200 + $0xb10] sm:$0xff]
        %v679 = vld [vmem:[%s200 + $0xb18] sm:$0xff]
        %v680 = vld [vmem:[%s200 + $0xb20] sm:$0xff]
        %v681 = vld [vmem:[%s200 + $0xb28] sm:$0xff]
        %v682 = vld [vmem:[%s200 + $0xb30] sm:$0xff]
        %v683 = vld [vmem:[%s200 + $0xb38] sm:$0xff]
        %v684 = vld [vmem:[%s200 + $0xb40] sm:$0xff]
        %v685 = vld [vmem:[%s200 + $0xb48] sm:$0xff]
        %v686 = vld [vmem:[%s200 + $0xb50] sm:$0xff]
        %v687 = vld [vmem:[%s200 + $0xb58] sm:$0xff]
        %v688 = vld [vmem:[%s200 + $0xb60] sm:$0xff]
        %v689 = vld [vmem:[%s200 + $0xb68] sm:$0xff]
        %v690 = vld [vmem:[%s200 + $0xb70] sm:$0xff]
        %v691 = vld [vmem:[%s200 + $0xb78] sm:$0xff]
        %v692 = vld [vmem:[%s200 + $0xb80] sm:$0xff]
        %v693 = vld [vmem:[%s200 + $0xb88] sm:$0xff]
        %v694 = vld [vmem:[%s200 + $0xb90] sm:$0xff]
        %v695 = vld [vmem:[%s200 + $0xb98] sm:$0xff]
        %v696 = vld [vmem:[%s200 + $0xba0] sm:$0xff]
        %v697 = vld [vmem:[%s200 + $0xba8] sm:$0xff]
        %v698 = vld [vmem:[%s200 + $0xbb0] sm:$0xff]
        %v699 = vld [vmem:[%s200 + $0xbb8] sm:$0xff]
        %v700 = vld [vmem:[%s200 + $0xbc0] sm:$0xff]
        %v701 = vld [vmem:[%s200 + $0xbc8] sm:$0xff]
        %v702 = vld [vmem:[%s200 + $0xbd0] sm:$0xff]
        %v703 = vld [vmem:[%s200 + $0xbd8] sm:$0xff]
        %v704 = vld [vmem:[%s200 + $0xbe0] sm:$0xff]
        %v705 = vld [vmem:[%s200 + $0xbe8] sm:$0xff]
        %v706 = vld [vmem:[%s200 + $0xbf0] sm:$0xff]
        %v707 = vld [vmem:[%s200 + $0xbf8] sm:$0xff]
        %v708 = vld [vmem:[%s200 + $0xc00] sm:$0xff]
        %v709 = vld [vmem:[%s200 + $0xc08] sm:$0xff]
        %v710 = vld [vmem:[%s200 + $0xc10] sm:$0xff]
        %v711 = vld [vmem:[%s200 + $0xc18] sm:$0xff]
        %v712 = vld [vmem:[%s200 + $0xc20] sm:$0xff]
        %v713 = vld [vmem:[%s200 + $0xc28] sm:$0xff]
        %v714 = vld [vmem:[%s200 + $0xc30] sm:$0xff]
        %v715 = vld [vmem:[%s200 + $0xc38] sm:$0xff]
        %v716 = vld [vmem:[%s200 + $0xc40] sm:$0xff]
        %v717 = vld [vmem:[%s200 + $0xc48] sm:$0xff]
        %v718 = vld [vmem:[%s200 + $0xc50] sm:$0xff]
        %v719 = vld [vmem:[%s200 + $0xc58] sm:$0xff]
        %v720 = vld [vmem:[%s200 + $0xc60] sm:$0xff]
        %v721 = vld [vmem:[%s200 + $0xc68] sm:$0xff]
        %v722 = vld [vmem:[%s200 + $0xc70] sm:$0xff]
        %v723 = vld [vmem:[%s200 + $0xc78] sm:$0xff]
        %v724 = vld [vmem:[%s200 + $0xc80] sm:$0xff]
        %v725 = vld [vmem:[%s200 + $0xc88] sm:$0xff]
        %v726 = vld [vmem:[%s200 + $0xc90] sm:$0xff]
        %v727 = vld [vmem:[%s200 + $0xc98] sm:$0xff]
        %v728 = vld [vmem:[%s200 + $0xca0] sm:$0xff]
        %v729 = vld [vmem:[%s200 + $0xca8] sm:$0xff]
        %v730 = vld [vmem:[%s200 + $0xcb0] sm:$0xff]
        %v731 = vld [vmem:[%s200 + $0xcb8] sm:$0xff]
        %v732 = vld [vmem:[%s200 + $0xcc0] sm:$0xff]
        %v733 = vld [vmem:[%s200 + $0xcc8] sm:$0xff]
        %v734 = vld [vmem:[%s200 + $0xcd0] sm:$0xff]
        %v735 = vld [vmem:[%s200 + $0xcd8] sm:$0xff]
        %v736 = vld [vmem:[%s200 + $0xce0] sm:$0xff]
        %v737 = vld [vmem:[%s200 + $0xce8] sm:$0xff]
        %v738 = vld [vmem:[%s200 + $0xcf0] sm:$0xff]
        %v739 = vld [vmem:[%s200 + $0xcf8] sm:$0xff]
        %v740 = vld [vmem:[%s200 + $0xd00] sm:$0xff]
        %v741 = vld [vmem:[%s200 + $0xd08] sm:$0xff]
        %v742 = vld [vmem:[%s200 + $0xd10] sm:$0xff]
        %v743 = vld [vmem:[%s200 + $0xd18] sm:$0xff]
        %v744 = vld [vmem:[%s200 + $0xd20] sm:$0xff]
        %v745 = vld [vmem:[%s200 + $0xd28] sm:$0xff]
        %v746 = vld [vmem:[%s200 + $0xd30] sm:$0xff]
        %v747 = vld [vmem:[%s200 + $0xd38] sm:$0xff]
        %v748 = vld [vmem:[%s200 + $0xd40] sm:$0xff]
        %v749 = vld [vmem:[%s200 + $0xd48] sm:$0xff]
        %v750 = vld [vmem:[%s200 + $0xd50] sm:$0xff]
        %v751 = vld [vmem:[%s200 + $0xd58] sm:$0xff]
        %v752 = vld [vmem:[%s200 + $0xd60] sm:$0xff]
        %v753 = vld [vmem:[%s200 + $0xd68] sm:$0xff]
        %v754 = vld [vmem:[%s200 + $0xd70] sm:$0xff]
        %v755 = vld [vmem:[%s200 + $0xd78] sm:$0xff]
        %v756 = vld [vmem:[%s200 + $0xd80] sm:$0xff]
        %v757 = vld [vmem:[%s200 + $0xd88] sm:$0xff]
        %v758 = vld [vmem:[%s200 + $0xd90] sm:$0xff]
        %v759 = vld [vmem:[%s200 + $0xd98] sm:$0xff]
        %v760 = vld [vmem:[%s200 + $0xda0] sm:$0xff]
        %v761 = vld [vmem:[%s200 + $0xda8] sm:$0xff]
        %v762 = vld [vmem:[%s200 + $0xdb0] sm:$0xff]
        %v763 = vld [vmem:[%s200 + $0xdb8] sm:$0xff]
        %v764 = vld [vmem:[%s200 + $0xdc0] sm:$0xff]
        %v765 = vld [vmem:[%s200 + $0xdc8] sm:$0xff]
        %v766 = vld [vmem:[%s200 + $0xdd0] sm:$0xff]
        %v767 = vld [vmem:[%s200 + $0xdd8] sm:$0xff]
        %v768 = vld [vmem:[%s200 + $0xde0] sm:$0xff]
        %v769 = vld [vmem:[%s200 + $0xde8] sm:$0xff]
        %v770 = vld [vmem:[%s200 + $0xdf0] sm:$0xff]
        %v771 = vld [vmem:[%s200 + $0xdf8] sm:$0xff]
        %v772 = vld [vmem:[%s200 + $0xe00] sm:$0xff]
        %v773 = vld [vmem:[%s200 + $0xe08] sm:$0xff]
        %v774 = vld [vmem:[%s200 + $0xe10] sm:$0xff]
        %v775 = vld [vmem:[%s200 + $0xe18] sm:$0xff]
        %v776 = vld [vmem:[%s200 + $0xe20] sm:$0xff]
        %v777 = vld [vmem:[%s200 + $0xe28] sm:$0xff]
        %v778 = vld [vmem:[%s200 + $0xe30] sm:$0xff]
        %v779 = vld [vmem:[%s200 + $0xe38] sm:$0xff]
        %v780 = vld [vmem:[%s200 + $0xe40] sm:$0xff]
        %v781 = vld [vmem:[%s200 + $0xe48] sm:$0xff]
        %v782 = vld [vmem:[%s200 + $0xe50] sm:$0xff]
        %v783 = vld [vmem:[%s200 + $0xe58] sm:$0xff]
        %v784 = vld [vmem:[%s200 + $0xe60] sm:$0xff]
        %v785 = vld [vmem:[%s200 + $0xe68] sm:$0xff]
        %v786 = vld [vmem:[%s200 + $0xe70] sm:$0xff]
        %v787 = vld [vmem:[%s200 + $0xe78] sm:$0xff]
        %v788 = vld [vmem:[%s200 + $0xe80] sm:$0xff]
        %v789 = vld [vmem:[%s200 + $0xe88] sm:$0xff]
        %v790 = vld [vmem:[%s200 + $0xe90] sm:$0xff]
        %v791 = vld [vmem:[%s200 + $0xe98] sm:$0xff]
        %v792 = vld [vmem:[%s200 + $0xea0] sm:$0xff]
        %v793 = vld [vmem:[%s200 + $0xea8] sm:$0xff]
        %v794 = vld [vmem:[%s200 + $0xeb0] sm:$0xff]
        %v795 = vld [vmem:[%s200 + $0xeb8] sm:$0xff]
        %v796 = vld [vmem:[%s200 + $0xec0] sm:$0xff]
        %v797 = vld [vmem:[%s200 + $0xec8] sm:$0xff]
        %v798 = vld [vmem:[%s200 + $0xed0] sm:$0xff]
        %v799 = vld [vmem:[%s200 + $0xed8] sm:$0xff]
        %v800 = vld [vmem:[%s200 + $0xee0] sm:$0xff]
        %v801 = vld [vmem:[%s200 + $0xee8] sm:$0xff]
        %v802 = vld [vmem:[%s200 + $0xef0] sm:$0xff]
        %v803 = vld [vmem:[%s200 + $0xef8] sm:$0xff]
        %v804 = vld [vmem:[%s200 + $0xf00] sm:$0xff]
        %v805 = vld [vmem:[%s200 + $0xf08] sm:$0xff]
        %v806 = vld [vmem:[%s200 + $0xf10] sm:$0xff]
        %v807 = vld [vmem:[%s200 + $0xf18] sm:$0xff]
        %v808 = vld [vmem:[%s200 + $0xf20] sm:$0xff]
        %v809 = vld [vmem:[%s200 + $0xf28] sm:$0xff]
        %v810 = vld [vmem:[%s200 + $0xf30] sm:$0xff]
        %v811 = vld [vmem:[%s200 + $0xf38] sm:$0xff]
        %v812 = vld [vmem:[%s200 + $0xf40] sm:$0xff]
        %v813 = vld [vmem:[%s200 + $0xf48] sm:$0xff]
        %v814 = vld [vmem:[%s200 + $0xf50] sm:$0xff]
        %v815 = vld [vmem:[%s200 + $0xf58] sm:$0xff]
        %v816 = vld [vmem:[%s200 + $0xf60] sm:$0xff]
        %v817 = vld [vmem:[%s200 + $0xf68] sm:$0xff]
        %v818 = vld [vmem:[%s200 + $0xf70] sm:$0xff]
        %v819 = vld [vmem:[%s200 + $0xf78] sm:$0xff]
        %v820 = vld [vmem:[%s200 + $0xf80] sm:$0xff]
        %v821 = vld [vmem:[%s200 + $0xf88] sm:$0xff]
        %v822 = vld [vmem:[%s200 + $0xf90] sm:$0xff]
        %v823 = vld [vmem:[%s200 + $0xf98] sm:$0xff]
        %v824 = vld [vmem:[%s200 + $0xfa0] sm:$0xff]
        %v825 = vld [vmem:[%s200 + $0xfa8] sm:$0xff]
        %v826 = vld [vmem:[%s200 + $0xfb0] sm:$0xff]
        %v827 = vld [vmem:[%s200 + $0xfb8] sm:$0xff]
        %v828 = vld [vmem:[%s200 + $0xfc0] sm:$0xff]
        %v829 = vld [vmem:[%s200 + $0xfc8] sm:$0xff]
        %v830 = vld [vmem:[%s200 + $0xfd0] sm:$0xff]
        %v831 = vld [vmem:[%s200 + $0xfd8] sm:$0xff]
        %v832 = vld [vmem:[%s200 + $0xfe0] sm:$0xff]
        %v833 = vld [vmem:[%s200 + $0xfe8] sm:$0xff]
        %v834 = vld [vmem:[%s200 + $0xff0] sm:$0xff]
        %v835 = vld [vmem:[%s200 + $0xff8] sm:$0xff]
        %v836 = vld [vmem:[%s200 + $0x1000] sm:$0xff]
        %v837 = vld [vmem:[%s200 + $0x1008] sm:$0xff]
        %v838 = vld [vmem:[%s200 + $0x1010] sm:$0xff]
        %v839 = vld [vmem:[%s200 + $0x1018] sm:$0xff]
        %v840 = vld [vmem:[%s200 + $0x1020] sm:$0xff]
        %v841 = vld [vmem:[%s200 + $0x1028] sm:$0xff]
        %v842 = vld [vmem:[%s200 + $0x1030] sm:$0xff]
        %v843 = vld [vmem:[%s200 + $0x1038] sm:$0xff]
        %v844 = vld [vmem:[%s200 + $0x1040] sm:$0xff]
        %v845 = vld [vmem:[%s200 + $0x1048] sm:$0xff]
        %v846 = vld [vmem:[%s200 + $0x1050] sm:$0xff]
        %v847 = vld [vmem:[%s200 + $0x1058] sm:$0xff]
        %v848 = vld [vmem:[%s200 + $0x1060] sm:$0xff]
        %v849 = vld [vmem:[%s200 + $0x1068] sm:$0xff]
        %v850 = vld [vmem:[%s200 + $0x1070] sm:$0xff]
        %v851 = vld [vmem:[%s200 + $0x1078] sm:$0xff]
        %v852 = vld [vmem:[%s200 + $0x1080] sm:$0xff]
        %v853 = vld [vmem:[%s200 + $0x1088] sm:$0xff]
        %v854 = vld [vmem:[%s200 + $0x1090] sm:$0xff]
        %v855 = vld [vmem:[%s200 + $0x1098] sm:$0xff]
        %v856 = vld [vmem:[%s200 + $0x10a0] sm:$0xff]
        %v857 = vld [vmem:[%s200 + $0x10a8] sm:$0xff]
        %v858 = vld [vmem:[%s200 + $0x10b0] sm:$0xff]
        %v859 = vld [vmem:[%s200 + $0x10b8] sm:$0xff]
        %v860 = vld [vmem:[%s200 + $0x10c0] sm:$0xff]
        %v861 = vld [vmem:[%s200 + $0x10c8] sm:$0xff]
        %v862 = vld [vmem:[%s200 + $0x10d0] sm:$0xff]
        %v863 = vld [vmem:[%s200 + $0x10d8] sm:$0xff]
        %v864 = vld [vmem:[%s200 + $0x10e0] sm:$0xff]
        %v865 = vld [vmem:[%s200 + $0x10e8] sm:$0xff]
        %v866 = vld [vmem:[%s200 + $0x10f0] sm:$0xff]
        %v867 = vld [vmem:[%s200 + $0x10f8] sm:$0xff]
        %v868 = vld [vmem:[%s200 + $0x1100] sm:$0xff]
        %v869 = vld [vmem:[%s200 + $0x1108] sm:$0xff]
        %v870 = vld [vmem:[%s200 + $0x1110] sm:$0xff]
        %v871 = vld [vmem:[%s200 + $0x1118] sm:$0xff]
        %v872 = vld [vmem:[%s200 + $0x1120] sm:$0xff]
        %v873 = vld [vmem:[%s200 + $0x1128] sm:$0xff]
        %v874 = vld [vmem:[%s200 + $0x1130] sm:$0xff]
        %v875 = vld [vmem:[%s200 + $0x1138] sm:$0xff]
        %v876 = vld [vmem:[%s200 + $0x1140] sm:$0xff]
        %v877 = vld [vmem:[%s200 + $0x1148] sm:$0xff]
        %v878 = vld [vmem:[%s200 + $0x1150] sm:$0xff]
        %v879 = vld [vmem:[%s200 + $0x1158] sm:$0xff]
        %v880 = vld [vmem:[%s200 + $0x1160] sm:$0xff]
        %v881 = vld [vmem:[%s200 + $0x1168] sm:$0xff]
        %v882 = vld [vmem:[%s200 + $0x1170] sm:$0xff]
        %v883 = vld [vmem:[%s200 + $0x1178] sm:$0xff]
        %v884 = vld [vmem:[%s200 + $0x1180] sm:$0xff]
        %v885 = vld [vmem:[%s200 + $0x1188] sm:$0xff]
        %v886 = vld [vmem:[%s200 + $0x1190] sm:$0xff]
        %v887 = vld [vmem:[%s200 + $0x1198] sm:$0xff]
        %v888 = vld [vmem:[%s200 + $0x11a0] sm:$0xff]
        %v889 = vld [vmem:[%s200 + $0x11a8] sm:$0xff]
        %v890 = vld [vmem:[%s200 + $0x11b0] sm:$0xff]
        %v891 = vld [vmem:[%s200 + $0x11b8] sm:$0xff]
        %v892 = vld [vmem:[%s200 + $0x11c0] sm:$0xff]
        %v893 = vld [vmem:[%s200 + $0x11c8] sm:$0xff]
        %v894 = vld [vmem:[%s200 + $0x11d0] sm:$0xff]
        %v895 = vld [vmem:[%s200 + $0x11d8] sm:$0xff]
        %v896 = vld [vmem:[%s200 + $0x11e0] sm:$0xff]
        %v897 = vld [vmem:[%s200 + $0x11e8] sm:$0xff]
        %v898 = vld [vmem:[%s200 + $0x11f0] sm:$0xff]
        %v899 = vld [vmem:[%s200 + $0x11f8] sm:$0xff]
        %v900 = vld [vmem:[%s200 + $0x1200] sm:$0xff]
        %v901 = vld [vmem:[%s200 + $0x1208] sm:$0xff]
        %v902 = vld [vmem:[%s200 + $0x1210] sm:$0xff]
        %v903 = vld [vmem:[%s200 + $0x1218] sm:$0xff]
        %v904 = vld [vmem:[%s200 + $0x1220] sm:$0xff]
        %v905 = vld [vmem:[%s200 + $0x1228] sm:$0xff]
        %v906 = vld [vmem:[%s200 + $0x1230] sm:$0xff]
        %v907 = vld [vmem:[%s200 + $0x1238] sm:$0xff]
        %v908 = vld [vmem:[%s200 + $0x1240] sm:$0xff]
        %v909 = vld [vmem:[%s200 + $0x1248] sm:$0xff]
        %v910 = vld [vmem:[%s200 + $0x1250] sm:$0xff]
        %v911 = vld [vmem:[%s200 + $0x1258] sm:$0xff]
        %v912 = vld [vmem:[%s200 + $0x1260] sm:$0xff]
        %v913 = vld [vmem:[%s200 + $0x1268] sm:$0xff]
        %v914 = vld [vmem:[%s200 + $0x1270] sm:$0xff]
        %v915 = vld [vmem:[%s200 + $0x1278] sm:$0xff]
        %v916 = vld [vmem:[%s200 + $0x1280] sm:$0xff]
        %v917 = vld [vmem:[%s200 + $0x1288] sm:$0xff]
        %v918 = vld [vmem:[%s200 + $0x1290] sm:$0xff]
        %v919 = vld [vmem:[%s200 + $0x1298] sm:$0xff]
        %v920 = vld [vmem:[%s200 + $0x12a0] sm:$0xff]
        %v921 = vld [vmem:[%s200 + $0x12a8] sm:$0xff]
        %v922 = vld [vmem:[%s200 + $0x12b0] sm:$0xff]
        %v923 = vld [vmem:[%s200 + $0x12b8] sm:$0xff]
        %v924 = vld [vmem:[%s200 + $0x12c0] sm:$0xff]
        %v925 = vld [vmem:[%s200 + $0x12c8] sm:$0xff]
        %v926 = vld [vmem:[%s200 + $0x12d0] sm:$0xff]
        %v927 = vld [vmem:[%s200 + $0x12d8] sm:$0xff]
        %v928 = vld [vmem:[%s200 + $0x12e0] sm:$0xff]
        %v929 = vld [vmem:[%s200 + $0x12e8] sm:$0xff]
        %v930 = vld [vmem:[%s200 + $0x12f0] sm:$0xff]
        %v931 = vld [vmem:[%s200 + $0x12f8] sm:$0xff]
        %v932 = vld [vmem:[%s200 + $0x1300] sm:$0xff]
        %v933 = vld [vmem:[%s200 + $0x1308] sm:$0xff]
        %v934 = vld [vmem:[%s200 + $0x1310] sm:$0xff]
        %v935 = vld [vmem:[%s200 + $0x1318] sm:$0xff]
        %v936 = vld [vmem:[%s200 + $0x1320] sm:$0xff]
        %v937 = vld [vmem:[%s200 + $0x1328] sm:$0xff]
        %v938 = vld [vmem:[%s200 + $0x1330] sm:$0xff]
        %v939 = vld [vmem:[%s200 + $0x1338] sm:$0xff]
        %v940 = vld [vmem:[%s200 + $0x1340] sm:$0xff]
        %v941 = vld [vmem:[%s200 + $0x1348] sm:$0xff]
        %v942 = vld [vmem:[%s200 + $0x1350] sm:$0xff]
        %v943 = vld [vmem:[%s200 + $0x1358] sm:$0xff]
        %v944 = vld [vmem:[%s200 + $0x1360] sm:$0xff]
        %v945 = vld [vmem:[%s200 + $0x1368] sm:$0xff]
        %v946 = vld [vmem:[%s200 + $0x1370] sm:$0xff]
        %v947 = vld [vmem:[%s200 + $0x1378] sm:$0xff]
        %v948 = vld [vmem:[%s200 + $0x1380] sm:$0xff]
        %v949 = vld [vmem:[%s200 + $0x1388] sm:$0xff]
        %v950 = vld [vmem:[%s200 + $0x1390] sm:$0xff]
        %v951 = vld [vmem:[%s200 + $0x1398] sm:$0xff]
        %v952 = vld [vmem:[%s200 + $0x13a0] sm:$0xff]
        %v953 = vld [vmem:[%s200 + $0x13a8] sm:$0xff]
        %v954 = vld [vmem:[%s200 + $0x13b0] sm:$0xff]
        %v955 = vld [vmem:[%s200 + $0x13b8] sm:$0xff]
        %v956 = vld [vmem:[%s200 + $0x13c0] sm:$0xff]
        %v957 = vld [vmem:[%s200 + $0x13c8] sm:$0xff]
        %v958 = vld [vmem:[%s200 + $0x13d0] sm:$0xff]
        %v959 = vld [vmem:[%s200 + $0x13d8] sm:$0xff]
        %v960 = vld [vmem:[%s200 + $0x13e0] sm:$0xff]
        %v961 = vld [vmem:[%s200 + $0x13e8] sm:$0xff]
        %v962 = vld [vmem:[%s200 + $0x13f0] sm:$0xff]
        %v963 = vld [vmem:[%s200 + $0x13f8] sm:$0xff]
        %v964 = vld [vmem:[%s200 + $0x1400] sm:$0xff]
        %v965 = vld [vmem:[%s200 + $0x1408] sm:$0xff]
        %v966 = vld [vmem:[%s200 + $0x1410] sm:$0xff]
        %v967 = vld [vmem:[%s200 + $0x1418] sm:$0xff]
        %v968 = vld [vmem:[%s200 + $0x1420] sm:$0xff]
        %v969 = vld [vmem:[%s200 + $0x1428] sm:$0xff]
        %v970 = vld [vmem:[%s200 + $0x1430] sm:$0xff]
        %v971 = vld [vmem:[%s200 + $0x1438] sm:$0xff]
        %v972 = vld [vmem:[%s200 + $0x1440] sm:$0xff]
        %v973 = vld [vmem:[%s200 + $0x1448] sm:$0xff]
        %v974 = vld [vmem:[%s200 + $0x1450] sm:$0xff]
        %v975 = vld [vmem:[%s200 + $0x1458] sm:$0xff]
        %v976 = vld [vmem:[%s200 + $0x1460] sm:$0xff]
        %v977 = vld [vmem:[%s200 + $0x1468] sm:$0xff]
        %v978 = vld [vmem:[%s200 + $0x1470] sm:$0xff]
        %v979 = vld [vmem:[%s200 + $0x1478] sm:$0xff]
        %v980 = vld [vmem:[%s200 + $0x1480] sm:$0xff]
        %v981 = vld [vmem:[%s200 + $0x1488] sm:$0xff]
        %v982 = vld [vmem:[%s200 + $0x1490] sm:$0xff]
        %v983 = vld [vmem:[%s200 + $0x1498] sm:$0xff]
        %v984 = vld [vmem:[%s200 + $0x14a0] sm:$0xff]
        %v985 = vld [vmem:[%s200 + $0x14a8] sm:$0xff]
        %v986 = vld [vmem:[%s200 + $0x14b0] sm:$0xff]
        %v987 = vld [vmem:[%s200 + $0x14b8] sm:$0xff]
        %v988 = vld [vmem:[%s200 + $0x14c0] sm:$0xff]
        %v989 = vld [vmem:[%s200 + $0x14c8] sm:$0xff]
        %v990 = vld [vmem:[%s200 + $0x14d0] sm:$0xff]
        %v991 = vld [vmem:[%s200 + $0x14d8] sm:$0xff]
        %v992 = vld [vmem:[%s200 + $0x14e0] sm:$0xff]
        %v993 = vld [vmem:[%s200 + $0x14e8] sm:$0xff]
        %v994 = vld [vmem:[%s200 + $0x14f0] sm:$0xff]
        %v995 = vld [vmem:[%s200 + $0x14f8] sm:$0xff]
        %v996 = vld [vmem:[%s209] sm:$0x3]
        %v998 = vlaneseq
        %v999 = vshrl.u32 %v998, 7
        %v1000 = vsub.s32 0, %v999
        %v1001 = vrot.slane %v996, %v1000
        %v1002 = vlaneseq
        %v1003 = vshrl.u32 %v1002, 7
        %v1004 = vsub.s32 1, %v1003
        %v1005 = vrot.slane %v996, %v1004
        %v1680 = vunpack.c.l.b16 %v324
        %v1681 = vunpack.c.h.b16 %v324
        %v1682 = vunpack.c.l.b16 %v325
        %v1683 = vunpack.c.h.b16 %v325
        %v1684 = vunpack.c.l.b16 %v326
        %v1685 = vunpack.c.h.b16 %v326
        %v1686 = vunpack.c.l.b16 %v327
        %v1687 = vunpack.c.h.b16 %v327
        %v1688 = vunpack.c.l.b16 %v328
        %v1689 = vunpack.c.h.b16 %v328
        %v1690 = vunpack.c.l.b16 %v329
        %v1691 = vunpack.c.h.b16 %v329
        %v1692 = vunpack.c.l.b16 %v330
        %v1693 = vunpack.c.h.b16 %v330
        %v1694 = vunpack.c.l.b16 %v331
        %v1695 = vunpack.c.h.b16 %v331
        %v1696 = vunpack.c.l.b16 %v332
        %v1697 = vunpack.c.h.b16 %v332
        %v1698 = vunpack.c.l.b16 %v333
        %v1699 = vunpack.c.h.b16 %v333
        %v1700 = vunpack.c.l.b16 %v334
        %v1701 = vunpack.c.h.b16 %v334
        %v1702 = vunpack.c.l.b16 %v335
        %v1703 = vunpack.c.h.b16 %v335
        %v1704 = vunpack.c.l.b16 %v336
        %v1705 = vunpack.c.h.b16 %v336
        %v1706 = vunpack.c.l.b16 %v337
        %v1707 = vunpack.c.h.b16 %v337
        %v1708 = vunpack.c.l.b16 %v338
        %v1709 = vunpack.c.h.b16 %v338
        %v1710 = vunpack.c.l.b16 %v339
        %v1711 = vunpack.c.h.b16 %v339
        %v1712 = vunpack.c.l.b16 %v340
        %v1713 = vunpack.c.h.b16 %v340
        %v1714 = vunpack.c.l.b16 %v341
        %v1715 = vunpack.c.h.b16 %v341
        %v1716 = vunpack.c.l.b16 %v342
        %v1717 = vunpack.c.h.b16 %v342
        %v1718 = vunpack.c.l.b16 %v343
        %v1719 = vunpack.c.h.b16 %v343
        %v1720 = vunpack.c.l.b16 %v344
        %v1721 = vunpack.c.h.b16 %v344
        %v1722 = vunpack.c.l.b16 %v345
        %v1723 = vunpack.c.h.b16 %v345
        %v1724 = vunpack.c.l.b16 %v346
        %v1725 = vunpack.c.h.b16 %v346
        %v1726 = vunpack.c.l.b16 %v347
        %v1727 = vunpack.c.h.b16 %v347
        %v1728 = vunpack.c.l.b16 %v348
        %v1729 = vunpack.c.h.b16 %v348
        %v1730 = vunpack.c.l.b16 %v349
        %v1731 = vunpack.c.h.b16 %v349
        %v1732 = vunpack.c.l.b16 %v350
        %v1733 = vunpack.c.h.b16 %v350
        %v1734 = vunpack.c.l.b16 %v351
        %v1735 = vunpack.c.h.b16 %v351
        %v1736 = vunpack.c.l.b16 %v352
        %v1737 = vunpack.c.h.b16 %v352
        %v1738 = vunpack.c.l.b16 %v353
        %v1739 = vunpack.c.h.b16 %v353
        %v1740 = vunpack.c.l.b16 %v354
        %v1741 = vunpack.c.h.b16 %v354
        %v1742 = vunpack.c.l.b16 %v355
        %v1743 = vunpack.c.h.b16 %v355
        %v1744 = vunpack.c.l.b16 %v356
        %v1745 = vunpack.c.h.b16 %v356
        %v1746 = vunpack.c.l.b16 %v357
        %v1747 = vunpack.c.h.b16 %v357
        %v1748 = vunpack.c.l.b16 %v358
        %v1749 = vunpack.c.h.b16 %v358
        %v1750 = vunpack.c.l.b16 %v359
        %v1751 = vunpack.c.h.b16 %v359
        %v1752 = vunpack.c.l.b16 %v360
        %v1753 = vunpack.c.h.b16 %v360
        %v1754 = vunpack.c.l.b16 %v361
        %v1755 = vunpack.c.h.b16 %v361
        %v1756 = vunpack.c.l.b16 %v362
        %v1757 = vunpack.c.h.b16 %v362
        %v1758 = vunpack.c.l.b16 %v363
        %v1759 = vunpack.c.h.b16 %v363
        %v1760 = vunpack.c.l.b16 %v364
        %v1761 = vunpack.c.h.b16 %v364
        %v1762 = vunpack.c.l.b16 %v365
        %v1763 = vunpack.c.h.b16 %v365
        %v1764 = vunpack.c.l.b16 %v366
        %v1765 = vunpack.c.h.b16 %v366
        %v1766 = vunpack.c.l.b16 %v367
        %v1767 = vunpack.c.h.b16 %v367
        %v1768 = vunpack.c.l.b16 %v368
        %v1769 = vunpack.c.h.b16 %v368
        %v1770 = vunpack.c.l.b16 %v369
        %v1771 = vunpack.c.h.b16 %v369
        %v1772 = vunpack.c.l.b16 %v370
        %v1773 = vunpack.c.h.b16 %v370
        %v1774 = vunpack.c.l.b16 %v371
        %v1775 = vunpack.c.h.b16 %v371
        %v1776 = vunpack.c.l.b16 %v372
        %v1777 = vunpack.c.h.b16 %v372
        %v1778 = vunpack.c.l.b16 %v373
        %v1779 = vunpack.c.h.b16 %v373
        %v1780 = vunpack.c.l.b16 %v374
        %v1781 = vunpack.c.h.b16 %v374
        %v1782 = vunpack.c.l.b16 %v375
        %v1783 = vunpack.c.h.b16 %v375
        %v1784 = vunpack.c.l.b16 %v376
        %v1785 = vunpack.c.h.b16 %v376
        %v1786 = vunpack.c.l.b16 %v377
        %v1787 = vunpack.c.h.b16 %v377
        %v1788 = vunpack.c.l.b16 %v378
        %v1789 = vunpack.c.h.b16 %v378
        %v1790 = vunpack.c.l.b16 %v379
        %v1791 = vunpack.c.h.b16 %v379
        %v1792 = vunpack.c.l.b16 %v380
        %v1793 = vunpack.c.h.b16 %v380
        %v1794 = vunpack.c.l.b16 %v381
        %v1795 = vunpack.c.h.b16 %v381
        %v1796 = vunpack.c.l.b16 %v382
        %v1797 = vunpack.c.h.b16 %v382
        %v1798 = vunpack.c.l.b16 %v383
        %v1799 = vunpack.c.h.b16 %v383
        %v1800 = vunpack.c.l.b16 %v384
        %v1801 = vunpack.c.h.b16 %v384
        %v1802 = vunpack.c.l.b16 %v385
        %v1803 = vunpack.c.h.b16 %v385
        %v1804 = vunpack.c.l.b16 %v386
        %v1805 = vunpack.c.h.b16 %v386
        %v1806 = vunpack.c.l.b16 %v387
        %v1807 = vunpack.c.h.b16 %v387
        %v1808 = vunpack.c.l.b16 %v388
        %v1809 = vunpack.c.h.b16 %v388
        %v1810 = vunpack.c.l.b16 %v389
        %v1811 = vunpack.c.h.b16 %v389
        %v1812 = vunpack.c.l.b16 %v390
        %v1813 = vunpack.c.h.b16 %v390
        %v1814 = vunpack.c.l.b16 %v391
        %v1815 = vunpack.c.h.b16 %v391
        %v1816 = vunpack.c.l.b16 %v392
        %v1817 = vunpack.c.h.b16 %v392
        %v1818 = vunpack.c.l.b16 %v393
        %v1819 = vunpack.c.h.b16 %v393
        %v1820 = vunpack.c.l.b16 %v394
        %v1821 = vunpack.c.h.b16 %v394
        %v1822 = vunpack.c.l.b16 %v395
        %v1823 = vunpack.c.h.b16 %v395
        %v1824 = vunpack.c.l.b16 %v396
        %v1825 = vunpack.c.h.b16 %v396
        %v1826 = vunpack.c.l.b16 %v397
        %v1827 = vunpack.c.h.b16 %v397
        %v1828 = vunpack.c.l.b16 %v398
        %v1829 = vunpack.c.h.b16 %v398
        %v1830 = vunpack.c.l.b16 %v399
        %v1831 = vunpack.c.h.b16 %v399
        %v1832 = vunpack.c.l.b16 %v400
        %v1833 = vunpack.c.h.b16 %v400
        %v1834 = vunpack.c.l.b16 %v401
        %v1835 = vunpack.c.h.b16 %v401
        %v1836 = vunpack.c.l.b16 %v402
        %v1837 = vunpack.c.h.b16 %v402
        %v1838 = vunpack.c.l.b16 %v403
        %v1839 = vunpack.c.h.b16 %v403
        %v1840 = vunpack.c.l.b16 %v404
        %v1841 = vunpack.c.h.b16 %v404
        %v1842 = vunpack.c.l.b16 %v405
        %v1843 = vunpack.c.h.b16 %v405
        %v1844 = vunpack.c.l.b16 %v406
        %v1845 = vunpack.c.h.b16 %v406
        %v1846 = vunpack.c.l.b16 %v407
        %v1847 = vunpack.c.h.b16 %v407
        %v1848 = vunpack.c.l.b16 %v408
        %v1849 = vunpack.c.h.b16 %v408
        %v1850 = vunpack.c.l.b16 %v409
        %v1851 = vunpack.c.h.b16 %v409
        %v1852 = vunpack.c.l.b16 %v410
        %v1853 = vunpack.c.h.b16 %v410
        %v1854 = vunpack.c.l.b16 %v411
        %v1855 = vunpack.c.h.b16 %v411
        %v1856 = vunpack.c.l.b16 %v412
        %v1857 = vunpack.c.h.b16 %v412
        %v1858 = vunpack.c.l.b16 %v413
        %v1859 = vunpack.c.h.b16 %v413
        %v1860 = vunpack.c.l.b16 %v414
        %v1861 = vunpack.c.h.b16 %v414
        %v1862 = vunpack.c.l.b16 %v415
        %v1863 = vunpack.c.h.b16 %v415
        %v1864 = vunpack.c.l.b16 %v416
        %v1865 = vunpack.c.h.b16 %v416
        %v1866 = vunpack.c.l.b16 %v417
        %v1867 = vunpack.c.h.b16 %v417
        %v1868 = vunpack.c.l.b16 %v418
        %v1869 = vunpack.c.h.b16 %v418
        %v1870 = vunpack.c.l.b16 %v419
        %v1871 = vunpack.c.h.b16 %v419
        %v1872 = vunpack.c.l.b16 %v420
        %v1873 = vunpack.c.h.b16 %v420
        %v1874 = vunpack.c.l.b16 %v421
        %v1875 = vunpack.c.h.b16 %v421
        %v1876 = vunpack.c.l.b16 %v422
        %v1877 = vunpack.c.h.b16 %v422
        %v1878 = vunpack.c.l.b16 %v423
        %v1879 = vunpack.c.h.b16 %v423
        %v1880 = vunpack.c.l.b16 %v424
        %v1881 = vunpack.c.h.b16 %v424
        %v1882 = vunpack.c.l.b16 %v425
        %v1883 = vunpack.c.h.b16 %v425
        %v1884 = vunpack.c.l.b16 %v426
        %v1885 = vunpack.c.h.b16 %v426
        %v1886 = vunpack.c.l.b16 %v427
        %v1887 = vunpack.c.h.b16 %v427
        %v1888 = vunpack.c.l.b16 %v428
        %v1889 = vunpack.c.h.b16 %v428
        %v1890 = vunpack.c.l.b16 %v429
        %v1891 = vunpack.c.h.b16 %v429
        %v1892 = vunpack.c.l.b16 %v430
        %v1893 = vunpack.c.h.b16 %v430
        %v1894 = vunpack.c.l.b16 %v431
        %v1895 = vunpack.c.h.b16 %v431
        %v1896 = vunpack.c.l.b16 %v432
        %v1897 = vunpack.c.h.b16 %v432
        %v1898 = vunpack.c.l.b16 %v433
        %v1899 = vunpack.c.h.b16 %v433
        %v1900 = vunpack.c.l.b16 %v434
        %v1901 = vunpack.c.h.b16 %v434
        %v1902 = vunpack.c.l.b16 %v435
        %v1903 = vunpack.c.h.b16 %v435
        %v1904 = vunpack.c.l.b16 %v436
        %v1905 = vunpack.c.h.b16 %v436
        %v1906 = vunpack.c.l.b16 %v437
        %v1907 = vunpack.c.h.b16 %v437
        %v1908 = vunpack.c.l.b16 %v438
        %v1909 = vunpack.c.h.b16 %v438
        %v1910 = vunpack.c.l.b16 %v439
        %v1911 = vunpack.c.h.b16 %v439
        %v1912 = vunpack.c.l.b16 %v440
        %v1913 = vunpack.c.h.b16 %v440
        %v1914 = vunpack.c.l.b16 %v441
        %v1915 = vunpack.c.h.b16 %v441
        %v1916 = vunpack.c.l.b16 %v442
        %v1917 = vunpack.c.h.b16 %v442
        %v1918 = vunpack.c.l.b16 %v443
        %v1919 = vunpack.c.h.b16 %v443
        %v1920 = vunpack.c.l.b16 %v444
        %v1921 = vunpack.c.h.b16 %v444
        %v1922 = vunpack.c.l.b16 %v445
        %v1923 = vunpack.c.h.b16 %v445
        %v1924 = vunpack.c.l.b16 %v446
        %v1925 = vunpack.c.h.b16 %v446
        %v1926 = vunpack.c.l.b16 %v447
        %v1927 = vunpack.c.h.b16 %v447
        %v1928 = vunpack.c.l.b16 %v448
        %v1929 = vunpack.c.h.b16 %v448
        %v1930 = vunpack.c.l.b16 %v449
        %v1931 = vunpack.c.h.b16 %v449
        %v1932 = vunpack.c.l.b16 %v450
        %v1933 = vunpack.c.h.b16 %v450
        %v1934 = vunpack.c.l.b16 %v451
        %v1935 = vunpack.c.h.b16 %v451
        %v1936 = vunpack.c.l.b16 %v452
        %v1937 = vunpack.c.h.b16 %v452
        %v1938 = vunpack.c.l.b16 %v453
        %v1939 = vunpack.c.h.b16 %v453
        %v1940 = vunpack.c.l.b16 %v454
        %v1941 = vunpack.c.h.b16 %v454
        %v1942 = vunpack.c.l.b16 %v455
        %v1943 = vunpack.c.h.b16 %v455
        %v1944 = vunpack.c.l.b16 %v456
        %v1945 = vunpack.c.h.b16 %v456
        %v1946 = vunpack.c.l.b16 %v457
        %v1947 = vunpack.c.h.b16 %v457
        %v1948 = vunpack.c.l.b16 %v458
        %v1949 = vunpack.c.h.b16 %v458
        %v1950 = vunpack.c.l.b16 %v459
        %v1951 = vunpack.c.h.b16 %v459
        %v1952 = vunpack.c.l.b16 %v460
        %v1953 = vunpack.c.h.b16 %v460
        %v1954 = vunpack.c.l.b16 %v461
        %v1955 = vunpack.c.h.b16 %v461
        %v1956 = vunpack.c.l.b16 %v462
        %v1957 = vunpack.c.h.b16 %v462
        %v1958 = vunpack.c.l.b16 %v463
        %v1959 = vunpack.c.h.b16 %v463
        %v1960 = vunpack.c.l.b16 %v464
        %v1961 = vunpack.c.h.b16 %v464
        %v1962 = vunpack.c.l.b16 %v465
        %v1963 = vunpack.c.h.b16 %v465
        %v1964 = vunpack.c.l.b16 %v466
        %v1965 = vunpack.c.h.b16 %v466
        %v1966 = vunpack.c.l.b16 %v467
        %v1967 = vunpack.c.h.b16 %v467
        %v1968 = vunpack.c.l.b16 %v468
        %v1969 = vunpack.c.h.b16 %v468
        %v1970 = vunpack.c.l.b16 %v469
        %v1971 = vunpack.c.h.b16 %v469
        %v1972 = vunpack.c.l.b16 %v470
        %v1973 = vunpack.c.h.b16 %v470
        %v1974 = vunpack.c.l.b16 %v471
        %v1975 = vunpack.c.h.b16 %v471
        %v1976 = vunpack.c.l.b16 %v472
        %v1977 = vunpack.c.h.b16 %v472
        %v1978 = vunpack.c.l.b16 %v473
        %v1979 = vunpack.c.h.b16 %v473
        %v1980 = vunpack.c.l.b16 %v474
        %v1981 = vunpack.c.h.b16 %v474
        %v1982 = vunpack.c.l.b16 %v475
        %v1983 = vunpack.c.h.b16 %v475
        %v1984 = vunpack.c.l.b16 %v476
        %v1985 = vunpack.c.h.b16 %v476
        %v1986 = vunpack.c.l.b16 %v477
        %v1987 = vunpack.c.h.b16 %v477
        %v1988 = vunpack.c.l.b16 %v478
        %v1989 = vunpack.c.h.b16 %v478
        %v1990 = vunpack.c.l.b16 %v479
        %v1991 = vunpack.c.h.b16 %v479
        %v1992 = vunpack.c.l.b16 %v480
        %v1993 = vunpack.c.h.b16 %v480
        %v1994 = vunpack.c.l.b16 %v481
        %v1995 = vunpack.c.h.b16 %v481
        %v1996 = vunpack.c.l.b16 %v482
        %v1997 = vunpack.c.h.b16 %v482
        %v1998 = vunpack.c.l.b16 %v483
        %v1999 = vunpack.c.h.b16 %v483
        %v2000 = vunpack.c.l.b16 %v484
        %v2001 = vunpack.c.h.b16 %v484
        %v2002 = vunpack.c.l.b16 %v485
        %v2003 = vunpack.c.h.b16 %v485
        %v2004 = vunpack.c.l.b16 %v486
        %v2005 = vunpack.c.h.b16 %v486
        %v2006 = vunpack.c.l.b16 %v487
        %v2007 = vunpack.c.h.b16 %v487
        %v2008 = vunpack.c.l.b16 %v488
        %v2009 = vunpack.c.h.b16 %v488
        %v2010 = vunpack.c.l.b16 %v489
        %v2011 = vunpack.c.h.b16 %v489
        %v2012 = vunpack.c.l.b16 %v490
        %v2013 = vunpack.c.h.b16 %v490
        %v2014 = vunpack.c.l.b16 %v491
        %v2015 = vunpack.c.h.b16 %v491
        %v2016 = vunpack.c.l.b16 %v492
        %v2017 = vunpack.c.h.b16 %v492
        %v2018 = vunpack.c.l.b16 %v493
        %v2019 = vunpack.c.h.b16 %v493
        %v2020 = vunpack.c.l.b16 %v494
        %v2021 = vunpack.c.h.b16 %v494
        %v2022 = vunpack.c.l.b16 %v495
        %v2023 = vunpack.c.h.b16 %v495
        %v2024 = vunpack.c.l.b16 %v496
        %v2025 = vunpack.c.h.b16 %v496
        %v2026 = vunpack.c.l.b16 %v497
        %v2027 = vunpack.c.h.b16 %v497
        %v2028 = vunpack.c.l.b16 %v498
        %v2029 = vunpack.c.h.b16 %v498
        %v2030 = vunpack.c.l.b16 %v499
        %v2031 = vunpack.c.h.b16 %v499
        %v2032 = vunpack.c.l.b16 %v500
        %v2033 = vunpack.c.h.b16 %v500
        %v2034 = vunpack.c.l.b16 %v501
        %v2035 = vunpack.c.h.b16 %v501
        %v2036 = vunpack.c.l.b16 %v502
        %v2037 = vunpack.c.h.b16 %v502
        %v2038 = vunpack.c.l.b16 %v503
        %v2039 = vunpack.c.h.b16 %v503
        %v2040 = vunpack.c.l.b16 %v504
        %v2041 = vunpack.c.h.b16 %v504
        %v2042 = vunpack.c.l.b16 %v505
        %v2043 = vunpack.c.h.b16 %v505
        %v2044 = vunpack.c.l.b16 %v506
        %v2045 = vunpack.c.h.b16 %v506
        %v2046 = vunpack.c.l.b16 %v507
        %v2047 = vunpack.c.h.b16 %v507
        %v2048 = vunpack.c.l.b16 %v508
        %v2049 = vunpack.c.h.b16 %v508
        %v2050 = vunpack.c.l.b16 %v509
        %v2051 = vunpack.c.h.b16 %v509
        %v2052 = vunpack.c.l.b16 %v510
        %v2053 = vunpack.c.h.b16 %v510
        %v2054 = vunpack.c.l.b16 %v511
        %v2055 = vunpack.c.h.b16 %v511
        %v2056 = vunpack.c.l.b16 %v512
        %v2057 = vunpack.c.h.b16 %v512
        %v2058 = vunpack.c.l.b16 %v513
        %v2059 = vunpack.c.h.b16 %v513
        %v2060 = vunpack.c.l.b16 %v514
        %v2061 = vunpack.c.h.b16 %v514
        %v2062 = vunpack.c.l.b16 %v515
        %v2063 = vunpack.c.h.b16 %v515
        %v2064 = vunpack.c.l.b16 %v516
        %v2065 = vunpack.c.h.b16 %v516
        %v2066 = vunpack.c.l.b16 %v517
        %v2067 = vunpack.c.h.b16 %v517
        %v2068 = vunpack.c.l.b16 %v518
        %v2069 = vunpack.c.h.b16 %v518
        %v2070 = vunpack.c.l.b16 %v519
        %v2071 = vunpack.c.h.b16 %v519
        %v2072 = vunpack.c.l.b16 %v520
        %v2073 = vunpack.c.h.b16 %v520
        %v2074 = vunpack.c.l.b16 %v521
        %v2075 = vunpack.c.h.b16 %v521
        %v2076 = vunpack.c.l.b16 %v522
        %v2077 = vunpack.c.h.b16 %v522
        %v2078 = vunpack.c.l.b16 %v523
        %v2079 = vunpack.c.h.b16 %v523
        %v2080 = vunpack.c.l.b16 %v524
        %v2081 = vunpack.c.h.b16 %v524
        %v2082 = vunpack.c.l.b16 %v525
        %v2083 = vunpack.c.h.b16 %v525
        %v2084 = vunpack.c.l.b16 %v526
        %v2085 = vunpack.c.h.b16 %v526
        %v2086 = vunpack.c.l.b16 %v527
        %v2087 = vunpack.c.h.b16 %v527
        %v2088 = vunpack.c.l.b16 %v528
        %v2089 = vunpack.c.h.b16 %v528
        %v2090 = vunpack.c.l.b16 %v529
        %v2091 = vunpack.c.h.b16 %v529
        %v2092 = vunpack.c.l.b16 %v530
        %v2093 = vunpack.c.h.b16 %v530
        %v2094 = vunpack.c.l.b16 %v531
        %v2095 = vunpack.c.h.b16 %v531
        %v2096 = vunpack.c.l.b16 %v532
        %v2097 = vunpack.c.h.b16 %v532
        %v2098 = vunpack.c.l.b16 %v533
        %v2099 = vunpack.c.h.b16 %v533
        %v2100 = vunpack.c.l.b16 %v534
        %v2101 = vunpack.c.h.b16 %v534
        %v2102 = vunpack.c.l.b16 %v535
        %v2103 = vunpack.c.h.b16 %v535
        %v2104 = vunpack.c.l.b16 %v536
        %v2105 = vunpack.c.h.b16 %v536
        %v2106 = vunpack.c.l.b16 %v537
        %v2107 = vunpack.c.h.b16 %v537
        %v2108 = vunpack.c.l.b16 %v538
        %v2109 = vunpack.c.h.b16 %v538
        %v2110 = vunpack.c.l.b16 %v539
        %v2111 = vunpack.c.h.b16 %v539
        %v2112 = vunpack.c.l.b16 %v540
        %v2113 = vunpack.c.h.b16 %v540
        %v2114 = vunpack.c.l.b16 %v541
        %v2115 = vunpack.c.h.b16 %v541
        %v2116 = vunpack.c.l.b16 %v542
        %v2117 = vunpack.c.h.b16 %v542
        %v2118 = vunpack.c.l.b16 %v543
        %v2119 = vunpack.c.h.b16 %v543
        %v2120 = vunpack.c.l.b16 %v544
        %v2121 = vunpack.c.h.b16 %v544
        %v2122 = vunpack.c.l.b16 %v545
        %v2123 = vunpack.c.h.b16 %v545
        %v2124 = vunpack.c.l.b16 %v546
        %v2125 = vunpack.c.h.b16 %v546
        %v2126 = vunpack.c.l.b16 %v547
        %v2127 = vunpack.c.h.b16 %v547
        %v2128 = vunpack.c.l.b16 %v548
        %v2129 = vunpack.c.h.b16 %v548
        %v2130 = vunpack.c.l.b16 %v549
        %v2131 = vunpack.c.h.b16 %v549
        %v2132 = vunpack.c.l.b16 %v550
        %v2133 = vunpack.c.h.b16 %v550
        %v2134 = vunpack.c.l.b16 %v551
        %v2135 = vunpack.c.h.b16 %v551
        %v2136 = vunpack.c.l.b16 %v552
        %v2137 = vunpack.c.h.b16 %v552
        %v2138 = vunpack.c.l.b16 %v553
        %v2139 = vunpack.c.h.b16 %v553
        %v2140 = vunpack.c.l.b16 %v554
        %v2141 = vunpack.c.h.b16 %v554
        %v2142 = vunpack.c.l.b16 %v555
        %v2143 = vunpack.c.h.b16 %v555
        %v2144 = vunpack.c.l.b16 %v556
        %v2145 = vunpack.c.h.b16 %v556
        %v2146 = vunpack.c.l.b16 %v557
        %v2147 = vunpack.c.h.b16 %v557
        %v2148 = vunpack.c.l.b16 %v558
        %v2149 = vunpack.c.h.b16 %v558
        %v2150 = vunpack.c.l.b16 %v559
        %v2151 = vunpack.c.h.b16 %v559
        %v2152 = vunpack.c.l.b16 %v560
        %v2153 = vunpack.c.h.b16 %v560
        %v2154 = vunpack.c.l.b16 %v561
        %v2155 = vunpack.c.h.b16 %v561
        %v2156 = vunpack.c.l.b16 %v562
        %v2157 = vunpack.c.h.b16 %v562
        %v2158 = vunpack.c.l.b16 %v563
        %v2159 = vunpack.c.h.b16 %v563
        %v2160 = vunpack.c.l.b16 %v564
        %v2161 = vunpack.c.h.b16 %v564
        %v2162 = vunpack.c.l.b16 %v565
        %v2163 = vunpack.c.h.b16 %v565
        %v2164 = vunpack.c.l.b16 %v566
        %v2165 = vunpack.c.h.b16 %v566
        %v2166 = vunpack.c.l.b16 %v567
        %v2167 = vunpack.c.h.b16 %v567
        %v2168 = vunpack.c.l.b16 %v568
        %v2169 = vunpack.c.h.b16 %v568
        %v2170 = vunpack.c.l.b16 %v569
        %v2171 = vunpack.c.h.b16 %v569
        %v2172 = vunpack.c.l.b16 %v570
        %v2173 = vunpack.c.h.b16 %v570
        %v2174 = vunpack.c.l.b16 %v571
        %v2175 = vunpack.c.h.b16 %v571
        %v2176 = vunpack.c.l.b16 %v572
        %v2177 = vunpack.c.h.b16 %v572
        %v2178 = vunpack.c.l.b16 %v573
        %v2179 = vunpack.c.h.b16 %v573
        %v2180 = vunpack.c.l.b16 %v574
        %v2181 = vunpack.c.h.b16 %v574
        %v2182 = vunpack.c.l.b16 %v575
        %v2183 = vunpack.c.h.b16 %v575
        %v2184 = vunpack.c.l.b16 %v576
        %v2185 = vunpack.c.h.b16 %v576
        %v2186 = vunpack.c.l.b16 %v577
        %v2187 = vunpack.c.h.b16 %v577
        %v2188 = vunpack.c.l.b16 %v578
        %v2189 = vunpack.c.h.b16 %v578
        %v2190 = vunpack.c.l.b16 %v579
        %v2191 = vunpack.c.h.b16 %v579
        %v2192 = vunpack.c.l.b16 %v580
        %v2193 = vunpack.c.h.b16 %v580
        %v2194 = vunpack.c.l.b16 %v581
        %v2195 = vunpack.c.h.b16 %v581
        %v2196 = vunpack.c.l.b16 %v582
        %v2197 = vunpack.c.h.b16 %v582
        %v2198 = vunpack.c.l.b16 %v583
        %v2199 = vunpack.c.h.b16 %v583
        %v2200 = vunpack.c.l.b16 %v584
        %v2201 = vunpack.c.h.b16 %v584
        %v2202 = vunpack.c.l.b16 %v585
        %v2203 = vunpack.c.h.b16 %v585
        %v2204 = vunpack.c.l.b16 %v586
        %v2205 = vunpack.c.h.b16 %v586
        %v2206 = vunpack.c.l.b16 %v587
        %v2207 = vunpack.c.h.b16 %v587
        %v2208 = vunpack.c.l.b16 %v588
        %v2209 = vunpack.c.h.b16 %v588
        %v2210 = vunpack.c.l.b16 %v589
        %v2211 = vunpack.c.h.b16 %v589
        %v2212 = vunpack.c.l.b16 %v590
        %v2213 = vunpack.c.h.b16 %v590
        %v2214 = vunpack.c.l.b16 %v591
        %v2215 = vunpack.c.h.b16 %v591
        %v2216 = vunpack.c.l.b16 %v592
        %v2217 = vunpack.c.h.b16 %v592
        %v2218 = vunpack.c.l.b16 %v593
        %v2219 = vunpack.c.h.b16 %v593
        %v2220 = vunpack.c.l.b16 %v594
        %v2221 = vunpack.c.h.b16 %v594
        %v2222 = vunpack.c.l.b16 %v595
        %v2223 = vunpack.c.h.b16 %v595
        %v2224 = vunpack.c.l.b16 %v596
        %v2225 = vunpack.c.h.b16 %v596
        %v2226 = vunpack.c.l.b16 %v597
        %v2227 = vunpack.c.h.b16 %v597
        %v2228 = vunpack.c.l.b16 %v598
        %v2229 = vunpack.c.h.b16 %v598
        %v2230 = vunpack.c.l.b16 %v599
        %v2231 = vunpack.c.h.b16 %v599
        %v2232 = vunpack.c.l.b16 %v600
        %v2233 = vunpack.c.h.b16 %v600
        %v2234 = vunpack.c.l.b16 %v601
        %v2235 = vunpack.c.h.b16 %v601
        %v2236 = vunpack.c.l.b16 %v602
        %v2237 = vunpack.c.h.b16 %v602
        %v2238 = vunpack.c.l.b16 %v603
        %v2239 = vunpack.c.h.b16 %v603
        %v2240 = vunpack.c.l.b16 %v604
        %v2241 = vunpack.c.h.b16 %v604
        %v2242 = vunpack.c.l.b16 %v605
        %v2243 = vunpack.c.h.b16 %v605
        %v2244 = vunpack.c.l.b16 %v606
        %v2245 = vunpack.c.h.b16 %v606
        %v2246 = vunpack.c.l.b16 %v607
        %v2247 = vunpack.c.h.b16 %v607
        %v2248 = vunpack.c.l.b16 %v608
        %v2249 = vunpack.c.h.b16 %v608
        %v2250 = vunpack.c.l.b16 %v609
        %v2251 = vunpack.c.h.b16 %v609
        %v2252 = vunpack.c.l.b16 %v610
        %v2253 = vunpack.c.h.b16 %v610
        %v2254 = vunpack.c.l.b16 %v611
        %v2255 = vunpack.c.h.b16 %v611
        %v2256 = vunpack.c.l.b16 %v612
        %v2257 = vunpack.c.h.b16 %v612
        %v2258 = vunpack.c.l.b16 %v613
        %v2259 = vunpack.c.h.b16 %v613
        %v2260 = vunpack.c.l.b16 %v614
        %v2261 = vunpack.c.h.b16 %v614
        %v2262 = vunpack.c.l.b16 %v615
        %v2263 = vunpack.c.h.b16 %v615
        %v2264 = vunpack.c.l.b16 %v616
        %v2265 = vunpack.c.h.b16 %v616
        %v2266 = vunpack.c.l.b16 %v617
        %v2267 = vunpack.c.h.b16 %v617
        %v2268 = vunpack.c.l.b16 %v618
        %v2269 = vunpack.c.h.b16 %v618
        %v2270 = vunpack.c.l.b16 %v619
        %v2271 = vunpack.c.h.b16 %v619
        %v2272 = vunpack.c.l.b16 %v620
        %v2273 = vunpack.c.h.b16 %v620
        %v2274 = vunpack.c.l.b16 %v621
        %v2275 = vunpack.c.h.b16 %v621
        %v2276 = vunpack.c.l.b16 %v622
        %v2277 = vunpack.c.h.b16 %v622
        %v2278 = vunpack.c.l.b16 %v623
        %v2279 = vunpack.c.h.b16 %v623
        %v2280 = vunpack.c.l.b16 %v624
        %v2281 = vunpack.c.h.b16 %v624
        %v2282 = vunpack.c.l.b16 %v625
        %v2283 = vunpack.c.h.b16 %v625
        %v2284 = vunpack.c.l.b16 %v626
        %v2285 = vunpack.c.h.b16 %v626
        %v2286 = vunpack.c.l.b16 %v627
        %v2287 = vunpack.c.h.b16 %v627
        %v2288 = vunpack.c.l.b16 %v628
        %v2289 = vunpack.c.h.b16 %v628
        %v2290 = vunpack.c.l.b16 %v629
        %v2291 = vunpack.c.h.b16 %v629
        %v2292 = vunpack.c.l.b16 %v630
        %v2293 = vunpack.c.h.b16 %v630
        %v2294 = vunpack.c.l.b16 %v631
        %v2295 = vunpack.c.h.b16 %v631
        %v2296 = vunpack.c.l.b16 %v632
        %v2297 = vunpack.c.h.b16 %v632
        %v2298 = vunpack.c.l.b16 %v633
        %v2299 = vunpack.c.h.b16 %v633
        %v2300 = vunpack.c.l.b16 %v634
        %v2301 = vunpack.c.h.b16 %v634
        %v2302 = vunpack.c.l.b16 %v635
        %v2303 = vunpack.c.h.b16 %v635
        %v2304 = vunpack.c.l.b16 %v636
        %v2305 = vunpack.c.h.b16 %v636
        %v2306 = vunpack.c.l.b16 %v637
        %v2307 = vunpack.c.h.b16 %v637
        %v2308 = vunpack.c.l.b16 %v638
        %v2309 = vunpack.c.h.b16 %v638
        %v2310 = vunpack.c.l.b16 %v639
        %v2311 = vunpack.c.h.b16 %v639
        %v2312 = vunpack.c.l.b16 %v640
        %v2313 = vunpack.c.h.b16 %v640
        %v2314 = vunpack.c.l.b16 %v641
        %v2315 = vunpack.c.h.b16 %v641
        %v2316 = vunpack.c.l.b16 %v642
        %v2317 = vunpack.c.h.b16 %v642
        %v2318 = vunpack.c.l.b16 %v643
        %v2319 = vunpack.c.h.b16 %v643
        %v2320 = vunpack.c.l.b16 %v644
        %v2321 = vunpack.c.h.b16 %v644
        %v2322 = vunpack.c.l.b16 %v645
        %v2323 = vunpack.c.h.b16 %v645
        %v2324 = vunpack.c.l.b16 %v646
        %v2325 = vunpack.c.h.b16 %v646
        %v2326 = vunpack.c.l.b16 %v647
        %v2327 = vunpack.c.h.b16 %v647
        %v2328 = vunpack.c.l.b16 %v648
        %v2329 = vunpack.c.h.b16 %v648
        %v2330 = vunpack.c.l.b16 %v649
        %v2331 = vunpack.c.h.b16 %v649
        %v2332 = vunpack.c.l.b16 %v650
        %v2333 = vunpack.c.h.b16 %v650
        %v2334 = vunpack.c.l.b16 %v651
        %v2335 = vunpack.c.h.b16 %v651
        %v2336 = vunpack.c.l.b16 %v652
        %v2337 = vunpack.c.h.b16 %v652
        %v2338 = vunpack.c.l.b16 %v653
        %v2339 = vunpack.c.h.b16 %v653
        %v2340 = vunpack.c.l.b16 %v654
        %v2341 = vunpack.c.h.b16 %v654
        %v2342 = vunpack.c.l.b16 %v655
        %v2343 = vunpack.c.h.b16 %v655
        %v2344 = vunpack.c.l.b16 %v656
        %v2345 = vunpack.c.h.b16 %v656
        %v2346 = vunpack.c.l.b16 %v657
        %v2347 = vunpack.c.h.b16 %v657
        %v2348 = vunpack.c.l.b16 %v658
        %v2349 = vunpack.c.h.b16 %v658
        %v2350 = vunpack.c.l.b16 %v659
        %v2351 = vunpack.c.h.b16 %v659
        %v2352 = vunpack.c.l.b16 %v660
        %v2353 = vunpack.c.h.b16 %v660
        %v2354 = vunpack.c.l.b16 %v661
        %v2355 = vunpack.c.h.b16 %v661
        %v2356 = vunpack.c.l.b16 %v662
        %v2357 = vunpack.c.h.b16 %v662
        %v2358 = vunpack.c.l.b16 %v663
        %v2359 = vunpack.c.h.b16 %v663
        %v2360 = vunpack.c.l.b16 %v664
        %v2361 = vunpack.c.h.b16 %v664
        %v2362 = vunpack.c.l.b16 %v665
        %v2363 = vunpack.c.h.b16 %v665
        %v2364 = vunpack.c.l.b16 %v666
        %v2365 = vunpack.c.h.b16 %v666
        %v2366 = vunpack.c.l.b16 %v667
        %v2367 = vunpack.c.h.b16 %v667
        %v2368 = vunpack.c.l.b16 %v668
        %v2369 = vunpack.c.h.b16 %v668
        %v2370 = vunpack.c.l.b16 %v669
        %v2371 = vunpack.c.h.b16 %v669
        %v2372 = vunpack.c.l.b16 %v670
        %v2373 = vunpack.c.h.b16 %v670
        %v2374 = vunpack.c.l.b16 %v671
        %v2375 = vunpack.c.h.b16 %v671
        %v2376 = vunpack.c.l.b16 %v672
        %v2377 = vunpack.c.h.b16 %v672
        %v2378 = vunpack.c.l.b16 %v673
        %v2379 = vunpack.c.h.b16 %v673
        %v2380 = vunpack.c.l.b16 %v674
        %v2381 = vunpack.c.h.b16 %v674
        %v2382 = vunpack.c.l.b16 %v675
        %v2383 = vunpack.c.h.b16 %v675
        %v2384 = vunpack.c.l.b16 %v676
        %v2385 = vunpack.c.h.b16 %v676
        %v2386 = vunpack.c.l.b16 %v677
        %v2387 = vunpack.c.h.b16 %v677
        %v2388 = vunpack.c.l.b16 %v678
        %v2389 = vunpack.c.h.b16 %v678
        %v2390 = vunpack.c.l.b16 %v679
        %v2391 = vunpack.c.h.b16 %v679
        %v2392 = vunpack.c.l.b16 %v680
        %v2393 = vunpack.c.h.b16 %v680
        %v2394 = vunpack.c.l.b16 %v681
        %v2395 = vunpack.c.h.b16 %v681
        %v2396 = vunpack.c.l.b16 %v682
        %v2397 = vunpack.c.h.b16 %v682
        %v2398 = vunpack.c.l.b16 %v683
        %v2399 = vunpack.c.h.b16 %v683
        %v2400 = vunpack.c.l.b16 %v684
        %v2401 = vunpack.c.h.b16 %v684
        %v2402 = vunpack.c.l.b16 %v685
        %v2403 = vunpack.c.h.b16 %v685
        %v2404 = vunpack.c.l.b16 %v686
        %v2405 = vunpack.c.h.b16 %v686
        %v2406 = vunpack.c.l.b16 %v687
        %v2407 = vunpack.c.h.b16 %v687
        %v2408 = vunpack.c.l.b16 %v688
        %v2409 = vunpack.c.h.b16 %v688
        %v2410 = vunpack.c.l.b16 %v689
        %v2411 = vunpack.c.h.b16 %v689
        %v2412 = vunpack.c.l.b16 %v690
        %v2413 = vunpack.c.h.b16 %v690
        %v2414 = vunpack.c.l.b16 %v691
        %v2415 = vunpack.c.h.b16 %v691
        %v2416 = vunpack.c.l.b16 %v692
        %v2417 = vunpack.c.h.b16 %v692
        %v2418 = vunpack.c.l.b16 %v693
        %v2419 = vunpack.c.h.b16 %v693
        %v2420 = vunpack.c.l.b16 %v694
        %v2421 = vunpack.c.h.b16 %v694
        %v2422 = vunpack.c.l.b16 %v695
        %v2423 = vunpack.c.h.b16 %v695
        %v2424 = vunpack.c.l.b16 %v696
        %v2425 = vunpack.c.h.b16 %v696
        %v2426 = vunpack.c.l.b16 %v697
        %v2427 = vunpack.c.h.b16 %v697
        %v2428 = vunpack.c.l.b16 %v698
        %v2429 = vunpack.c.h.b16 %v698
        %v2430 = vunpack.c.l.b16 %v699
        %v2431 = vunpack.c.h.b16 %v699
        %v2432 = vunpack.c.l.b16 %v700
        %v2433 = vunpack.c.h.b16 %v700
        %v2434 = vunpack.c.l.b16 %v701
        %v2435 = vunpack.c.h.b16 %v701
        %v2436 = vunpack.c.l.b16 %v702
        %v2437 = vunpack.c.h.b16 %v702
        %v2438 = vunpack.c.l.b16 %v703
        %v2439 = vunpack.c.h.b16 %v703
        %v2440 = vunpack.c.l.b16 %v704
        %v2441 = vunpack.c.h.b16 %v704
        %v2442 = vunpack.c.l.b16 %v705
        %v2443 = vunpack.c.h.b16 %v705
        %v2444 = vunpack.c.l.b16 %v706
        %v2445 = vunpack.c.h.b16 %v706
        %v2446 = vunpack.c.l.b16 %v707
        %v2447 = vunpack.c.h.b16 %v707
        %v2448 = vunpack.c.l.b16 %v708
        %v2449 = vunpack.c.h.b16 %v708
        %v2450 = vunpack.c.l.b16 %v709
        %v2451 = vunpack.c.h.b16 %v709
        %v2452 = vunpack.c.l.b16 %v710
        %v2453 = vunpack.c.h.b16 %v710
        %v2454 = vunpack.c.l.b16 %v711
        %v2455 = vunpack.c.h.b16 %v711
        %v2456 = vunpack.c.l.b16 %v712
        %v2457 = vunpack.c.h.b16 %v712
        %v2458 = vunpack.c.l.b16 %v713
        %v2459 = vunpack.c.h.b16 %v713
        %v2460 = vunpack.c.l.b16 %v714
        %v2461 = vunpack.c.h.b16 %v714
        %v2462 = vunpack.c.l.b16 %v715
        %v2463 = vunpack.c.h.b16 %v715
        %v2464 = vunpack.c.l.b16 %v716
        %v2465 = vunpack.c.h.b16 %v716
        %v2466 = vunpack.c.l.b16 %v717
        %v2467 = vunpack.c.h.b16 %v717
        %v2468 = vunpack.c.l.b16 %v718
        %v2469 = vunpack.c.h.b16 %v718
        %v2470 = vunpack.c.l.b16 %v719
        %v2471 = vunpack.c.h.b16 %v719
        %v2472 = vunpack.c.l.b16 %v720
        %v2473 = vunpack.c.h.b16 %v720
        %v2474 = vunpack.c.l.b16 %v721
        %v2475 = vunpack.c.h.b16 %v721
        %v2476 = vunpack.c.l.b16 %v722
        %v2477 = vunpack.c.h.b16 %v722
        %v2478 = vunpack.c.l.b16 %v723
        %v2479 = vunpack.c.h.b16 %v723
        %v2480 = vunpack.c.l.b16 %v724
        %v2481 = vunpack.c.h.b16 %v724
        %v2482 = vunpack.c.l.b16 %v725
        %v2483 = vunpack.c.h.b16 %v725
        %v2484 = vunpack.c.l.b16 %v726
        %v2485 = vunpack.c.h.b16 %v726
        %v2486 = vunpack.c.l.b16 %v727
        %v2487 = vunpack.c.h.b16 %v727
        %v2488 = vunpack.c.l.b16 %v728
        %v2489 = vunpack.c.h.b16 %v728
        %v2490 = vunpack.c.l.b16 %v729
        %v2491 = vunpack.c.h.b16 %v729
        %v2492 = vunpack.c.l.b16 %v730
        %v2493 = vunpack.c.h.b16 %v730
        %v2494 = vunpack.c.l.b16 %v731
        %v2495 = vunpack.c.h.b16 %v731
        %v2496 = vunpack.c.l.b16 %v732
        %v2497 = vunpack.c.h.b16 %v732
        %v2498 = vunpack.c.l.b16 %v733
        %v2499 = vunpack.c.h.b16 %v733
        %v2500 = vunpack.c.l.b16 %v734
        %v2501 = vunpack.c.h.b16 %v734
        %v2502 = vunpack.c.l.b16 %v735
        %v2503 = vunpack.c.h.b16 %v735
        %v2504 = vunpack.c.l.b16 %v736
        %v2505 = vunpack.c.h.b16 %v736
        %v2506 = vunpack.c.l.b16 %v737
        %v2507 = vunpack.c.h.b16 %v737
        %v2508 = vunpack.c.l.b16 %v738
        %v2509 = vunpack.c.h.b16 %v738
        %v2510 = vunpack.c.l.b16 %v739
        %v2511 = vunpack.c.h.b16 %v739
        %v2512 = vunpack.c.l.b16 %v740
        %v2513 = vunpack.c.h.b16 %v740
        %v2514 = vunpack.c.l.b16 %v741
        %v2515 = vunpack.c.h.b16 %v741
        %v2516 = vunpack.c.l.b16 %v742
        %v2517 = vunpack.c.h.b16 %v742
        %v2518 = vunpack.c.l.b16 %v743
        %v2519 = vunpack.c.h.b16 %v743
        %v2520 = vunpack.c.l.b16 %v744
        %v2521 = vunpack.c.h.b16 %v744
        %v2522 = vunpack.c.l.b16 %v745
        %v2523 = vunpack.c.h.b16 %v745
        %v2524 = vunpack.c.l.b16 %v746
        %v2525 = vunpack.c.h.b16 %v746
        %v2526 = vunpack.c.l.b16 %v747
        %v2527 = vunpack.c.h.b16 %v747
        %v2528 = vunpack.c.l.b16 %v748
        %v2529 = vunpack.c.h.b16 %v748
        %v2530 = vunpack.c.l.b16 %v749
        %v2531 = vunpack.c.h.b16 %v749
        %v2532 = vunpack.c.l.b16 %v750
        %v2533 = vunpack.c.h.b16 %v750
        %v2534 = vunpack.c.l.b16 %v751
        %v2535 = vunpack.c.h.b16 %v751
        %v2536 = vunpack.c.l.b16 %v752
        %v2537 = vunpack.c.h.b16 %v752
        %v2538 = vunpack.c.l.b16 %v753
        %v2539 = vunpack.c.h.b16 %v753
        %v2540 = vunpack.c.l.b16 %v754
        %v2541 = vunpack.c.h.b16 %v754
        %v2542 = vunpack.c.l.b16 %v755
        %v2543 = vunpack.c.h.b16 %v755
        %v2544 = vunpack.c.l.b16 %v756
        %v2545 = vunpack.c.h.b16 %v756
        %v2546 = vunpack.c.l.b16 %v757
        %v2547 = vunpack.c.h.b16 %v757
        %v2548 = vunpack.c.l.b16 %v758
        %v2549 = vunpack.c.h.b16 %v758
        %v2550 = vunpack.c.l.b16 %v759
        %v2551 = vunpack.c.h.b16 %v759
        %v2552 = vunpack.c.l.b16 %v760
        %v2553 = vunpack.c.h.b16 %v760
        %v2554 = vunpack.c.l.b16 %v761
        %v2555 = vunpack.c.h.b16 %v761
        %v2556 = vunpack.c.l.b16 %v762
        %v2557 = vunpack.c.h.b16 %v762
        %v2558 = vunpack.c.l.b16 %v763
        %v2559 = vunpack.c.h.b16 %v763
        %v2560 = vunpack.c.l.b16 %v764
        %v2561 = vunpack.c.h.b16 %v764
        %v2562 = vunpack.c.l.b16 %v765
        %v2563 = vunpack.c.h.b16 %v765
        %v2564 = vunpack.c.l.b16 %v766
        %v2565 = vunpack.c.h.b16 %v766
        %v2566 = vunpack.c.l.b16 %v767
        %v2567 = vunpack.c.h.b16 %v767
        %v2568 = vunpack.c.l.b16 %v768
        %v2569 = vunpack.c.h.b16 %v768
        %v2570 = vunpack.c.l.b16 %v769
        %v2571 = vunpack.c.h.b16 %v769
        %v2572 = vunpack.c.l.b16 %v770
        %v2573 = vunpack.c.h.b16 %v770
        %v2574 = vunpack.c.l.b16 %v771
        %v2575 = vunpack.c.h.b16 %v771
        %v2576 = vunpack.c.l.b16 %v772
        %v2577 = vunpack.c.h.b16 %v772
        %v2578 = vunpack.c.l.b16 %v773
        %v2579 = vunpack.c.h.b16 %v773
        %v2580 = vunpack.c.l.b16 %v774
        %v2581 = vunpack.c.h.b16 %v774
        %v2582 = vunpack.c.l.b16 %v775
        %v2583 = vunpack.c.h.b16 %v775
        %v2584 = vunpack.c.l.b16 %v776
        %v2585 = vunpack.c.h.b16 %v776
        %v2586 = vunpack.c.l.b16 %v777
        %v2587 = vunpack.c.h.b16 %v777
        %v2588 = vunpack.c.l.b16 %v778
        %v2589 = vunpack.c.h.b16 %v778
        %v2590 = vunpack.c.l.b16 %v779
        %v2591 = vunpack.c.h.b16 %v779
        %v2592 = vunpack.c.l.b16 %v780
        %v2593 = vunpack.c.h.b16 %v780
        %v2594 = vunpack.c.l.b16 %v781
        %v2595 = vunpack.c.h.b16 %v781
        %v2596 = vunpack.c.l.b16 %v782
        %v2597 = vunpack.c.h.b16 %v782
        %v2598 = vunpack.c.l.b16 %v783
        %v2599 = vunpack.c.h.b16 %v783
        %v2600 = vunpack.c.l.b16 %v784
        %v2601 = vunpack.c.h.b16 %v784
        %v2602 = vunpack.c.l.b16 %v785
        %v2603 = vunpack.c.h.b16 %v785
        %v2604 = vunpack.c.l.b16 %v786
        %v2605 = vunpack.c.h.b16 %v786
        %v2606 = vunpack.c.l.b16 %v787
        %v2607 = vunpack.c.h.b16 %v787
        %v2608 = vunpack.c.l.b16 %v788
        %v2609 = vunpack.c.h.b16 %v788
        %v2610 = vunpack.c.l.b16 %v789
        %v2611 = vunpack.c.h.b16 %v789
        %v2612 = vunpack.c.l.b16 %v790
        %v2613 = vunpack.c.h.b16 %v790
        %v2614 = vunpack.c.l.b16 %v791
        %v2615 = vunpack.c.h.b16 %v791
        %v2616 = vunpack.c.l.b16 %v792
        %v2617 = vunpack.c.h.b16 %v792
        %v2618 = vunpack.c.l.b16 %v793
        %v2619 = vunpack.c.h.b16 %v793
        %v2620 = vunpack.c.l.b16 %v794
        %v2621 = vunpack.c.h.b16 %v794
        %v2622 = vunpack.c.l.b16 %v795
        %v2623 = vunpack.c.h.b16 %v795
        %v2624 = vunpack.c.l.b16 %v796
        %v2625 = vunpack.c.h.b16 %v796
        %v2626 = vunpack.c.l.b16 %v797
        %v2627 = vunpack.c.h.b16 %v797
        %v2628 = vunpack.c.l.b16 %v798
        %v2629 = vunpack.c.h.b16 %v798
        %v2630 = vunpack.c.l.b16 %v799
        %v2631 = vunpack.c.h.b16 %v799
        %v2632 = vunpack.c.l.b16 %v800
        %v2633 = vunpack.c.h.b16 %v800
        %v2634 = vunpack.c.l.b16 %v801
        %v2635 = vunpack.c.h.b16 %v801
        %v2636 = vunpack.c.l.b16 %v802
        %v2637 = vunpack.c.h.b16 %v802
        %v2638 = vunpack.c.l.b16 %v803
        %v2639 = vunpack.c.h.b16 %v803
        %v2640 = vunpack.c.l.b16 %v804
        %v2641 = vunpack.c.h.b16 %v804
        %v2642 = vunpack.c.l.b16 %v805
        %v2643 = vunpack.c.h.b16 %v805
        %v2644 = vunpack.c.l.b16 %v806
        %v2645 = vunpack.c.h.b16 %v806
        %v2646 = vunpack.c.l.b16 %v807
        %v2647 = vunpack.c.h.b16 %v807
        %v2648 = vunpack.c.l.b16 %v808
        %v2649 = vunpack.c.h.b16 %v808
        %v2650 = vunpack.c.l.b16 %v809
        %v2651 = vunpack.c.h.b16 %v809
        %v2652 = vunpack.c.l.b16 %v810
        %v2653 = vunpack.c.h.b16 %v810
        %v2654 = vunpack.c.l.b16 %v811
        %v2655 = vunpack.c.h.b16 %v811
        %v2656 = vunpack.c.l.b16 %v812
        %v2657 = vunpack.c.h.b16 %v812
        %v2658 = vunpack.c.l.b16 %v813
        %v2659 = vunpack.c.h.b16 %v813
        %v2660 = vunpack.c.l.b16 %v814
        %v2661 = vunpack.c.h.b16 %v814
        %v2662 = vunpack.c.l.b16 %v815
        %v2663 = vunpack.c.h.b16 %v815
        %v2664 = vunpack.c.l.b16 %v816
        %v2665 = vunpack.c.h.b16 %v816
        %v2666 = vunpack.c.l.b16 %v817
        %v2667 = vunpack.c.h.b16 %v817
        %v2668 = vunpack.c.l.b16 %v818
        %v2669 = vunpack.c.h.b16 %v818
        %v2670 = vunpack.c.l.b16 %v819
        %v2671 = vunpack.c.h.b16 %v819
        %v2672 = vunpack.c.l.b16 %v820
        %v2673 = vunpack.c.h.b16 %v820
        %v2674 = vunpack.c.l.b16 %v821
        %v2675 = vunpack.c.h.b16 %v821
        %v2676 = vunpack.c.l.b16 %v822
        %v2677 = vunpack.c.h.b16 %v822
        %v2678 = vunpack.c.l.b16 %v823
        %v2679 = vunpack.c.h.b16 %v823
        %v2680 = vunpack.c.l.b16 %v824
        %v2681 = vunpack.c.h.b16 %v824
        %v2682 = vunpack.c.l.b16 %v825
        %v2683 = vunpack.c.h.b16 %v825
        %v2684 = vunpack.c.l.b16 %v826
        %v2685 = vunpack.c.h.b16 %v826
        %v2686 = vunpack.c.l.b16 %v827
        %v2687 = vunpack.c.h.b16 %v827
        %v2688 = vunpack.c.l.b16 %v828
        %v2689 = vunpack.c.h.b16 %v828
        %v2690 = vunpack.c.l.b16 %v829
        %v2691 = vunpack.c.h.b16 %v829
        %v2692 = vunpack.c.l.b16 %v830
        %v2693 = vunpack.c.h.b16 %v830
        %v2694 = vunpack.c.l.b16 %v831
        %v2695 = vunpack.c.h.b16 %v831
        %v2696 = vunpack.c.l.b16 %v832
        %v2697 = vunpack.c.h.b16 %v832
        %v2698 = vunpack.c.l.b16 %v833
        %v2699 = vunpack.c.h.b16 %v833
        %v2700 = vunpack.c.l.b16 %v834
        %v2701 = vunpack.c.h.b16 %v834
        %v2702 = vunpack.c.l.b16 %v835
        %v2703 = vunpack.c.h.b16 %v835
        %v2704 = vunpack.c.l.b16 %v836
        %v2705 = vunpack.c.h.b16 %v836
        %v2706 = vunpack.c.l.b16 %v837
        %v2707 = vunpack.c.h.b16 %v837
        %v2708 = vunpack.c.l.b16 %v838
        %v2709 = vunpack.c.h.b16 %v838
        %v2710 = vunpack.c.l.b16 %v839
        %v2711 = vunpack.c.h.b16 %v839
        %v2712 = vunpack.c.l.b16 %v840
        %v2713 = vunpack.c.h.b16 %v840
        %v2714 = vunpack.c.l.b16 %v841
        %v2715 = vunpack.c.h.b16 %v841
        %v2716 = vunpack.c.l.b16 %v842
        %v2717 = vunpack.c.h.b16 %v842
        %v2718 = vunpack.c.l.b16 %v843
        %v2719 = vunpack.c.h.b16 %v843
        %v2720 = vunpack.c.l.b16 %v844
        %v2721 = vunpack.c.h.b16 %v844
        %v2722 = vunpack.c.l.b16 %v845
        %v2723 = vunpack.c.h.b16 %v845
        %v2724 = vunpack.c.l.b16 %v846
        %v2725 = vunpack.c.h.b16 %v846
        %v2726 = vunpack.c.l.b16 %v847
        %v2727 = vunpack.c.h.b16 %v847
        %v2728 = vunpack.c.l.b16 %v848
        %v2729 = vunpack.c.h.b16 %v848
        %v2730 = vunpack.c.l.b16 %v849
        %v2731 = vunpack.c.h.b16 %v849
        %v2732 = vunpack.c.l.b16 %v850
        %v2733 = vunpack.c.h.b16 %v850
        %v2734 = vunpack.c.l.b16 %v851
        %v2735 = vunpack.c.h.b16 %v851
        %v2736 = vunpack.c.l.b16 %v852
        %v2737 = vunpack.c.h.b16 %v852
        %v2738 = vunpack.c.l.b16 %v853
        %v2739 = vunpack.c.h.b16 %v853
        %v2740 = vunpack.c.l.b16 %v854
        %v2741 = vunpack.c.h.b16 %v854
        %v2742 = vunpack.c.l.b16 %v855
        %v2743 = vunpack.c.h.b16 %v855
        %v2744 = vunpack.c.l.b16 %v856
        %v2745 = vunpack.c.h.b16 %v856
        %v2746 = vunpack.c.l.b16 %v857
        %v2747 = vunpack.c.h.b16 %v857
        %v2748 = vunpack.c.l.b16 %v858
        %v2749 = vunpack.c.h.b16 %v858
        %v2750 = vunpack.c.l.b16 %v859
        %v2751 = vunpack.c.h.b16 %v859
        %v2752 = vunpack.c.l.b16 %v860
        %v2753 = vunpack.c.h.b16 %v860
        %v2754 = vunpack.c.l.b16 %v861
        %v2755 = vunpack.c.h.b16 %v861
        %v2756 = vunpack.c.l.b16 %v862
        %v2757 = vunpack.c.h.b16 %v862
        %v2758 = vunpack.c.l.b16 %v863
        %v2759 = vunpack.c.h.b16 %v863
        %v2760 = vunpack.c.l.b16 %v864
        %v2761 = vunpack.c.h.b16 %v864
        %v2762 = vunpack.c.l.b16 %v865
        %v2763 = vunpack.c.h.b16 %v865
        %v2764 = vunpack.c.l.b16 %v866
        %v2765 = vunpack.c.h.b16 %v866
        %v2766 = vunpack.c.l.b16 %v867
        %v2767 = vunpack.c.h.b16 %v867
        %v2768 = vunpack.c.l.b16 %v868
        %v2769 = vunpack.c.h.b16 %v868
        %v2770 = vunpack.c.l.b16 %v869
        %v2771 = vunpack.c.h.b16 %v869
        %v2772 = vunpack.c.l.b16 %v870
        %v2773 = vunpack.c.h.b16 %v870
        %v2774 = vunpack.c.l.b16 %v871
        %v2775 = vunpack.c.h.b16 %v871
        %v2776 = vunpack.c.l.b16 %v872
        %v2777 = vunpack.c.h.b16 %v872
        %v2778 = vunpack.c.l.b16 %v873
        %v2779 = vunpack.c.h.b16 %v873
        %v2780 = vunpack.c.l.b16 %v874
        %v2781 = vunpack.c.h.b16 %v874
        %v2782 = vunpack.c.l.b16 %v875
        %v2783 = vunpack.c.h.b16 %v875
        %v2784 = vunpack.c.l.b16 %v876
        %v2785 = vunpack.c.h.b16 %v876
        %v2786 = vunpack.c.l.b16 %v877
        %v2787 = vunpack.c.h.b16 %v877
        %v2788 = vunpack.c.l.b16 %v878
        %v2789 = vunpack.c.h.b16 %v878
        %v2790 = vunpack.c.l.b16 %v879
        %v2791 = vunpack.c.h.b16 %v879
        %v2792 = vunpack.c.l.b16 %v880
        %v2793 = vunpack.c.h.b16 %v880
        %v2794 = vunpack.c.l.b16 %v881
        %v2795 = vunpack.c.h.b16 %v881
        %v2796 = vunpack.c.l.b16 %v882
        %v2797 = vunpack.c.h.b16 %v882
        %v2798 = vunpack.c.l.b16 %v883
        %v2799 = vunpack.c.h.b16 %v883
        %v2800 = vunpack.c.l.b16 %v884
        %v2801 = vunpack.c.h.b16 %v884
        %v2802 = vunpack.c.l.b16 %v885
        %v2803 = vunpack.c.h.b16 %v885
        %v2804 = vunpack.c.l.b16 %v886
        %v2805 = vunpack.c.h.b16 %v886
        %v2806 = vunpack.c.l.b16 %v887
        %v2807 = vunpack.c.h.b16 %v887
        %v2808 = vunpack.c.l.b16 %v888
        %v2809 = vunpack.c.h.b16 %v888
        %v2810 = vunpack.c.l.b16 %v889
        %v2811 = vunpack.c.h.b16 %v889
        %v2812 = vunpack.c.l.b16 %v890
        %v2813 = vunpack.c.h.b16 %v890
        %v2814 = vunpack.c.l.b16 %v891
        %v2815 = vunpack.c.h.b16 %v891
        %v2816 = vunpack.c.l.b16 %v892
        %v2817 = vunpack.c.h.b16 %v892
        %v2818 = vunpack.c.l.b16 %v893
        %v2819 = vunpack.c.h.b16 %v893
        %v2820 = vunpack.c.l.b16 %v894
        %v2821 = vunpack.c.h.b16 %v894
        %v2822 = vunpack.c.l.b16 %v895
        %v2823 = vunpack.c.h.b16 %v895
        %v2824 = vunpack.c.l.b16 %v896
        %v2825 = vunpack.c.h.b16 %v896
        %v2826 = vunpack.c.l.b16 %v897
        %v2827 = vunpack.c.h.b16 %v897
        %v2828 = vunpack.c.l.b16 %v898
        %v2829 = vunpack.c.h.b16 %v898
        %v2830 = vunpack.c.l.b16 %v899
        %v2831 = vunpack.c.h.b16 %v899
        %v2832 = vunpack.c.l.b16 %v900
        %v2833 = vunpack.c.h.b16 %v900
        %v2834 = vunpack.c.l.b16 %v901
        %v2835 = vunpack.c.h.b16 %v901
        %v2836 = vunpack.c.l.b16 %v902
        %v2837 = vunpack.c.h.b16 %v902
        %v2838 = vunpack.c.l.b16 %v903
        %v2839 = vunpack.c.h.b16 %v903
        %v2840 = vunpack.c.l.b16 %v904
        %v2841 = vunpack.c.h.b16 %v904
        %v2842 = vunpack.c.l.b16 %v905
        %v2843 = vunpack.c.h.b16 %v905
        %v2844 = vunpack.c.l.b16 %v906
        %v2845 = vunpack.c.h.b16 %v906
        %v2846 = vunpack.c.l.b16 %v907
        %v2847 = vunpack.c.h.b16 %v907
        %v2848 = vunpack.c.l.b16 %v908
        %v2849 = vunpack.c.h.b16 %v908
        %v2850 = vunpack.c.l.b16 %v909
        %v2851 = vunpack.c.h.b16 %v909
        %v2852 = vunpack.c.l.b16 %v910
        %v2853 = vunpack.c.h.b16 %v910
        %v2854 = vunpack.c.l.b16 %v911
        %v2855 = vunpack.c.h.b16 %v911
        %v2856 = vunpack.c.l.b16 %v912
        %v2857 = vunpack.c.h.b16 %v912
        %v2858 = vunpack.c.l.b16 %v913
        %v2859 = vunpack.c.h.b16 %v913
        %v2860 = vunpack.c.l.b16 %v914
        %v2861 = vunpack.c.h.b16 %v914
        %v2862 = vunpack.c.l.b16 %v915
        %v2863 = vunpack.c.h.b16 %v915
        %v2864 = vunpack.c.l.b16 %v916
        %v2865 = vunpack.c.h.b16 %v916
        %v2866 = vunpack.c.l.b16 %v917
        %v2867 = vunpack.c.h.b16 %v917
        %v2868 = vunpack.c.l.b16 %v918
        %v2869 = vunpack.c.h.b16 %v918
        %v2870 = vunpack.c.l.b16 %v919
        %v2871 = vunpack.c.h.b16 %v919
        %v2872 = vunpack.c.l.b16 %v920
        %v2873 = vunpack.c.h.b16 %v920
        %v2874 = vunpack.c.l.b16 %v921
        %v2875 = vunpack.c.h.b16 %v921
        %v2876 = vunpack.c.l.b16 %v922
        %v2877 = vunpack.c.h.b16 %v922
        %v2878 = vunpack.c.l.b16 %v923
        %v2879 = vunpack.c.h.b16 %v923
        %v2880 = vunpack.c.l.b16 %v924
        %v2881 = vunpack.c.h.b16 %v924
        %v2882 = vunpack.c.l.b16 %v925
        %v2883 = vunpack.c.h.b16 %v925
        %v2884 = vunpack.c.l.b16 %v926
        %v2885 = vunpack.c.h.b16 %v926
        %v2886 = vunpack.c.l.b16 %v927
        %v2887 = vunpack.c.h.b16 %v927
        %v2888 = vunpack.c.l.b16 %v928
        %v2889 = vunpack.c.h.b16 %v928
        %v2890 = vunpack.c.l.b16 %v929
        %v2891 = vunpack.c.h.b16 %v929
        %v2892 = vunpack.c.l.b16 %v930
        %v2893 = vunpack.c.h.b16 %v930
        %v2894 = vunpack.c.l.b16 %v931
        %v2895 = vunpack.c.h.b16 %v931
        %v2896 = vunpack.c.l.b16 %v932
        %v2897 = vunpack.c.h.b16 %v932
        %v2898 = vunpack.c.l.b16 %v933
        %v2899 = vunpack.c.h.b16 %v933
        %v2900 = vunpack.c.l.b16 %v934
        %v2901 = vunpack.c.h.b16 %v934
        %v2902 = vunpack.c.l.b16 %v935
        %v2903 = vunpack.c.h.b16 %v935
        %v2904 = vunpack.c.l.b16 %v936
        %v2905 = vunpack.c.h.b16 %v936
        %v2906 = vunpack.c.l.b16 %v937
        %v2907 = vunpack.c.h.b16 %v937
        %v2908 = vunpack.c.l.b16 %v938
        %v2909 = vunpack.c.h.b16 %v938
        %v2910 = vunpack.c.l.b16 %v939
        %v2911 = vunpack.c.h.b16 %v939
        %v2912 = vunpack.c.l.b16 %v940
        %v2913 = vunpack.c.h.b16 %v940
        %v2914 = vunpack.c.l.b16 %v941
        %v2915 = vunpack.c.h.b16 %v941
        %v2916 = vunpack.c.l.b16 %v942
        %v2917 = vunpack.c.h.b16 %v942
        %v2918 = vunpack.c.l.b16 %v943
        %v2919 = vunpack.c.h.b16 %v943
        %v2920 = vunpack.c.l.b16 %v944
        %v2921 = vunpack.c.h.b16 %v944
        %v2922 = vunpack.c.l.b16 %v945
        %v2923 = vunpack.c.h.b16 %v945
        %v2924 = vunpack.c.l.b16 %v946
        %v2925 = vunpack.c.h.b16 %v946
        %v2926 = vunpack.c.l.b16 %v947
        %v2927 = vunpack.c.h.b16 %v947
        %v2928 = vunpack.c.l.b16 %v948
        %v2929 = vunpack.c.h.b16 %v948
        %v2930 = vunpack.c.l.b16 %v949
        %v2931 = vunpack.c.h.b16 %v949
        %v2932 = vunpack.c.l.b16 %v950
        %v2933 = vunpack.c.h.b16 %v950
        %v2934 = vunpack.c.l.b16 %v951
        %v2935 = vunpack.c.h.b16 %v951
        %v2936 = vunpack.c.l.b16 %v952
        %v2937 = vunpack.c.h.b16 %v952
        %v2938 = vunpack.c.l.b16 %v953
        %v2939 = vunpack.c.h.b16 %v953
        %v2940 = vunpack.c.l.b16 %v954
        %v2941 = vunpack.c.h.b16 %v954
        %v2942 = vunpack.c.l.b16 %v955
        %v2943 = vunpack.c.h.b16 %v955
        %v2944 = vunpack.c.l.b16 %v956
        %v2945 = vunpack.c.h.b16 %v956
        %v2946 = vunpack.c.l.b16 %v957
        %v2947 = vunpack.c.h.b16 %v957
        %v2948 = vunpack.c.l.b16 %v958
        %v2949 = vunpack.c.h.b16 %v958
        %v2950 = vunpack.c.l.b16 %v959
        %v2951 = vunpack.c.h.b16 %v959
        %v2952 = vunpack.c.l.b16 %v960
        %v2953 = vunpack.c.h.b16 %v960
        %v2954 = vunpack.c.l.b16 %v961
        %v2955 = vunpack.c.h.b16 %v961
        %v2956 = vunpack.c.l.b16 %v962
        %v2957 = vunpack.c.h.b16 %v962
        %v2958 = vunpack.c.l.b16 %v963
        %v2959 = vunpack.c.h.b16 %v963
        %v2960 = vunpack.c.l.b16 %v964
        %v2961 = vunpack.c.h.b16 %v964
        %v2962 = vunpack.c.l.b16 %v965
        %v2963 = vunpack.c.h.b16 %v965
        %v2964 = vunpack.c.l.b16 %v966
        %v2965 = vunpack.c.h.b16 %v966
        %v2966 = vunpack.c.l.b16 %v967
        %v2967 = vunpack.c.h.b16 %v967
        %v2968 = vunpack.c.l.b16 %v968
        %v2969 = vunpack.c.h.b16 %v968
        %v2970 = vunpack.c.l.b16 %v969
        %v2971 = vunpack.c.h.b16 %v969
        %v2972 = vunpack.c.l.b16 %v970
        %v2973 = vunpack.c.h.b16 %v970
        %v2974 = vunpack.c.l.b16 %v971
        %v2975 = vunpack.c.h.b16 %v971
        %v2976 = vunpack.c.l.b16 %v972
        %v2977 = vunpack.c.h.b16 %v972
        %v2978 = vunpack.c.l.b16 %v973
        %v2979 = vunpack.c.h.b16 %v973
        %v2980 = vunpack.c.l.b16 %v974
        %v2981 = vunpack.c.h.b16 %v974
        %v2982 = vunpack.c.l.b16 %v975
        %v2983 = vunpack.c.h.b16 %v975
        %v2984 = vunpack.c.l.b16 %v976
        %v2985 = vunpack.c.h.b16 %v976
        %v2986 = vunpack.c.l.b16 %v977
        %v2987 = vunpack.c.h.b16 %v977
        %v2988 = vunpack.c.l.b16 %v978
        %v2989 = vunpack.c.h.b16 %v978
        %v2990 = vunpack.c.l.b16 %v979
        %v2991 = vunpack.c.h.b16 %v979
        %v2992 = vunpack.c.l.b16 %v980
        %v2993 = vunpack.c.h.b16 %v980
        %v2994 = vunpack.c.l.b16 %v981
        %v2995 = vunpack.c.h.b16 %v981
        %v2996 = vunpack.c.l.b16 %v982
        %v2997 = vunpack.c.h.b16 %v982
        %v2998 = vunpack.c.l.b16 %v983
        %v2999 = vunpack.c.h.b16 %v983
        %v3000 = vunpack.c.l.b16 %v984
        %v3001 = vunpack.c.h.b16 %v984
        %v3002 = vunpack.c.l.b16 %v985
        %v3003 = vunpack.c.h.b16 %v985
        %v3004 = vunpack.c.l.b16 %v986
        %v3005 = vunpack.c.h.b16 %v986
        %v3006 = vunpack.c.l.b16 %v987
        %v3007 = vunpack.c.h.b16 %v987
        %v3008 = vunpack.c.l.b16 %v988
        %v3009 = vunpack.c.h.b16 %v988
        %v3010 = vunpack.c.l.b16 %v989
        %v3011 = vunpack.c.h.b16 %v989
        %v3012 = vunpack.c.l.b16 %v990
        %v3013 = vunpack.c.h.b16 %v990
        %v3014 = vunpack.c.l.b16 %v991
        %v3015 = vunpack.c.h.b16 %v991
        %v3016 = vunpack.c.l.b16 %v992
        %v3017 = vunpack.c.h.b16 %v992
        %v3018 = vunpack.c.l.b16 %v993
        %v3019 = vunpack.c.h.b16 %v993
        %v3020 = vunpack.c.l.b16 %v994
        %v3021 = vunpack.c.h.b16 %v994
        %v3022 = vunpack.c.l.b16 %v995
        %v3023 = vunpack.c.h.b16 %v995
        %v3024 = vpack.c.b16 %v1682, %v1680
        %v3025 = vpack.c.b16 %v1683, %v1681
        %v3026 = vpack.c.b16 %v1686, %v1684
        %v3027 = vpack.c.b16 %v1687, %v1685
        %v3028 = vpack.c.b16 %v1690, %v1688
        %v3029 = vpack.c.b16 %v1691, %v1689
        %v3030 = vpack.c.b16 %v1694, %v1692
        %v3031 = vpack.c.b16 %v1695, %v1693
        %v3032 = vpack.c.b16 %v1698, %v1696
        %v3033 = vpack.c.b16 %v1699, %v1697
        %v3034 = vpack.c.b16 %v1702, %v1700
        %v3035 = vpack.c.b16 %v1703, %v1701
        %v3036 = vpack.c.b16 %v1706, %v1704
        %v3037 = vpack.c.b16 %v1707, %v1705
        %v3038 = vpack.c.b16 %v1710, %v1708
        %v3039 = vpack.c.b16 %v1711, %v1709
        %v3040 = vpack.c.b16 %v1714, %v1712
        %v3041 = vpack.c.b16 %v1715, %v1713
        %v3042 = vpack.c.b16 %v1718, %v1716
        %v3043 = vpack.c.b16 %v1719, %v1717
        %v3044 = vpack.c.b16 %v1722, %v1720
        %v3045 = vpack.c.b16 %v1723, %v1721
        %v3046 = vpack.c.b16 %v1726, %v1724
        %v3047 = vpack.c.b16 %v1727, %v1725
        %v3048 = vpack.c.b16 %v1730, %v1728
        %v3049 = vpack.c.b16 %v1731, %v1729
        %v3050 = vpack.c.b16 %v1734, %v1732
        %v3051 = vpack.c.b16 %v1735, %v1733
        %v3052 = vpack.c.b16 %v1738, %v1736
        %v3053 = vpack.c.b16 %v1739, %v1737
        %v3054 = vpack.c.b16 %v1742, %v1740
        %v3055 = vpack.c.b16 %v1743, %v1741
        %v3056 = vpack.c.b16 %v1746, %v1744
        %v3057 = vpack.c.b16 %v1747, %v1745
        %v3058 = vpack.c.b16 %v1750, %v1748
        %v3059 = vpack.c.b16 %v1751, %v1749
        %v3060 = vpack.c.b16 %v1754, %v1752
        %v3061 = vpack.c.b16 %v1755, %v1753
        %v3062 = vpack.c.b16 %v1758, %v1756
        %v3063 = vpack.c.b16 %v1759, %v1757
        %v3064 = vpack.c.b16 %v1762, %v1760
        %v3065 = vpack.c.b16 %v1763, %v1761
        %v3066 = vpack.c.b16 %v1766, %v1764
        %v3067 = vpack.c.b16 %v1767, %v1765
        %v3068 = vpack.c.b16 %v1770, %v1768
        %v3069 = vpack.c.b16 %v1771, %v1769
        %v3070 = vpack.c.b16 %v1774, %v1772
        %v3071 = vpack.c.b16 %v1775, %v1773
        %v3072 = vpack.c.b16 %v1778, %v1776
        %v3073 = vpack.c.b16 %v1779, %v1777
        %v3074 = vpack.c.b16 %v1782, %v1780
        %v3075 = vpack.c.b16 %v1783, %v1781
        %v3076 = vpack.c.b16 %v1786, %v1784
        %v3077 = vpack.c.b16 %v1787, %v1785
        %v3078 = vpack.c.b16 %v1790, %v1788
        %v3079 = vpack.c.b16 %v1791, %v1789
        %v3080 = vpack.c.b16 %v1794, %v1792
        %v3081 = vpack.c.b16 %v1795, %v1793
        %v3082 = vpack.c.b16 %v1798, %v1796
        %v3083 = vpack.c.b16 %v1799, %v1797
        %v3084 = vpack.c.b16 %v1802, %v1800
        %v3085 = vpack.c.b16 %v1803, %v1801
        %v3086 = vpack.c.b16 %v1806, %v1804
        %v3087 = vpack.c.b16 %v1807, %v1805
        %v3088 = vpack.c.b16 %v1810, %v1808
        %v3089 = vpack.c.b16 %v1811, %v1809
        %v3090 = vpack.c.b16 %v1814, %v1812
        %v3091 = vpack.c.b16 %v1815, %v1813
        %v3092 = vpack.c.b16 %v1818, %v1816
        %v3093 = vpack.c.b16 %v1819, %v1817
        %v3094 = vpack.c.b16 %v1822, %v1820
        %v3095 = vpack.c.b16 %v1823, %v1821
        %v3096 = vpack.c.b16 %v1826, %v1824
        %v3097 = vpack.c.b16 %v1827, %v1825
        %v3098 = vpack.c.b16 %v1830, %v1828
        %v3099 = vpack.c.b16 %v1831, %v1829
        %v3100 = vpack.c.b16 %v1834, %v1832
        %v3101 = vpack.c.b16 %v1835, %v1833
        %v3102 = vpack.c.b16 %v1838, %v1836
        %v3103 = vpack.c.b16 %v1839, %v1837
        %v3104 = vpack.c.b16 %v1842, %v1840
        %v3105 = vpack.c.b16 %v1843, %v1841
        %v3106 = vpack.c.b16 %v1846, %v1844
        %v3107 = vpack.c.b16 %v1847, %v1845
        %v3108 = vpack.c.b16 %v1850, %v1848
        %v3109 = vpack.c.b16 %v1851, %v1849
        %v3110 = vpack.c.b16 %v1854, %v1852
        %v3111 = vpack.c.b16 %v1855, %v1853
        %v3112 = vpack.c.b16 %v1858, %v1856
        %v3113 = vpack.c.b16 %v1859, %v1857
        %v3114 = vpack.c.b16 %v1862, %v1860
        %v3115 = vpack.c.b16 %v1863, %v1861
        %v3116 = vpack.c.b16 %v1866, %v1864
        %v3117 = vpack.c.b16 %v1867, %v1865
        %v3118 = vpack.c.b16 %v1870, %v1868
        %v3119 = vpack.c.b16 %v1871, %v1869
        %v3120 = vpack.c.b16 %v1874, %v1872
        %v3121 = vpack.c.b16 %v1875, %v1873
        %v3122 = vpack.c.b16 %v1878, %v1876
        %v3123 = vpack.c.b16 %v1879, %v1877
        %v3124 = vpack.c.b16 %v1882, %v1880
        %v3125 = vpack.c.b16 %v1883, %v1881
        %v3126 = vpack.c.b16 %v1886, %v1884
        %v3127 = vpack.c.b16 %v1887, %v1885
        %v3128 = vpack.c.b16 %v1890, %v1888
        %v3129 = vpack.c.b16 %v1891, %v1889
        %v3130 = vpack.c.b16 %v1894, %v1892
        %v3131 = vpack.c.b16 %v1895, %v1893
        %v3132 = vpack.c.b16 %v1898, %v1896
        %v3133 = vpack.c.b16 %v1899, %v1897
        %v3134 = vpack.c.b16 %v1902, %v1900
        %v3135 = vpack.c.b16 %v1903, %v1901
        %v3136 = vpack.c.b16 %v1906, %v1904
        %v3137 = vpack.c.b16 %v1907, %v1905
        %v3138 = vpack.c.b16 %v1910, %v1908
        %v3139 = vpack.c.b16 %v1911, %v1909
        %v3140 = vpack.c.b16 %v1914, %v1912
        %v3141 = vpack.c.b16 %v1915, %v1913
        %v3142 = vpack.c.b16 %v1918, %v1916
        %v3143 = vpack.c.b16 %v1919, %v1917
        %v3144 = vpack.c.b16 %v1922, %v1920
        %v3145 = vpack.c.b16 %v1923, %v1921
        %v3146 = vpack.c.b16 %v1926, %v1924
        %v3147 = vpack.c.b16 %v1927, %v1925
        %v3148 = vpack.c.b16 %v1930, %v1928
        %v3149 = vpack.c.b16 %v1931, %v1929
        %v3150 = vpack.c.b16 %v1934, %v1932
        %v3151 = vpack.c.b16 %v1935, %v1933
        %v3152 = vpack.c.b16 %v1938, %v1936
        %v3153 = vpack.c.b16 %v1939, %v1937
        %v3154 = vpack.c.b16 %v1942, %v1940
        %v3155 = vpack.c.b16 %v1943, %v1941
        %v3156 = vpack.c.b16 %v1946, %v1944
        %v3157 = vpack.c.b16 %v1947, %v1945
        %v3158 = vpack.c.b16 %v1950, %v1948
        %v3159 = vpack.c.b16 %v1951, %v1949
        %v3160 = vpack.c.b16 %v1954, %v1952
        %v3161 = vpack.c.b16 %v1955, %v1953
        %v3162 = vpack.c.b16 %v1958, %v1956
        %v3163 = vpack.c.b16 %v1959, %v1957
        %v3164 = vpack.c.b16 %v1962, %v1960
        %v3165 = vpack.c.b16 %v1963, %v1961
        %v3166 = vpack.c.b16 %v1966, %v1964
        %v3167 = vpack.c.b16 %v1967, %v1965
        %v3168 = vpack.c.b16 %v1970, %v1968
        %v3169 = vpack.c.b16 %v1971, %v1969
        %v3170 = vpack.c.b16 %v1974, %v1972
        %v3171 = vpack.c.b16 %v1975, %v1973
        %v3172 = vpack.c.b16 %v1978, %v1976
        %v3173 = vpack.c.b16 %v1979, %v1977
        %v3174 = vpack.c.b16 %v1982, %v1980
        %v3175 = vpack.c.b16 %v1983, %v1981
        %v3176 = vpack.c.b16 %v1986, %v1984
        %v3177 = vpack.c.b16 %v1987, %v1985
        %v3178 = vpack.c.b16 %v1990, %v1988
        %v3179 = vpack.c.b16 %v1991, %v1989
        %v3180 = vpack.c.b16 %v1994, %v1992
        %v3181 = vpack.c.b16 %v1995, %v1993
        %v3182 = vpack.c.b16 %v1998, %v1996
        %v3183 = vpack.c.b16 %v1999, %v1997
        %v3184 = vpack.c.b16 %v2002, %v2000
        %v3185 = vpack.c.b16 %v2003, %v2001
        %v3186 = vpack.c.b16 %v2006, %v2004
        %v3187 = vpack.c.b16 %v2007, %v2005
        %v3188 = vpack.c.b16 %v2010, %v2008
        %v3189 = vpack.c.b16 %v2011, %v2009
        %v3190 = vpack.c.b16 %v2014, %v2012
        %v3191 = vpack.c.b16 %v2015, %v2013
        %v3192 = vpack.c.b16 %v2018, %v2016
        %v3193 = vpack.c.b16 %v2019, %v2017
        %v3194 = vpack.c.b16 %v2022, %v2020
        %v3195 = vpack.c.b16 %v2023, %v2021
        %v3196 = vpack.c.b16 %v2026, %v2024
        %v3197 = vpack.c.b16 %v2027, %v2025
        %v3198 = vpack.c.b16 %v2030, %v2028
        %v3199 = vpack.c.b16 %v2031, %v2029
        %v3200 = vpack.c.b16 %v2034, %v2032
        %v3201 = vpack.c.b16 %v2035, %v2033
        %v3202 = vpack.c.b16 %v2038, %v2036
        %v3203 = vpack.c.b16 %v2039, %v2037
        %v3204 = vpack.c.b16 %v2042, %v2040
        %v3205 = vpack.c.b16 %v2043, %v2041
        %v3206 = vpack.c.b16 %v2046, %v2044
        %v3207 = vpack.c.b16 %v2047, %v2045
        %v3208 = vpack.c.b16 %v2050, %v2048
        %v3209 = vpack.c.b16 %v2051, %v2049
        %v3210 = vpack.c.b16 %v2054, %v2052
        %v3211 = vpack.c.b16 %v2055, %v2053
        %v3212 = vpack.c.b16 %v2058, %v2056
        %v3213 = vpack.c.b16 %v2059, %v2057
        %v3214 = vpack.c.b16 %v2062, %v2060
        %v3215 = vpack.c.b16 %v2063, %v2061
        %v3216 = vpack.c.b16 %v2066, %v2064
        %v3217 = vpack.c.b16 %v2067, %v2065
        %v3218 = vpack.c.b16 %v2070, %v2068
        %v3219 = vpack.c.b16 %v2071, %v2069
        %v3220 = vpack.c.b16 %v2074, %v2072
        %v3221 = vpack.c.b16 %v2075, %v2073
        %v3222 = vpack.c.b16 %v2078, %v2076
        %v3223 = vpack.c.b16 %v2079, %v2077
        %v3224 = vpack.c.b16 %v2082, %v2080
        %v3225 = vpack.c.b16 %v2083, %v2081
        %v3226 = vpack.c.b16 %v2086, %v2084
        %v3227 = vpack.c.b16 %v2087, %v2085
        %v3228 = vpack.c.b16 %v2090, %v2088
        %v3229 = vpack.c.b16 %v2091, %v2089
        %v3230 = vpack.c.b16 %v2094, %v2092
        %v3231 = vpack.c.b16 %v2095, %v2093
        %v3232 = vpack.c.b16 %v2098, %v2096
        %v3233 = vpack.c.b16 %v2099, %v2097
        %v3234 = vpack.c.b16 %v2102, %v2100
        %v3235 = vpack.c.b16 %v2103, %v2101
        %v3236 = vpack.c.b16 %v2106, %v2104
        %v3237 = vpack.c.b16 %v2107, %v2105
        %v3238 = vpack.c.b16 %v2110, %v2108
        %v3239 = vpack.c.b16 %v2111, %v2109
        %v3240 = vpack.c.b16 %v2114, %v2112
        %v3241 = vpack.c.b16 %v2115, %v2113
        %v3242 = vpack.c.b16 %v2118, %v2116
        %v3243 = vpack.c.b16 %v2119, %v2117
        %v3244 = vpack.c.b16 %v2122, %v2120
        %v3245 = vpack.c.b16 %v2123, %v2121
        %v3246 = vpack.c.b16 %v2126, %v2124
        %v3247 = vpack.c.b16 %v2127, %v2125
        %v3248 = vpack.c.b16 %v2130, %v2128
        %v3249 = vpack.c.b16 %v2131, %v2129
        %v3250 = vpack.c.b16 %v2134, %v2132
        %v3251 = vpack.c.b16 %v2135, %v2133
        %v3252 = vpack.c.b16 %v2138, %v2136
        %v3253 = vpack.c.b16 %v2139, %v2137
        %v3254 = vpack.c.b16 %v2142, %v2140
        %v3255 = vpack.c.b16 %v2143, %v2141
        %v3256 = vpack.c.b16 %v2146, %v2144
        %v3257 = vpack.c.b16 %v2147, %v2145
        %v3258 = vpack.c.b16 %v2150, %v2148
        %v3259 = vpack.c.b16 %v2151, %v2149
        %v3260 = vpack.c.b16 %v2154, %v2152
        %v3261 = vpack.c.b16 %v2155, %v2153
        %v3262 = vpack.c.b16 %v2158, %v2156
        %v3263 = vpack.c.b16 %v2159, %v2157
        %v3264 = vpack.c.b16 %v2162, %v2160
        %v3265 = vpack.c.b16 %v2163, %v2161
        %v3266 = vpack.c.b16 %v2166, %v2164
        %v3267 = vpack.c.b16 %v2167, %v2165
        %v3268 = vpack.c.b16 %v2170, %v2168
        %v3269 = vpack.c.b16 %v2171, %v2169
        %v3270 = vpack.c.b16 %v2174, %v2172
        %v3271 = vpack.c.b16 %v2175, %v2173
        %v3272 = vpack.c.b16 %v2178, %v2176
        %v3273 = vpack.c.b16 %v2179, %v2177
        %v3274 = vpack.c.b16 %v2182, %v2180
        %v3275 = vpack.c.b16 %v2183, %v2181
        %v3276 = vpack.c.b16 %v2186, %v2184
        %v3277 = vpack.c.b16 %v2187, %v2185
        %v3278 = vpack.c.b16 %v2190, %v2188
        %v3279 = vpack.c.b16 %v2191, %v2189
        %v3280 = vpack.c.b16 %v2194, %v2192
        %v3281 = vpack.c.b16 %v2195, %v2193
        %v3282 = vpack.c.b16 %v2198, %v2196
        %v3283 = vpack.c.b16 %v2199, %v2197
        %v3284 = vpack.c.b16 %v2202, %v2200
        %v3285 = vpack.c.b16 %v2203, %v2201
        %v3286 = vpack.c.b16 %v2206, %v2204
        %v3287 = vpack.c.b16 %v2207, %v2205
        %v3288 = vpack.c.b16 %v2210, %v2208
        %v3289 = vpack.c.b16 %v2211, %v2209
        %v3290 = vpack.c.b16 %v2214, %v2212
        %v3291 = vpack.c.b16 %v2215, %v2213
        %v3292 = vpack.c.b16 %v2218, %v2216
        %v3293 = vpack.c.b16 %v2219, %v2217
        %v3294 = vpack.c.b16 %v2222, %v2220
        %v3295 = vpack.c.b16 %v2223, %v2221
        %v3296 = vpack.c.b16 %v2226, %v2224
        %v3297 = vpack.c.b16 %v2227, %v2225
        %v3298 = vpack.c.b16 %v2230, %v2228
        %v3299 = vpack.c.b16 %v2231, %v2229
        %v3300 = vpack.c.b16 %v2234, %v2232
        %v3301 = vpack.c.b16 %v2235, %v2233
        %v3302 = vpack.c.b16 %v2238, %v2236
        %v3303 = vpack.c.b16 %v2239, %v2237
        %v3304 = vpack.c.b16 %v2242, %v2240
        %v3305 = vpack.c.b16 %v2243, %v2241
        %v3306 = vpack.c.b16 %v2246, %v2244
        %v3307 = vpack.c.b16 %v2247, %v2245
        %v3308 = vpack.c.b16 %v2250, %v2248
        %v3309 = vpack.c.b16 %v2251, %v2249
        %v3310 = vpack.c.b16 %v2254, %v2252
        %v3311 = vpack.c.b16 %v2255, %v2253
        %v3312 = vpack.c.b16 %v2258, %v2256
        %v3313 = vpack.c.b16 %v2259, %v2257
        %v3314 = vpack.c.b16 %v2262, %v2260
        %v3315 = vpack.c.b16 %v2263, %v2261
        %v3316 = vpack.c.b16 %v2266, %v2264
        %v3317 = vpack.c.b16 %v2267, %v2265
        %v3318 = vpack.c.b16 %v2270, %v2268
        %v3319 = vpack.c.b16 %v2271, %v2269
        %v3320 = vpack.c.b16 %v2274, %v2272
        %v3321 = vpack.c.b16 %v2275, %v2273
        %v3322 = vpack.c.b16 %v2278, %v2276
        %v3323 = vpack.c.b16 %v2279, %v2277
        %v3324 = vpack.c.b16 %v2282, %v2280
        %v3325 = vpack.c.b16 %v2283, %v2281
        %v3326 = vpack.c.b16 %v2286, %v2284
        %v3327 = vpack.c.b16 %v2287, %v2285
        %v3328 = vpack.c.b16 %v2290, %v2288
        %v3329 = vpack.c.b16 %v2291, %v2289
        %v3330 = vpack.c.b16 %v2294, %v2292
        %v3331 = vpack.c.b16 %v2295, %v2293
        %v3332 = vpack.c.b16 %v2298, %v2296
        %v3333 = vpack.c.b16 %v2299, %v2297
        %v3334 = vpack.c.b16 %v2302, %v2300
        %v3335 = vpack.c.b16 %v2303, %v2301
        %v3336 = vpack.c.b16 %v2306, %v2304
        %v3337 = vpack.c.b16 %v2307, %v2305
        %v3338 = vpack.c.b16 %v2310, %v2308
        %v3339 = vpack.c.b16 %v2311, %v2309
        %v3340 = vpack.c.b16 %v2314, %v2312
        %v3341 = vpack.c.b16 %v2315, %v2313
        %v3342 = vpack.c.b16 %v2318, %v2316
        %v3343 = vpack.c.b16 %v2319, %v2317
        %v3344 = vpack.c.b16 %v2322, %v2320
        %v3345 = vpack.c.b16 %v2323, %v2321
        %v3346 = vpack.c.b16 %v2326, %v2324
        %v3347 = vpack.c.b16 %v2327, %v2325
        %v3348 = vpack.c.b16 %v2330, %v2328
        %v3349 = vpack.c.b16 %v2331, %v2329
        %v3350 = vpack.c.b16 %v2334, %v2332
        %v3351 = vpack.c.b16 %v2335, %v2333
        %v3352 = vpack.c.b16 %v2338, %v2336
        %v3353 = vpack.c.b16 %v2339, %v2337
        %v3354 = vpack.c.b16 %v2342, %v2340
        %v3355 = vpack.c.b16 %v2343, %v2341
        %v3356 = vpack.c.b16 %v2346, %v2344
        %v3357 = vpack.c.b16 %v2347, %v2345
        %v3358 = vpack.c.b16 %v2350, %v2348
        %v3359 = vpack.c.b16 %v2351, %v2349
        %v3360 = vpack.c.b16 %v2354, %v2352
        %v3361 = vpack.c.b16 %v2355, %v2353
        %v3362 = vpack.c.b16 %v2358, %v2356
        %v3363 = vpack.c.b16 %v2359, %v2357
        %v3364 = vpack.c.b16 %v2362, %v2360
        %v3365 = vpack.c.b16 %v2363, %v2361
        %v3366 = vpack.c.b16 %v2366, %v2364
        %v3367 = vpack.c.b16 %v2367, %v2365
        %v3368 = vpack.c.b16 %v2370, %v2368
        %v3369 = vpack.c.b16 %v2371, %v2369
        %v3370 = vpack.c.b16 %v2374, %v2372
        %v3371 = vpack.c.b16 %v2375, %v2373
        %v3372 = vpack.c.b16 %v2378, %v2376
        %v3373 = vpack.c.b16 %v2379, %v2377
        %v3374 = vpack.c.b16 %v2382, %v2380
        %v3375 = vpack.c.b16 %v2383, %v2381
        %v3376 = vpack.c.b16 %v2386, %v2384
        %v3377 = vpack.c.b16 %v2387, %v2385
        %v3378 = vpack.c.b16 %v2390, %v2388
        %v3379 = vpack.c.b16 %v2391, %v2389
        %v3380 = vpack.c.b16 %v2394, %v2392
        %v3381 = vpack.c.b16 %v2395, %v2393
        %v3382 = vpack.c.b16 %v2398, %v2396
        %v3383 = vpack.c.b16 %v2399, %v2397
        %v3384 = vpack.c.b16 %v2402, %v2400
        %v3385 = vpack.c.b16 %v2403, %v2401
        %v3386 = vpack.c.b16 %v2406, %v2404
        %v3387 = vpack.c.b16 %v2407, %v2405
        %v3388 = vpack.c.b16 %v2410, %v2408
        %v3389 = vpack.c.b16 %v2411, %v2409
        %v3390 = vpack.c.b16 %v2414, %v2412
        %v3391 = vpack.c.b16 %v2415, %v2413
        %v3392 = vpack.c.b16 %v2418, %v2416
        %v3393 = vpack.c.b16 %v2419, %v2417
        %v3394 = vpack.c.b16 %v2422, %v2420
        %v3395 = vpack.c.b16 %v2423, %v2421
        %v3396 = vpack.c.b16 %v2426, %v2424
        %v3397 = vpack.c.b16 %v2427, %v2425
        %v3398 = vpack.c.b16 %v2430, %v2428
        %v3399 = vpack.c.b16 %v2431, %v2429
        %v3400 = vpack.c.b16 %v2434, %v2432
        %v3401 = vpack.c.b16 %v2435, %v2433
        %v3402 = vpack.c.b16 %v2438, %v2436
        %v3403 = vpack.c.b16 %v2439, %v2437
        %v3404 = vpack.c.b16 %v2442, %v2440
        %v3405 = vpack.c.b16 %v2443, %v2441
        %v3406 = vpack.c.b16 %v2446, %v2444
        %v3407 = vpack.c.b16 %v2447, %v2445
        %v3408 = vpack.c.b16 %v2450, %v2448
        %v3409 = vpack.c.b16 %v2451, %v2449
        %v3410 = vpack.c.b16 %v2454, %v2452
        %v3411 = vpack.c.b16 %v2455, %v2453
        %v3412 = vpack.c.b16 %v2458, %v2456
        %v3413 = vpack.c.b16 %v2459, %v2457
        %v3414 = vpack.c.b16 %v2462, %v2460
        %v3415 = vpack.c.b16 %v2463, %v2461
        %v3416 = vpack.c.b16 %v2466, %v2464
        %v3417 = vpack.c.b16 %v2467, %v2465
        %v3418 = vpack.c.b16 %v2470, %v2468
        %v3419 = vpack.c.b16 %v2471, %v2469
        %v3420 = vpack.c.b16 %v2474, %v2472
        %v3421 = vpack.c.b16 %v2475, %v2473
        %v3422 = vpack.c.b16 %v2478, %v2476
        %v3423 = vpack.c.b16 %v2479, %v2477
        %v3424 = vpack.c.b16 %v2482, %v2480
        %v3425 = vpack.c.b16 %v2483, %v2481
        %v3426 = vpack.c.b16 %v2486, %v2484
        %v3427 = vpack.c.b16 %v2487, %v2485
        %v3428 = vpack.c.b16 %v2490, %v2488
        %v3429 = vpack.c.b16 %v2491, %v2489
        %v3430 = vpack.c.b16 %v2494, %v2492
        %v3431 = vpack.c.b16 %v2495, %v2493
        %v3432 = vpack.c.b16 %v2498, %v2496
        %v3433 = vpack.c.b16 %v2499, %v2497
        %v3434 = vpack.c.b16 %v2502, %v2500
        %v3435 = vpack.c.b16 %v2503, %v2501
        %v3436 = vpack.c.b16 %v2506, %v2504
        %v3437 = vpack.c.b16 %v2507, %v2505
        %v3438 = vpack.c.b16 %v2510, %v2508
        %v3439 = vpack.c.b16 %v2511, %v2509
        %v3440 = vpack.c.b16 %v2514, %v2512
        %v3441 = vpack.c.b16 %v2515, %v2513
        %v3442 = vpack.c.b16 %v2518, %v2516
        %v3443 = vpack.c.b16 %v2519, %v2517
        %v3444 = vpack.c.b16 %v2522, %v2520
        %v3445 = vpack.c.b16 %v2523, %v2521
        %v3446 = vpack.c.b16 %v2526, %v2524
        %v3447 = vpack.c.b16 %v2527, %v2525
        %v3448 = vpack.c.b16 %v2530, %v2528
        %v3449 = vpack.c.b16 %v2531, %v2529
        %v3450 = vpack.c.b16 %v2534, %v2532
        %v3451 = vpack.c.b16 %v2535, %v2533
        %v3452 = vpack.c.b16 %v2538, %v2536
        %v3453 = vpack.c.b16 %v2539, %v2537
        %v3454 = vpack.c.b16 %v2542, %v2540
        %v3455 = vpack.c.b16 %v2543, %v2541
        %v3456 = vpack.c.b16 %v2546, %v2544
        %v3457 = vpack.c.b16 %v2547, %v2545
        %v3458 = vpack.c.b16 %v2550, %v2548
        %v3459 = vpack.c.b16 %v2551, %v2549
        %v3460 = vpack.c.b16 %v2554, %v2552
        %v3461 = vpack.c.b16 %v2555, %v2553
        %v3462 = vpack.c.b16 %v2558, %v2556
        %v3463 = vpack.c.b16 %v2559, %v2557
        %v3464 = vpack.c.b16 %v2562, %v2560
        %v3465 = vpack.c.b16 %v2563, %v2561
        %v3466 = vpack.c.b16 %v2566, %v2564
        %v3467 = vpack.c.b16 %v2567, %v2565
        %v3468 = vpack.c.b16 %v2570, %v2568
        %v3469 = vpack.c.b16 %v2571, %v2569
        %v3470 = vpack.c.b16 %v2574, %v2572
        %v3471 = vpack.c.b16 %v2575, %v2573
        %v3472 = vpack.c.b16 %v2578, %v2576
        %v3473 = vpack.c.b16 %v2579, %v2577
        %v3474 = vpack.c.b16 %v2582, %v2580
        %v3475 = vpack.c.b16 %v2583, %v2581
        %v3476 = vpack.c.b16 %v2586, %v2584
        %v3477 = vpack.c.b16 %v2587, %v2585
        %v3478 = vpack.c.b16 %v2590, %v2588
        %v3479 = vpack.c.b16 %v2591, %v2589
        %v3480 = vpack.c.b16 %v2594, %v2592
        %v3481 = vpack.c.b16 %v2595, %v2593
        %v3482 = vpack.c.b16 %v2598, %v2596
        %v3483 = vpack.c.b16 %v2599, %v2597
        %v3484 = vpack.c.b16 %v2602, %v2600
        %v3485 = vpack.c.b16 %v2603, %v2601
        %v3486 = vpack.c.b16 %v2606, %v2604
        %v3487 = vpack.c.b16 %v2607, %v2605
        %v3488 = vpack.c.b16 %v2610, %v2608
        %v3489 = vpack.c.b16 %v2611, %v2609
        %v3490 = vpack.c.b16 %v2614, %v2612
        %v3491 = vpack.c.b16 %v2615, %v2613
        %v3492 = vpack.c.b16 %v2618, %v2616
        %v3493 = vpack.c.b16 %v2619, %v2617
        %v3494 = vpack.c.b16 %v2622, %v2620
        %v3495 = vpack.c.b16 %v2623, %v2621
        %v3496 = vpack.c.b16 %v2626, %v2624
        %v3497 = vpack.c.b16 %v2627, %v2625
        %v3498 = vpack.c.b16 %v2630, %v2628
        %v3499 = vpack.c.b16 %v2631, %v2629
        %v3500 = vpack.c.b16 %v2634, %v2632
        %v3501 = vpack.c.b16 %v2635, %v2633
        %v3502 = vpack.c.b16 %v2638, %v2636
        %v3503 = vpack.c.b16 %v2639, %v2637
        %v3504 = vpack.c.b16 %v2642, %v2640
        %v3505 = vpack.c.b16 %v2643, %v2641
        %v3506 = vpack.c.b16 %v2646, %v2644
        %v3507 = vpack.c.b16 %v2647, %v2645
        %v3508 = vpack.c.b16 %v2650, %v2648
        %v3509 = vpack.c.b16 %v2651, %v2649
        %v3510 = vpack.c.b16 %v2654, %v2652
        %v3511 = vpack.c.b16 %v2655, %v2653
        %v3512 = vpack.c.b16 %v2658, %v2656
        %v3513 = vpack.c.b16 %v2659, %v2657
        %v3514 = vpack.c.b16 %v2662, %v2660
        %v3515 = vpack.c.b16 %v2663, %v2661
        %v3516 = vpack.c.b16 %v2666, %v2664
        %v3517 = vpack.c.b16 %v2667, %v2665
        %v3518 = vpack.c.b16 %v2670, %v2668
        %v3519 = vpack.c.b16 %v2671, %v2669
        %v3520 = vpack.c.b16 %v2674, %v2672
        %v3521 = vpack.c.b16 %v2675, %v2673
        %v3522 = vpack.c.b16 %v2678, %v2676
        %v3523 = vpack.c.b16 %v2679, %v2677
        %v3524 = vpack.c.b16 %v2682, %v2680
        %v3525 = vpack.c.b16 %v2683, %v2681
        %v3526 = vpack.c.b16 %v2686, %v2684
        %v3527 = vpack.c.b16 %v2687, %v2685
        %v3528 = vpack.c.b16 %v2690, %v2688
        %v3529 = vpack.c.b16 %v2691, %v2689
        %v3530 = vpack.c.b16 %v2694, %v2692
        %v3531 = vpack.c.b16 %v2695, %v2693
        %v3532 = vpack.c.b16 %v2698, %v2696
        %v3533 = vpack.c.b16 %v2699, %v2697
        %v3534 = vpack.c.b16 %v2702, %v2700
        %v3535 = vpack.c.b16 %v2703, %v2701
        %v3536 = vpack.c.b16 %v2706, %v2704
        %v3537 = vpack.c.b16 %v2707, %v2705
        %v3538 = vpack.c.b16 %v2710, %v2708
        %v3539 = vpack.c.b16 %v2711, %v2709
        %v3540 = vpack.c.b16 %v2714, %v2712
        %v3541 = vpack.c.b16 %v2715, %v2713
        %v3542 = vpack.c.b16 %v2718, %v2716
        %v3543 = vpack.c.b16 %v2719, %v2717
        %v3544 = vpack.c.b16 %v2722, %v2720
        %v3545 = vpack.c.b16 %v2723, %v2721
        %v3546 = vpack.c.b16 %v2726, %v2724
        %v3547 = vpack.c.b16 %v2727, %v2725
        %v3548 = vpack.c.b16 %v2730, %v2728
        %v3549 = vpack.c.b16 %v2731, %v2729
        %v3550 = vpack.c.b16 %v2734, %v2732
        %v3551 = vpack.c.b16 %v2735, %v2733
        %v3552 = vpack.c.b16 %v2738, %v2736
        %v3553 = vpack.c.b16 %v2739, %v2737
        %v3554 = vpack.c.b16 %v2742, %v2740
        %v3555 = vpack.c.b16 %v2743, %v2741
        %v3556 = vpack.c.b16 %v2746, %v2744
        %v3557 = vpack.c.b16 %v2747, %v2745
        %v3558 = vpack.c.b16 %v2750, %v2748
        %v3559 = vpack.c.b16 %v2751, %v2749
        %v3560 = vpack.c.b16 %v2754, %v2752
        %v3561 = vpack.c.b16 %v2755, %v2753
        %v3562 = vpack.c.b16 %v2758, %v2756
        %v3563 = vpack.c.b16 %v2759, %v2757
        %v3564 = vpack.c.b16 %v2762, %v2760
        %v3565 = vpack.c.b16 %v2763, %v2761
        %v3566 = vpack.c.b16 %v2766, %v2764
        %v3567 = vpack.c.b16 %v2767, %v2765
        %v3568 = vpack.c.b16 %v2770, %v2768
        %v3569 = vpack.c.b16 %v2771, %v2769
        %v3570 = vpack.c.b16 %v2774, %v2772
        %v3571 = vpack.c.b16 %v2775, %v2773
        %v3572 = vpack.c.b16 %v2778, %v2776
        %v3573 = vpack.c.b16 %v2779, %v2777
        %v3574 = vpack.c.b16 %v2782, %v2780
        %v3575 = vpack.c.b16 %v2783, %v2781
        %v3576 = vpack.c.b16 %v2786, %v2784
        %v3577 = vpack.c.b16 %v2787, %v2785
        %v3578 = vpack.c.b16 %v2790, %v2788
        %v3579 = vpack.c.b16 %v2791, %v2789
        %v3580 = vpack.c.b16 %v2794, %v2792
        %v3581 = vpack.c.b16 %v2795, %v2793
        %v3582 = vpack.c.b16 %v2798, %v2796
        %v3583 = vpack.c.b16 %v2799, %v2797
        %v3584 = vpack.c.b16 %v2802, %v2800
        %v3585 = vpack.c.b16 %v2803, %v2801
        %v3586 = vpack.c.b16 %v2806, %v2804
        %v3587 = vpack.c.b16 %v2807, %v2805
        %v3588 = vpack.c.b16 %v2810, %v2808
        %v3589 = vpack.c.b16 %v2811, %v2809
        %v3590 = vpack.c.b16 %v2814, %v2812
        %v3591 = vpack.c.b16 %v2815, %v2813
        %v3592 = vpack.c.b16 %v2818, %v2816
        %v3593 = vpack.c.b16 %v2819, %v2817
        %v3594 = vpack.c.b16 %v2822, %v2820
        %v3595 = vpack.c.b16 %v2823, %v2821
        %v3596 = vpack.c.b16 %v2826, %v2824
        %v3597 = vpack.c.b16 %v2827, %v2825
        %v3598 = vpack.c.b16 %v2830, %v2828
        %v3599 = vpack.c.b16 %v2831, %v2829
        %v3600 = vpack.c.b16 %v2834, %v2832
        %v3601 = vpack.c.b16 %v2835, %v2833
        %v3602 = vpack.c.b16 %v2838, %v2836
        %v3603 = vpack.c.b16 %v2839, %v2837
        %v3604 = vpack.c.b16 %v2842, %v2840
        %v3605 = vpack.c.b16 %v2843, %v2841
        %v3606 = vpack.c.b16 %v2846, %v2844
        %v3607 = vpack.c.b16 %v2847, %v2845
        %v3608 = vpack.c.b16 %v2850, %v2848
        %v3609 = vpack.c.b16 %v2851, %v2849
        %v3610 = vpack.c.b16 %v2854, %v2852
        %v3611 = vpack.c.b16 %v2855, %v2853
        %v3612 = vpack.c.b16 %v2858, %v2856
        %v3613 = vpack.c.b16 %v2859, %v2857
        %v3614 = vpack.c.b16 %v2862, %v2860
        %v3615 = vpack.c.b16 %v2863, %v2861
        %v3616 = vpack.c.b16 %v2866, %v2864
        %v3617 = vpack.c.b16 %v2867, %v2865
        %v3618 = vpack.c.b16 %v2870, %v2868
        %v3619 = vpack.c.b16 %v2871, %v2869
        %v3620 = vpack.c.b16 %v2874, %v2872
        %v3621 = vpack.c.b16 %v2875, %v2873
        %v3622 = vpack.c.b16 %v2878, %v2876
        %v3623 = vpack.c.b16 %v2879, %v2877
        %v3624 = vpack.c.b16 %v2882, %v2880
        %v3625 = vpack.c.b16 %v2883, %v2881
        %v3626 = vpack.c.b16 %v2886, %v2884
        %v3627 = vpack.c.b16 %v2887, %v2885
        %v3628 = vpack.c.b16 %v2890, %v2888
        %v3629 = vpack.c.b16 %v2891, %v2889
        %v3630 = vpack.c.b16 %v2894, %v2892
        %v3631 = vpack.c.b16 %v2895, %v2893
        %v3632 = vpack.c.b16 %v2898, %v2896
        %v3633 = vpack.c.b16 %v2899, %v2897
        %v3634 = vpack.c.b16 %v2902, %v2900
        %v3635 = vpack.c.b16 %v2903, %v2901
        %v3636 = vpack.c.b16 %v2906, %v2904
        %v3637 = vpack.c.b16 %v2907, %v2905
        %v3638 = vpack.c.b16 %v2910, %v2908
        %v3639 = vpack.c.b16 %v2911, %v2909
        %v3640 = vpack.c.b16 %v2914, %v2912
        %v3641 = vpack.c.b16 %v2915, %v2913
        %v3642 = vpack.c.b16 %v2918, %v2916
        %v3643 = vpack.c.b16 %v2919, %v2917
        %v3644 = vpack.c.b16 %v2922, %v2920
        %v3645 = vpack.c.b16 %v2923, %v2921
        %v3646 = vpack.c.b16 %v2926, %v2924
        %v3647 = vpack.c.b16 %v2927, %v2925
        %v3648 = vpack.c.b16 %v2930, %v2928
        %v3649 = vpack.c.b16 %v2931, %v2929
        %v3650 = vpack.c.b16 %v2934, %v2932
        %v3651 = vpack.c.b16 %v2935, %v2933
        %v3652 = vpack.c.b16 %v2938, %v2936
        %v3653 = vpack.c.b16 %v2939, %v2937
        %v3654 = vpack.c.b16 %v2942, %v2940
        %v3655 = vpack.c.b16 %v2943, %v2941
        %v3656 = vpack.c.b16 %v2946, %v2944
        %v3657 = vpack.c.b16 %v2947, %v2945
        %v3658 = vpack.c.b16 %v2950, %v2948
        %v3659 = vpack.c.b16 %v2951, %v2949
        %v3660 = vpack.c.b16 %v2954, %v2952
        %v3661 = vpack.c.b16 %v2955, %v2953
        %v3662 = vpack.c.b16 %v2958, %v2956
        %v3663 = vpack.c.b16 %v2959, %v2957
        %v3664 = vpack.c.b16 %v2962, %v2960
        %v3665 = vpack.c.b16 %v2963, %v2961
        %v3666 = vpack.c.b16 %v2966, %v2964
        %v3667 = vpack.c.b16 %v2967, %v2965
        %v3668 = vpack.c.b16 %v2970, %v2968
        %v3669 = vpack.c.b16 %v2971, %v2969
        %v3670 = vpack.c.b16 %v2974, %v2972
        %v3671 = vpack.c.b16 %v2975, %v2973
        %v3672 = vpack.c.b16 %v2978, %v2976
        %v3673 = vpack.c.b16 %v2979, %v2977
        %v3674 = vpack.c.b16 %v2982, %v2980
        %v3675 = vpack.c.b16 %v2983, %v2981
        %v3676 = vpack.c.b16 %v2986, %v2984
        %v3677 = vpack.c.b16 %v2987, %v2985
        %v3678 = vpack.c.b16 %v2990, %v2988
        %v3679 = vpack.c.b16 %v2991, %v2989
        %v3680 = vpack.c.b16 %v2994, %v2992
        %v3681 = vpack.c.b16 %v2995, %v2993
        %v3682 = vpack.c.b16 %v2998, %v2996
        %v3683 = vpack.c.b16 %v2999, %v2997
        %v3684 = vpack.c.b16 %v3002, %v3000
        %v3685 = vpack.c.b16 %v3003, %v3001
        %v3686 = vpack.c.b16 %v3006, %v3004
        %v3687 = vpack.c.b16 %v3007, %v3005
        %v3688 = vpack.c.b16 %v3010, %v3008
        %v3689 = vpack.c.b16 %v3011, %v3009
        %v3690 = vpack.c.b16 %v3014, %v3012
        %v3691 = vpack.c.b16 %v3015, %v3013
        %v3692 = vpack.c.b16 %v3018, %v3016
        %v3693 = vpack.c.b16 %v3019, %v3017
        %v3694 = vpack.c.b16 %v3022, %v3020
        %v3695 = vpack.c.b16 %v3023, %v3021
        %4368 = vmatprep.subr.bf16.mxu0 %v3025
        %4369 = vmatpush1.bf16.msra.mxu0 %v3024
        %4370 = vmatprep.subr.bf16.mxu0 %v3027
        %4371 = vmatpush1.bf16.msra.mxu0 %v3026
        %4372 = vmatprep.subr.bf16.mxu0 %v3029
        %4373 = vmatpush1.bf16.msra.mxu0 %v3028
        %4374 = vmatprep.subr.bf16.mxu0 %v3031
        %4375 = vmatpush1.bf16.msra.mxu0 %v3030
        %4376 = vmatprep.subr.bf16.mxu0 %v3033
        %4377 = vmatpush1.bf16.msra.mxu0 %v3032
        %4378 = vmatprep.subr.bf16.mxu0 %v3035
        %4379 = vmatpush1.bf16.msra.mxu0 %v3034
        %4380 = vmatprep.subr.bf16.mxu0 %v3037
        %4381 = vmatpush1.bf16.msra.mxu0 %v3036
        %4382 = vmatprep.subr.bf16.mxu0 %v3039
        %4383 = vmatpush1.bf16.msra.mxu0 %v3038
        %4384 = vmatprep.subr.bf16.mxu0 %v3041
        %4385 = vmatpush1.bf16.msra.mxu0 %v3040
        %4386 = vmatprep.subr.bf16.mxu0 %v3043
        %4387 = vmatpush1.bf16.msra.mxu0 %v3042
        %4388 = vmatprep.subr.bf16.mxu0 %v3045
        %4389 = vmatpush1.bf16.msra.mxu0 %v3044
        %4390 = vmatprep.subr.bf16.mxu0 %v3047
        %4391 = vmatpush1.bf16.msra.mxu0 %v3046
        %4392 = vmatprep.subr.bf16.mxu0 %v3049
        %4393 = vmatpush1.bf16.msra.mxu0 %v3048
        %4394 = vmatprep.subr.bf16.mxu0 %v3051
        %4395 = vmatpush1.bf16.msra.mxu0 %v3050
        %4396 = vmatprep.subr.bf16.mxu0 %v3053
        %4397 = vmatpush1.bf16.msra.mxu0 %v3052
        %4398 = vmatprep.subr.bf16.mxu0 %v3055
        %4399 = vmatpush1.bf16.msra.mxu0 %v3054
        %4400 = vmatprep.mubr.bf16.mxu0 %v283
        %4401 = vmatmul.mubr.bf16.gmra.mrb[0].mxu0 %v282
        %v4402 = vpop.f32.mrb[0].mxu0
        %v4403 = vadd.f32 %v1001, %v4402
        %v4404 = vpop.f32.mrb[0].mxu0
        %v4405 = vadd.f32 %v1005, %v4404
        %v4406 = vpop.f32.mrb[0].mxu0
        %v4407 = vpop.f32.mrb[0].mxu0
        %4408 = vdwg.mxu0
        %4409 = vmatprep.subr.bf16.mxu0 %v3057
        %4410 = vmatpush1.bf16.msra.mxu0 %v3056
        %4411 = vmatprep.subr.bf16.mxu0 %v3059
        %4412 = vmatpush1.bf16.msra.mxu0 %v3058
        %4413 = vmatprep.subr.bf16.mxu0 %v3061
        %4414 = vmatpush1.bf16.msra.mxu0 %v3060
        %4415 = vmatprep.subr.bf16.mxu0 %v3063
        %4416 = vmatpush1.bf16.msra.mxu0 %v3062
        %4417 = vmatprep.subr.bf16.mxu0 %v3065
        %4418 = vmatpush1.bf16.msra.mxu0 %v3064
        %4419 = vmatprep.subr.bf16.mxu0 %v3067
        %4420 = vmatpush1.bf16.msra.mxu0 %v3066
        %4421 = vmatprep.subr.bf16.mxu0 %v3069
        %4422 = vmatpush1.bf16.msra.mxu0 %v3068
        %4423 = vmatprep.subr.bf16.mxu0 %v3071
        %4424 = vmatpush1.bf16.msra.mxu0 %v3070
        %4425 = vmatprep.subr.bf16.mxu0 %v3073
        %4426 = vmatpush1.bf16.msra.mxu0 %v3072
        %4427 = vmatprep.subr.bf16.mxu0 %v3075
        %4428 = vmatpush1.bf16.msra.mxu0 %v3074
        %4429 = vmatprep.subr.bf16.mxu0 %v3077
        %4430 = vmatpush1.bf16.msra.mxu0 %v3076
        %4431 = vmatprep.subr.bf16.mxu0 %v3079
        %4432 = vmatpush1.bf16.msra.mxu0 %v3078
        %4433 = vmatprep.subr.bf16.mxu0 %v3081
        %4434 = vmatpush1.bf16.msra.mxu0 %v3080
        %4435 = vmatprep.subr.bf16.mxu0 %v3083
        %4436 = vmatpush1.bf16.msra.mxu0 %v3082
        %4437 = vmatprep.subr.bf16.mxu0 %v3085
        %4438 = vmatpush1.bf16.msra.mxu0 %v3084
        %4439 = vmatprep.subr.bf16.mxu0 %v3087
        %4440 = vmatpush1.bf16.msra.mxu0 %v3086
        %4441 = vmatprep.mubr.bf16.mxu0 %v285
        %4442 = vmatmul.mubr.bf16.gmra.mrb[0].mxu0 %v284
        %v4443 = vpop.f32.mrb[0].mxu0
        %v4444 = vadd.f32 %v4403, %v4443
        %v4445 = vpop.f32.mrb[0].mxu0
        %v4446 = vadd.f32 %v4405, %v4445
        %v4447 = vpop.f32.mrb[0].mxu0
        %v4448 = vpop.f32.mrb[0].mxu0
        %4449 = vdwg.mxu0
        %4450 = vmatprep.subr.bf16.mxu0 %v3089
        %4451 = vmatpush1.bf16.msra.mxu0 %v3088
        %4452 = vmatprep.subr.bf16.mxu0 %v3091
        %4453 = vmatpush1.bf16.msra.mxu0 %v3090
        %4454 = vmatprep.subr.bf16.mxu0 %v3093
        %4455 = vmatpush1.bf16.msra.mxu0 %v3092
        %4456 = vmatprep.subr.bf16.mxu0 %v3095
        %4457 = vmatpush1.bf16.msra.mxu0 %v3094
        %4458 = vmatprep.subr.bf16.mxu0 %v3097
        %4459 = vmatpush1.bf16.msra.mxu0 %v3096
        %4460 = vmatprep.subr.bf16.mxu0 %v3099
        %4461 = vmatpush1.bf16.msra.mxu0 %v3098
        %4462 = vmatprep.subr.bf16.mxu0 %v3101
        %4463 = vmatpush1.bf16.msra.mxu0 %v3100
        %4464 = vmatprep.subr.bf16.mxu0 %v3103
        %4465 = vmatpush1.bf16.msra.mxu0 %v3102
        %4466 = vmatprep.subr.bf16.mxu0 %v3105
        %4467 = vmatpush1.bf16.msra.mxu0 %v3104
        %4468 = vmatprep.subr.bf16.mxu0 %v3107
        %4469 = vmatpush1.bf16.msra.mxu0 %v3106
        %4470 = vmatprep.subr.bf16.mxu0 %v3109
        %4471 = vmatpush1.bf16.msra.mxu0 %v3108
        %4472 = vmatprep.subr.bf16.mxu0 %v3111
        %4473 = vmatpush1.bf16.msra.mxu0 %v3110
        %4474 = vmatprep.subr.bf16.mxu0 %v3113
        %4475 = vmatpush1.bf16.msra.mxu0 %v3112
        %4476 = vmatprep.subr.bf16.mxu0 %v3115
        %4477 = vmatpush1.bf16.msra.mxu0 %v3114
        %4478 = vmatprep.subr.bf16.mxu0 %v3117
        %4479 = vmatpush1.bf16.msra.mxu0 %v3116
        %4480 = vmatprep.subr.bf16.mxu0 %v3119
        %4481 = vmatpush1.bf16.msra.mxu0 %v3118
        %4482 = vmatprep.mubr.bf16.mxu0 %v287
        %4483 = vmatmul.mubr.bf16.gmra.mrb[0].mxu0 %v286
        %v4484 = vpop.f32.mrb[0].mxu0
        %v4485 = vadd.f32 %v4444, %v4484
        %v4486 = vpop.f32.mrb[0].mxu0
        %v4487 = vadd.f32 %v4446, %v4486
        %v4488 = vpop.f32.mrb[0].mxu0
        %v4489 = vpop.f32.mrb[0].mxu0
        %4490 = vdwg.mxu0
        %4491 = vmatprep.subr.bf16.mxu0 %v3121
        %4492 = vmatpush1.bf16.msra.mxu0 %v3120
        %4493 = vmatprep.subr.bf16.mxu0 %v3123
        %4494 = vmatpush1.bf16.msra.mxu0 %v3122
        %4495 = vmatprep.subr.bf16.mxu0 %v3125
        %4496 = vmatpush1.bf16.msra.mxu0 %v3124
        %4497 = vmatprep.subr.bf16.mxu0 %v3127
        %4498 = vmatpush1.bf16.msra.mxu0 %v3126
        %4499 = vmatprep.subr.bf16.mxu0 %v3129
        %4500 = vmatpush1.bf16.msra.mxu0 %v3128
        %4501 = vmatprep.subr.bf16.mxu0 %v3131
        %4502 = vmatpush1.bf16.msra.mxu0 %v3130
        %4503 = vmatprep.subr.bf16.mxu0 %v3133
        %4504 = vmatpush1.bf16.msra.mxu0 %v3132
        %4505 = vmatprep.subr.bf16.mxu0 %v3135
        %4506 = vmatpush1.bf16.msra.mxu0 %v3134
        %4507 = vmatprep.subr.bf16.mxu0 %v3137
        %4508 = vmatpush1.bf16.msra.mxu0 %v3136
        %4509 = vmatprep.subr.bf16.mxu0 %v3139
        %4510 = vmatpush1.bf16.msra.mxu0 %v3138
        %4511 = vmatprep.subr.bf16.mxu0 %v3141
        %4512 = vmatpush1.bf16.msra.mxu0 %v3140
        %4513 = vmatprep.subr.bf16.mxu0 %v3143
        %4514 = vmatpush1.bf16.msra.mxu0 %v3142
        %4515 = vmatprep.subr.bf16.mxu0 %v3145
        %4516 = vmatpush1.bf16.msra.mxu0 %v3144
        %4517 = vmatprep.subr.bf16.mxu0 %v3147
        %4518 = vmatpush1.bf16.msra.mxu0 %v3146
        %4519 = vmatprep.subr.bf16.mxu0 %v3149
        %4520 = vmatpush1.bf16.msra.mxu0 %v3148
        %4521 = vmatprep.subr.bf16.mxu0 %v3151
        %4522 = vmatpush1.bf16.msra.mxu0 %v3150
        %4523 = vmatprep.mubr.bf16.mxu0 %v289
        %4524 = vmatmul.mubr.bf16.gmra.mrb[0].mxu0 %v288
        %v4525 = vpop.f32.mrb[0].mxu0
        %v4526 = vadd.f32 %v4485, %v4525
        %v4527 = vpop.f32.mrb[0].mxu0
        %v4528 = vadd.f32 %v4487, %v4527
        %v4529 = vpop.f32.mrb[0].mxu0
        %v4530 = vpop.f32.mrb[0].mxu0
        %4531 = vdwg.mxu0
        %4532 = vmatprep.subr.bf16.mxu0 %v3153
        %4533 = vmatpush1.bf16.msra.mxu0 %v3152
        %4534 = vmatprep.subr.bf16.mxu0 %v3155
        %4535 = vmatpush1.bf16.msra.mxu0 %v3154
        %4536 = vmatprep.subr.bf16.mxu0 %v3157
        %4537 = vmatpush1.bf16.msra.mxu0 %v3156
        %4538 = vmatprep.subr.bf16.mxu0 %v3159
        %4539 = vmatpush1.bf16.msra.mxu0 %v3158
        %4540 = vmatprep.subr.bf16.mxu0 %v3161
        %4541 = vmatpush1.bf16.msra.mxu0 %v3160
        %4542 = vmatprep.subr.bf16.mxu0 %v3163
        %4543 = vmatpush1.bf16.msra.mxu0 %v3162
        %4544 = vmatprep.subr.bf16.mxu0 %v3165
        %4545 = vmatpush1.bf16.msra.mxu0 %v3164
        %4546 = vmatprep.subr.bf16.mxu0 %v3167
        %4547 = vmatpush1.bf16.msra.mxu0 %v3166
        %4548 = vmatprep.subr.bf16.mxu0 %v3169
        %4549 = vmatpush1.bf16.msra.mxu0 %v3168
        %4550 = vmatprep.subr.bf16.mxu0 %v3171
        %4551 = vmatpush1.bf16.msra.mxu0 %v3170
        %4552 = vmatprep.subr.bf16.mxu0 %v3173
        %4553 = vmatpush1.bf16.msra.mxu0 %v3172
        %4554 = vmatprep.subr.bf16.mxu0 %v3175
        %4555 = vmatpush1.bf16.msra.mxu0 %v3174
        %4556 = vmatprep.subr.bf16.mxu0 %v3177
        %4557 = vmatpush1.bf16.msra.mxu0 %v3176
        %4558 = vmatprep.subr.bf16.mxu0 %v3179
        %4559 = vmatpush1.bf16.msra.mxu0 %v3178
        %4560 = vmatprep.subr.bf16.mxu0 %v3181
        %4561 = vmatpush1.bf16.msra.mxu0 %v3180
        %4562 = vmatprep.subr.bf16.mxu0 %v3183
        %4563 = vmatpush1.bf16.msra.mxu0 %v3182
        %4564 = vmatprep.mubr.bf16.mxu0 %v291
        %4565 = vmatmul.mubr.bf16.gmra.mrb[0].mxu0 %v290
        %v4566 = vpop.f32.mrb[0].mxu0
        %v4567 = vadd.f32 %v4526, %v4566
        %v4568 = vpop.f32.mrb[0].mxu0
        %v4569 = vadd.f32 %v4528, %v4568
        %v4570 = vpop.f32.mrb[0].mxu0
        %v4571 = vpop.f32.mrb[0].mxu0
        %4572 = vdwg.mxu0
        %4573 = vmatprep.subr.bf16.mxu0 %v3185
        %4574 = vmatpush1.bf16.msra.mxu0 %v3184
        %4575 = vmatprep.subr.bf16.mxu0 %v3187
        %4576 = vmatpush1.bf16.msra.mxu0 %v3186
        %4577 = vmatprep.subr.bf16.mxu0 %v3189
        %4578 = vmatpush1.bf16.msra.mxu0 %v3188
        %4579 = vmatprep.subr.bf16.mxu0 %v3191
        %4580 = vmatpush1.bf16.msra.mxu0 %v3190
        %4581 = vmatprep.subr.bf16.mxu0 %v3193
        %4582 = vmatpush1.bf16.msra.mxu0 %v3192
        %4583 = vmatprep.subr.bf16.mxu0 %v3195
        %4584 = vmatpush1.bf16.msra.mxu0 %v3194
        %4585 = vmatprep.subr.bf16.mxu0 %v3197
        %4586 = vmatpush1.bf16.msra.mxu0 %v3196
        %4587 = vmatprep.subr.bf16.mxu0 %v3199
        %4588 = vmatpush1.bf16.msra.mxu0 %v3198
        %4589 = vmatprep.subr.bf16.mxu0 %v3201
        %4590 = vmatpush1.bf16.msra.mxu0 %v3200
        %4591 = vmatprep.subr.bf16.mxu0 %v3203
        %4592 = vmatpush1.bf16.msra.mxu0 %v3202
        %4593 = vmatprep.subr.bf16.mxu0 %v3205
        %4594 = vmatpush1.bf16.msra.mxu0 %v3204
        %4595 = vmatprep.subr.bf16.mxu0 %v3207
        %4596 = vmatpush1.bf16.msra.mxu0 %v3206
        %4597 = vmatprep.subr.bf16.mxu0 %v3209
        %4598 = vmatpush1.bf16.msra.mxu0 %v3208
        %4599 = vmatprep.subr.bf16.mxu0 %v3211
        %4600 = vmatpush1.bf16.msra.mxu0 %v3210
        %4601 = vmatprep.subr.bf16.mxu0 %v3213
        %4602 = vmatpush1.bf16.msra.mxu0 %v3212
        %4603 = vmatprep.subr.bf16.mxu0 %v3215
        %4604 = vmatpush1.bf16.msra.mxu0 %v3214
        %4605 = vmatprep.mubr.bf16.mxu0 %v293
        %4606 = vmatmul.mubr.bf16.gmra.mrb[0].mxu0 %v292
        %v4607 = vpop.f32.mrb[0].mxu0
        %v4608 = vadd.f32 %v4567, %v4607
        %v4609 = vpop.f32.mrb[0].mxu0
        %v4610 = vadd.f32 %v4569, %v4609
        %v4611 = vpop.f32.mrb[0].mxu0
        %v4612 = vpop.f32.mrb[0].mxu0
        %4613 = vdwg.mxu0
        %4614 = vmatprep.subr.bf16.mxu0 %v3217
        %4615 = vmatpush1.bf16.msra.mxu0 %v3216
        %4616 = vmatprep.subr.bf16.mxu0 %v3219
        %4617 = vmatpush1.bf16.msra.mxu0 %v3218
        %4618 = vmatprep.subr.bf16.mxu0 %v3221
        %4619 = vmatpush1.bf16.msra.mxu0 %v3220
        %4620 = vmatprep.subr.bf16.mxu0 %v3223
        %4621 = vmatpush1.bf16.msra.mxu0 %v3222
        %4622 = vmatprep.subr.bf16.mxu0 %v3225
        %4623 = vmatpush1.bf16.msra.mxu0 %v3224
        %4624 = vmatprep.subr.bf16.mxu0 %v3227
        %4625 = vmatpush1.bf16.msra.mxu0 %v3226
        %4626 = vmatprep.subr.bf16.mxu0 %v3229
        %4627 = vmatpush1.bf16.msra.mxu0 %v3228
        %4628 = vmatprep.subr.bf16.mxu0 %v3231
        %4629 = vmatpush1.bf16.msra.mxu0 %v3230
        %4630 = vmatprep.subr.bf16.mxu0 %v3233
        %4631 = vmatpush1.bf16.msra.mxu0 %v3232
        %4632 = vmatprep.subr.bf16.mxu0 %v3235
        %4633 = vmatpush1.bf16.msra.mxu0 %v3234
        %4634 = vmatprep.subr.bf16.mxu0 %v3237
        %4635 = vmatpush1.bf16.msra.mxu0 %v3236
        %4636 = vmatprep.subr.bf16.mxu0 %v3239
        %4637 = vmatpush1.bf16.msra.mxu0 %v3238
        %4638 = vmatprep.subr.bf16.mxu0 %v3241
        %4639 = vmatpush1.bf16.msra.mxu0 %v3240
        %4640 = vmatprep.subr.bf16.mxu0 %v3243
        %4641 = vmatpush1.bf16.msra.mxu0 %v3242
        %4642 = vmatprep.subr.bf16.mxu0 %v3245
        %4643 = vmatpush1.bf16.msra.mxu0 %v3244
        %4644 = vmatprep.subr.bf16.mxu0 %v3247
        %4645 = vmatpush1.bf16.msra.mxu0 %v3246
        %4646 = vmatprep.mubr.bf16.mxu0 %v295
        %4647 = vmatmul.mubr.bf16.gmra.mrb[0].mxu0 %v294
        %v4648 = vpop.f32.mrb[0].mxu0
        %v4649 = vadd.f32 %v4608, %v4648
        %v4650 = vpop.f32.mrb[0].mxu0
        %v4651 = vadd.f32 %v4610, %v4650
        %v4652 = vpop.f32.mrb[0].mxu0
        %v4653 = vpop.f32.mrb[0].mxu0
        %4654 = vdwg.mxu0
        %4655 = vmatprep.subr.bf16.mxu0 %v3249
        %4656 = vmatpush1.bf16.msra.mxu0 %v3248
        %4657 = vmatprep.subr.bf16.mxu0 %v3251
        %4658 = vmatpush1.bf16.msra.mxu0 %v3250
        %4659 = vmatprep.subr.bf16.mxu0 %v3253
        %4660 = vmatpush1.bf16.msra.mxu0 %v3252
        %4661 = vmatprep.subr.bf16.mxu0 %v3255
        %4662 = vmatpush1.bf16.msra.mxu0 %v3254
        %4663 = vmatprep.subr.bf16.mxu0 %v3257
        %4664 = vmatpush1.bf16.msra.mxu0 %v3256
        %4665 = vmatprep.subr.bf16.mxu0 %v3259
        %4666 = vmatpush1.bf16.msra.mxu0 %v3258
        %4667 = vmatprep.subr.bf16.mxu0 %v3261
        %4668 = vmatpush1.bf16.msra.mxu0 %v3260
        %4669 = vmatprep.subr.bf16.mxu0 %v3263
        %4670 = vmatpush1.bf16.msra.mxu0 %v3262
        %4671 = vmatprep.subr.bf16.mxu0 %v3265
        %4672 = vmatpush1.bf16.msra.mxu0 %v3264
        %4673 = vmatprep.subr.bf16.mxu0 %v3267
        %4674 = vmatpush1.bf16.msra.mxu0 %v3266
        %4675 = vmatprep.subr.bf16.mxu0 %v3269
        %4676 = vmatpush1.bf16.msra.mxu0 %v3268
        %4677 = vmatprep.subr.bf16.mxu0 %v3271
        %4678 = vmatpush1.bf16.msra.mxu0 %v3270
        %4679 = vmatprep.subr.bf16.mxu0 %v3273
        %4680 = vmatpush1.bf16.msra.mxu0 %v3272
        %4681 = vmatprep.subr.bf16.mxu0 %v3275
        %4682 = vmatpush1.bf16.msra.mxu0 %v3274
        %4683 = vmatprep.subr.bf16.mxu0 %v3277
        %4684 = vmatpush1.bf16.msra.mxu0 %v3276
        %4685 = vmatprep.subr.bf16.mxu0 %v3279
        %4686 = vmatpush1.bf16.msra.mxu0 %v3278
        %4687 = vmatprep.mubr.bf16.mxu0 %v297
        %4688 = vmatmul.mubr.bf16.gmra.mrb[0].mxu0 %v296
        %v4689 = vpop.f32.mrb[0].mxu0
        %v4690 = vadd.f32 %v4649, %v4689
        %v4691 = vpop.f32.mrb[0].mxu0
        %v4692 = vadd.f32 %v4651, %v4691
        %v4693 = vpop.f32.mrb[0].mxu0
        %v4694 = vpop.f32.mrb[0].mxu0
        %4695 = vdwg.mxu0
        %4696 = vmatprep.subr.bf16.mxu0 %v3281
        %4697 = vmatpush1.bf16.msra.mxu0 %v3280
        %4698 = vmatprep.subr.bf16.mxu0 %v3283
        %4699 = vmatpush1.bf16.msra.mxu0 %v3282
        %4700 = vmatprep.subr.bf16.mxu0 %v3285
        %4701 = vmatpush1.bf16.msra.mxu0 %v3284
        %4702 = vmatprep.subr.bf16.mxu0 %v3287
        %4703 = vmatpush1.bf16.msra.mxu0 %v3286
        %4704 = vmatprep.subr.bf16.mxu0 %v3289
        %4705 = vmatpush1.bf16.msra.mxu0 %v3288
        %4706 = vmatprep.subr.bf16.mxu0 %v3291
        %4707 = vmatpush1.bf16.msra.mxu0 %v3290
        %4708 = vmatprep.subr.bf16.mxu0 %v3293
        %4709 = vmatpush1.bf16.msra.mxu0 %v3292
        %4710 = vmatprep.subr.bf16.mxu0 %v3295
        %4711 = vmatpush1.bf16.msra.mxu0 %v3294
        %4712 = vmatprep.subr.bf16.mxu0 %v3297
        %4713 = vmatpush1.bf16.msra.mxu0 %v3296
        %4714 = vmatprep.subr.bf16.mxu0 %v3299
        %4715 = vmatpush1.bf16.msra.mxu0 %v3298
        %4716 = vmatprep.subr.bf16.mxu0 %v3301
        %4717 = vmatpush1.bf16.msra.mxu0 %v3300
        %4718 = vmatprep.subr.bf16.mxu0 %v3303
        %4719 = vmatpush1.bf16.msra.mxu0 %v3302
        %4720 = vmatprep.subr.bf16.mxu0 %v3305
        %4721 = vmatpush1.bf16.msra.mxu0 %v3304
        %4722 = vmatprep.subr.bf16.mxu0 %v3307
        %4723 = vmatpush1.bf16.msra.mxu0 %v3306
        %4724 = vmatprep.subr.bf16.mxu0 %v3309
        %4725 = vmatpush1.bf16.msra.mxu0 %v3308
        %4726 = vmatprep.subr.bf16.mxu0 %v3311
        %4727 = vmatpush1.bf16.msra.mxu0 %v3310
        %4728 = vmatprep.mubr.bf16.mxu0 %v299
        %4729 = vmatmul.mubr.bf16.gmra.mrb[0].mxu0 %v298
        %v4730 = vpop.f32.mrb[0].mxu0
        %v4731 = vadd.f32 %v4690, %v4730
        %v4732 = vpop.f32.mrb[0].mxu0
        %v4733 = vadd.f32 %v4692, %v4732
        %v4734 = vpop.f32.mrb[0].mxu0
        %v4735 = vpop.f32.mrb[0].mxu0
        %4736 = vdwg.mxu0
        %4737 = vmatprep.subr.bf16.mxu0 %v3313
        %4738 = vmatpush1.bf16.msra.mxu0 %v3312
        %4739 = vmatprep.subr.bf16.mxu0 %v3315
        %4740 = vmatpush1.bf16.msra.mxu0 %v3314
        %4741 = vmatprep.subr.bf16.mxu0 %v3317
        %4742 = vmatpush1.bf16.msra.mxu0 %v3316
        %4743 = vmatprep.subr.bf16.mxu0 %v3319
        %4744 = vmatpush1.bf16.msra.mxu0 %v3318
        %4745 = vmatprep.subr.bf16.mxu0 %v3321
        %4746 = vmatpush1.bf16.msra.mxu0 %v3320
        %4747 = vmatprep.subr.bf16.mxu0 %v3323
        %4748 = vmatpush1.bf16.msra.mxu0 %v3322
        %4749 = vmatprep.subr.bf16.mxu0 %v3325
        %4750 = vmatpush1.bf16.msra.mxu0 %v3324
        %4751 = vmatprep.subr.bf16.mxu0 %v3327
        %4752 = vmatpush1.bf16.msra.mxu0 %v3326
        %4753 = vmatprep.subr.bf16.mxu0 %v3329
        %4754 = vmatpush1.bf16.msra.mxu0 %v3328
        %4755 = vmatprep.subr.bf16.mxu0 %v3331
        %4756 = vmatpush1.bf16.msra.mxu0 %v3330
        %4757 = vmatprep.subr.bf16.mxu0 %v3333
        %4758 = vmatpush1.bf16.msra.mxu0 %v3332
        %4759 = vmatprep.subr.bf16.mxu0 %v3335
        %4760 = vmatpush1.bf16.msra.mxu0 %v3334
        %4761 = vmatprep.subr.bf16.mxu0 %v3337
        %4762 = vmatpush1.bf16.msra.mxu0 %v3336
        %4763 = vmatprep.subr.bf16.mxu0 %v3339
        %4764 = vmatpush1.bf16.msra.mxu0 %v3338
        %4765 = vmatprep.subr.bf16.mxu0 %v3341
        %4766 = vmatpush1.bf16.msra.mxu0 %v3340
        %4767 = vmatprep.subr.bf16.mxu0 %v3343
        %4768 = vmatpush1.bf16.msra.mxu0 %v3342
        %4769 = vmatprep.mubr.bf16.mxu0 %v301
        %4770 = vmatmul.mubr.bf16.gmra.mrb[0].mxu0 %v300
        %v4771 = vpop.f32.mrb[0].mxu0
        %v4772 = vadd.f32 %v4731, %v4771
        %v4773 = vpop.f32.mrb[0].mxu0
        %v4774 = vadd.f32 %v4733, %v4773
        %v4775 = vpop.f32.mrb[0].mxu0
        %v4776 = vpop.f32.mrb[0].mxu0
        %4777 = vdwg.mxu0
        %4778 = vmatprep.subr.bf16.mxu0 %v3345
        %4779 = vmatpush1.bf16.msra.mxu0 %v3344
        %4780 = vmatprep.subr.bf16.mxu0 %v3347
        %4781 = vmatpush1.bf16.msra.mxu0 %v3346
        %4782 = vmatprep.subr.bf16.mxu0 %v3349
        %4783 = vmatpush1.bf16.msra.mxu0 %v3348
        %4784 = vmatprep.subr.bf16.mxu0 %v3351
        %4785 = vmatpush1.bf16.msra.mxu0 %v3350
        %4786 = vmatprep.subr.bf16.mxu0 %v3353
        %4787 = vmatpush1.bf16.msra.mxu0 %v3352
        %4788 = vmatprep.subr.bf16.mxu0 %v3355
        %4789 = vmatpush1.bf16.msra.mxu0 %v3354
        %4790 = vmatprep.subr.bf16.mxu0 %v3357
        %4791 = vmatpush1.bf16.msra.mxu0 %v3356
        %4792 = vmatprep.subr.bf16.mxu0 %v3359
        %4793 = vmatpush1.bf16.msra.mxu0 %v3358
        %4794 = vmatprep.subr.bf16.mxu0 %v3361
        %4795 = vmatpush1.bf16.msra.mxu0 %v3360
        %4796 = vmatprep.subr.bf16.mxu0 %v3363
        %4797 = vmatpush1.bf16.msra.mxu0 %v3362
        %4798 = vmatprep.subr.bf16.mxu0 %v3365
        %4799 = vmatpush1.bf16.msra.mxu0 %v3364
        %4800 = vmatprep.subr.bf16.mxu0 %v3367
        %4801 = vmatpush1.bf16.msra.mxu0 %v3366
        %4802 = vmatprep.subr.bf16.mxu0 %v3369
        %4803 = vmatpush1.bf16.msra.mxu0 %v3368
        %4804 = vmatprep.subr.bf16.mxu0 %v3371
        %4805 = vmatpush1.bf16.msra.mxu0 %v3370
        %4806 = vmatprep.subr.bf16.mxu0 %v3373
        %4807 = vmatpush1.bf16.msra.mxu0 %v3372
        %4808 = vmatprep.subr.bf16.mxu0 %v3375
        %4809 = vmatpush1.bf16.msra.mxu0 %v3374
        %4810 = vmatprep.mubr.bf16.mxu0 %v303
        %4811 = vmatmul.mubr.bf16.gmra.mrb[0].mxu0 %v302
        %v4812 = vpop.f32.mrb[0].mxu0
        %v4813 = vadd.f32 %v4772, %v4812
        %v4814 = vpop.f32.mrb[0].mxu0
        %v4815 = vadd.f32 %v4774, %v4814
        %v4816 = vpop.f32.mrb[0].mxu0
        %v4817 = vpop.f32.mrb[0].mxu0
        %4818 = vdwg.mxu0
        %4819 = vmatprep.subr.bf16.mxu0 %v3377
        %4820 = vmatpush1.bf16.msra.mxu0 %v3376
        %4821 = vmatprep.subr.bf16.mxu0 %v3379
        %4822 = vmatpush1.bf16.msra.mxu0 %v3378
        %4823 = vmatprep.subr.bf16.mxu0 %v3381
        %4824 = vmatpush1.bf16.msra.mxu0 %v3380
        %4825 = vmatprep.subr.bf16.mxu0 %v3383
        %4826 = vmatpush1.bf16.msra.mxu0 %v3382
        %4827 = vmatprep.subr.bf16.mxu0 %v3385
        %4828 = vmatpush1.bf16.msra.mxu0 %v3384
        %4829 = vmatprep.subr.bf16.mxu0 %v3387
        %4830 = vmatpush1.bf16.msra.mxu0 %v3386
        %4831 = vmatprep.subr.bf16.mxu0 %v3389
        %4832 = vmatpush1.bf16.msra.mxu0 %v3388
        %4833 = vmatprep.subr.bf16.mxu0 %v3391
        %4834 = vmatpush1.bf16.msra.mxu0 %v3390
        %4835 = vmatprep.subr.bf16.mxu0 %v3393
        %4836 = vmatpush1.bf16.msra.mxu0 %v3392
        %4837 = vmatprep.subr.bf16.mxu0 %v3395
        %4838 = vmatpush1.bf16.msra.mxu0 %v3394
        %4839 = vmatprep.subr.bf16.mxu0 %v3397
        %4840 = vmatpush1.bf16.msra.mxu0 %v3396
        %4841 = vmatprep.subr.bf16.mxu0 %v3399
        %4842 = vmatpush1.bf16.msra.mxu0 %v3398
        %4843 = vmatprep.subr.bf16.mxu0 %v3401
        %4844 = vmatpush1.bf16.msra.mxu0 %v3400
        %4845 = vmatprep.subr.bf16.mxu0 %v3403
        %4846 = vmatpush1.bf16.msra.mxu0 %v3402
        %4847 = vmatprep.subr.bf16.mxu0 %v3405
        %4848 = vmatpush1.bf16.msra.mxu0 %v3404
        %4849 = vmatprep.subr.bf16.mxu0 %v3407
        %4850 = vmatpush1.bf16.msra.mxu0 %v3406
        %4851 = vmatprep.mubr.bf16.mxu0 %v305
        %4852 = vmatmul.mubr.bf16.gmra.mrb[0].mxu0 %v304
        %v4853 = vpop.f32.mrb[0].mxu0
        %v4854 = vadd.f32 %v4813, %v4853
        %v4855 = vpop.f32.mrb[0].mxu0
        %v4856 = vadd.f32 %v4815, %v4855
        %v4857 = vpop.f32.mrb[0].mxu0
        %v4858 = vpop.f32.mrb[0].mxu0
        %4859 = vdwg.mxu0
        %4860 = vmatprep.subr.bf16.mxu0 %v3409
        %4861 = vmatpush1.bf16.msra.mxu0 %v3408
        %4862 = vmatprep.subr.bf16.mxu0 %v3411
        %4863 = vmatpush1.bf16.msra.mxu0 %v3410
        %4864 = vmatprep.subr.bf16.mxu0 %v3413
        %4865 = vmatpush1.bf16.msra.mxu0 %v3412
        %4866 = vmatprep.subr.bf16.mxu0 %v3415
        %4867 = vmatpush1.bf16.msra.mxu0 %v3414
        %4868 = vmatprep.subr.bf16.mxu0 %v3417
        %4869 = vmatpush1.bf16.msra.mxu0 %v3416
        %4870 = vmatprep.subr.bf16.mxu0 %v3419
        %4871 = vmatpush1.bf16.msra.mxu0 %v3418
        %4872 = vmatprep.subr.bf16.mxu0 %v3421
        %4873 = vmatpush1.bf16.msra.mxu0 %v3420
        %4874 = vmatprep.subr.bf16.mxu0 %v3423
        %4875 = vmatpush1.bf16.msra.mxu0 %v3422
        %4876 = vmatprep.subr.bf16.mxu0 %v3425
        %4877 = vmatpush1.bf16.msra.mxu0 %v3424
        %4878 = vmatprep.subr.bf16.mxu0 %v3427
        %4879 = vmatpush1.bf16.msra.mxu0 %v3426
        %4880 = vmatprep.subr.bf16.mxu0 %v3429
        %4881 = vmatpush1.bf16.msra.mxu0 %v3428
        %4882 = vmatprep.subr.bf16.mxu0 %v3431
        %4883 = vmatpush1.bf16.msra.mxu0 %v3430
        %4884 = vmatprep.subr.bf16.mxu0 %v3433
        %4885 = vmatpush1.bf16.msra.mxu0 %v3432
        %4886 = vmatprep.subr.bf16.mxu0 %v3435
        %4887 = vmatpush1.bf16.msra.mxu0 %v3434
        %4888 = vmatprep.subr.bf16.mxu0 %v3437
        %4889 = vmatpush1.bf16.msra.mxu0 %v3436
        %4890 = vmatprep.subr.bf16.mxu0 %v3439
        %4891 = vmatpush1.bf16.msra.mxu0 %v3438
        %4892 = vmatprep.mubr.bf16.mxu0 %v307
        %4893 = vmatmul.mubr.bf16.gmra.mrb[0].mxu0 %v306
        %v4894 = vpop.f32.mrb[0].mxu0
        %v4895 = vadd.f32 %v4854, %v4894
        %v4896 = vpop.f32.mrb[0].mxu0
        %v4897 = vadd.f32 %v4856, %v4896
        %v4898 = vpop.f32.mrb[0].mxu0
        %v4899 = vpop.f32.mrb[0].mxu0
        %4900 = vdwg.mxu0
        %4901 = vmatprep.subr.bf16.mxu0 %v3441
        %4902 = vmatpush1.bf16.msra.mxu0 %v3440
        %4903 = vmatprep.subr.bf16.mxu0 %v3443
        %4904 = vmatpush1.bf16.msra.mxu0 %v3442
        %4905 = vmatprep.subr.bf16.mxu0 %v3445
        %4906 = vmatpush1.bf16.msra.mxu0 %v3444
        %4907 = vmatprep.subr.bf16.mxu0 %v3447
        %4908 = vmatpush1.bf16.msra.mxu0 %v3446
        %4909 = vmatprep.subr.bf16.mxu0 %v3449
        %4910 = vmatpush1.bf16.msra.mxu0 %v3448
        %4911 = vmatprep.subr.bf16.mxu0 %v3451
        %4912 = vmatpush1.bf16.msra.mxu0 %v3450
        %4913 = vmatprep.subr.bf16.mxu0 %v3453
        %4914 = vmatpush1.bf16.msra.mxu0 %v3452
        %4915 = vmatprep.subr.bf16.mxu0 %v3455
        %4916 = vmatpush1.bf16.msra.mxu0 %v3454
        %4917 = vmatprep.subr.bf16.mxu0 %v3457
        %4918 = vmatpush1.bf16.msra.mxu0 %v3456
        %4919 = vmatprep.subr.bf16.mxu0 %v3459
        %4920 = vmatpush1.bf16.msra.mxu0 %v3458
        %4921 = vmatprep.subr.bf16.mxu0 %v3461
        %4922 = vmatpush1.bf16.msra.mxu0 %v3460
        %4923 = vmatprep.subr.bf16.mxu0 %v3463
        %4924 = vmatpush1.bf16.msra.mxu0 %v3462
        %4925 = vmatprep.subr.bf16.mxu0 %v3465
        %4926 = vmatpush1.bf16.msra.mxu0 %v3464
        %4927 = vmatprep.subr.bf16.mxu0 %v3467
        %4928 = vmatpush1.bf16.msra.mxu0 %v3466
        %4929 = vmatprep.subr.bf16.mxu0 %v3469
        %4930 = vmatpush1.bf16.msra.mxu0 %v3468
        %4931 = vmatprep.subr.bf16.mxu0 %v3471
        %4932 = vmatpush1.bf16.msra.mxu0 %v3470
        %4933 = vmatprep.mubr.bf16.mxu0 %v309
        %4934 = vmatmul.mubr.bf16.gmra.mrb[0].mxu0 %v308
        %v4935 = vpop.f32.mrb[0].mxu0
        %v4936 = vadd.f32 %v4895, %v4935
        %v4937 = vpop.f32.mrb[0].mxu0
        %v4938 = vadd.f32 %v4897, %v4937
        %v4939 = vpop.f32.mrb[0].mxu0
        %v4940 = vpop.f32.mrb[0].mxu0
        %4941 = vdwg.mxu0
        %4942 = vmatprep.subr.bf16.mxu0 %v3473
        %4943 = vmatpush1.bf16.msra.mxu0 %v3472
        %4944 = vmatprep.subr.bf16.mxu0 %v3475
        %4945 = vmatpush1.bf16.msra.mxu0 %v3474
        %4946 = vmatprep.subr.bf16.mxu0 %v3477
        %4947 = vmatpush1.bf16.msra.mxu0 %v3476
        %4948 = vmatprep.subr.bf16.mxu0 %v3479
        %4949 = vmatpush1.bf16.msra.mxu0 %v3478
        %4950 = vmatprep.subr.bf16.mxu0 %v3481
        %4951 = vmatpush1.bf16.msra.mxu0 %v3480
        %4952 = vmatprep.subr.bf16.mxu0 %v3483
        %4953 = vmatpush1.bf16.msra.mxu0 %v3482
        %4954 = vmatprep.subr.bf16.mxu0 %v3485
        %4955 = vmatpush1.bf16.msra.mxu0 %v3484
        %4956 = vmatprep.subr.bf16.mxu0 %v3487
        %4957 = vmatpush1.bf16.msra.mxu0 %v3486
        %4958 = vmatprep.subr.bf16.mxu0 %v3489
        %4959 = vmatpush1.bf16.msra.mxu0 %v3488
        %4960 = vmatprep.subr.bf16.mxu0 %v3491
        %4961 = vmatpush1.bf16.msra.mxu0 %v3490
        %4962 = vmatprep.subr.bf16.mxu0 %v3493
        %4963 = vmatpush1.bf16.msra.mxu0 %v3492
        %4964 = vmatprep.subr.bf16.mxu0 %v3495
        %4965 = vmatpush1.bf16.msra.mxu0 %v3494
        %4966 = vmatprep.subr.bf16.mxu0 %v3497
        %4967 = vmatpush1.bf16.msra.mxu0 %v3496
        %4968 = vmatprep.subr.bf16.mxu0 %v3499
        %4969 = vmatpush1.bf16.msra.mxu0 %v3498
        %4970 = vmatprep.subr.bf16.mxu0 %v3501
        %4971 = vmatpush1.bf16.msra.mxu0 %v3500
        %4972 = vmatprep.subr.bf16.mxu0 %v3503
        %4973 = vmatpush1.bf16.msra.mxu0 %v3502
        %4974 = vmatprep.mubr.bf16.mxu0 %v311
        %4975 = vmatmul.mubr.bf16.gmra.mrb[0].mxu0 %v310
        %v4976 = vpop.f32.mrb[0].mxu0
        %v4977 = vadd.f32 %v4936, %v4976
        %v4978 = vpop.f32.mrb[0].mxu0
        %v4979 = vadd.f32 %v4938, %v4978
        %v4980 = vpop.f32.mrb[0].mxu0
        %v4981 = vpop.f32.mrb[0].mxu0
        %4982 = vdwg.mxu0
        %4983 = vmatprep.subr.bf16.mxu0 %v3505
        %4984 = vmatpush1.bf16.msra.mxu0 %v3504
        %4985 = vmatprep.subr.bf16.mxu0 %v3507
        %4986 = vmatpush1.bf16.msra.mxu0 %v3506
        %4987 = vmatprep.subr.bf16.mxu0 %v3509
        %4988 = vmatpush1.bf16.msra.mxu0 %v3508
        %4989 = vmatprep.subr.bf16.mxu0 %v3511
        %4990 = vmatpush1.bf16.msra.mxu0 %v3510
        %4991 = vmatprep.subr.bf16.mxu0 %v3513
        %4992 = vmatpush1.bf16.msra.mxu0 %v3512
        %4993 = vmatprep.subr.bf16.mxu0 %v3515
        %4994 = vmatpush1.bf16.msra.mxu0 %v3514
        %4995 = vmatprep.subr.bf16.mxu0 %v3517
        %4996 = vmatpush1.bf16.msra.mxu0 %v3516
        %4997 = vmatprep.subr.bf16.mxu0 %v3519
        %4998 = vmatpush1.bf16.msra.mxu0 %v3518
        %4999 = vmatprep.subr.bf16.mxu0 %v3521
        %5000 = vmatpush1.bf16.msra.mxu0 %v3520
        %5001 = vmatprep.subr.bf16.mxu0 %v3523
        %5002 = vmatpush1.bf16.msra.mxu0 %v3522
        %5003 = vmatprep.subr.bf16.mxu0 %v3525
        %5004 = vmatpush1.bf16.msra.mxu0 %v3524
        %5005 = vmatprep.subr.bf16.mxu0 %v3527
        %5006 = vmatpush1.bf16.msra.mxu0 %v3526
        %5007 = vmatprep.subr.bf16.mxu0 %v3529
        %5008 = vmatpush1.bf16.msra.mxu0 %v3528
        %5009 = vmatprep.subr.bf16.mxu0 %v3531
        %5010 = vmatpush1.bf16.msra.mxu0 %v3530
        %5011 = vmatprep.subr.bf16.mxu0 %v3533
        %5012 = vmatpush1.bf16.msra.mxu0 %v3532
        %5013 = vmatprep.subr.bf16.mxu0 %v3535
        %5014 = vmatpush1.bf16.msra.mxu0 %v3534
        %5015 = vmatprep.mubr.bf16.mxu0 %v313
        %5016 = vmatmul.mubr.bf16.gmra.mrb[0].mxu0 %v312
        %v5017 = vpop.f32.mrb[0].mxu0
        %v5018 = vadd.f32 %v4977, %v5017
        %v5019 = vpop.f32.mrb[0].mxu0
        %v5020 = vadd.f32 %v4979, %v5019
        %v5021 = vpop.f32.mrb[0].mxu0
        %v5022 = vpop.f32.mrb[0].mxu0
        %5023 = vdwg.mxu0
        %5024 = vmatprep.subr.bf16.mxu0 %v3537
        %5025 = vmatpush1.bf16.msra.mxu0 %v3536
        %5026 = vmatprep.subr.bf16.mxu0 %v3539
        %5027 = vmatpush1.bf16.msra.mxu0 %v3538
        %5028 = vmatprep.subr.bf16.mxu0 %v3541
        %5029 = vmatpush1.bf16.msra.mxu0 %v3540
        %5030 = vmatprep.subr.bf16.mxu0 %v3543
        %5031 = vmatpush1.bf16.msra.mxu0 %v3542
        %5032 = vmatprep.subr.bf16.mxu0 %v3545
        %5033 = vmatpush1.bf16.msra.mxu0 %v3544
        %5034 = vmatprep.subr.bf16.mxu0 %v3547
        %5035 = vmatpush1.bf16.msra.mxu0 %v3546
        %5036 = vmatprep.subr.bf16.mxu0 %v3549
        %5037 = vmatpush1.bf16.msra.mxu0 %v3548
        %5038 = vmatprep.subr.bf16.mxu0 %v3551
        %5039 = vmatpush1.bf16.msra.mxu0 %v3550
        %5040 = vmatprep.subr.bf16.mxu0 %v3553
        %5041 = vmatpush1.bf16.msra.mxu0 %v3552
        %5042 = vmatprep.subr.bf16.mxu0 %v3555
        %5043 = vmatpush1.bf16.msra.mxu0 %v3554
        %5044 = vmatprep.subr.bf16.mxu0 %v3557
        %5045 = vmatpush1.bf16.msra.mxu0 %v3556
        %5046 = vmatprep.subr.bf16.mxu0 %v3559
        %5047 = vmatpush1.bf16.msra.mxu0 %v3558
        %5048 = vmatprep.subr.bf16.mxu0 %v3561
        %5049 = vmatpush1.bf16.msra.mxu0 %v3560
        %5050 = vmatprep.subr.bf16.mxu0 %v3563
        %5051 = vmatpush1.bf16.msra.mxu0 %v3562
        %5052 = vmatprep.subr.bf16.mxu0 %v3565
        %5053 = vmatpush1.bf16.msra.mxu0 %v3564
        %5054 = vmatprep.subr.bf16.mxu0 %v3567
        %5055 = vmatpush1.bf16.msra.mxu0 %v3566
        %5056 = vmatprep.mubr.bf16.mxu0 %v315
        %5057 = vmatmul.mubr.bf16.gmra.mrb[0].mxu0 %v314
        %v5058 = vpop.f32.mrb[0].mxu0
        %v5059 = vadd.f32 %v5018, %v5058
        %v5060 = vpop.f32.mrb[0].mxu0
        %v5061 = vadd.f32 %v5020, %v5060
        %v5062 = vpop.f32.mrb[0].mxu0
        %v5063 = vpop.f32.mrb[0].mxu0
        %5064 = vdwg.mxu0
        %5065 = vmatprep.subr.bf16.mxu0 %v3569
        %5066 = vmatpush1.bf16.msra.mxu0 %v3568
        %5067 = vmatprep.subr.bf16.mxu0 %v3571
        %5068 = vmatpush1.bf16.msra.mxu0 %v3570
        %5069 = vmatprep.subr.bf16.mxu0 %v3573
        %5070 = vmatpush1.bf16.msra.mxu0 %v3572
        %5071 = vmatprep.subr.bf16.mxu0 %v3575
        %5072 = vmatpush1.bf16.msra.mxu0 %v3574
        %5073 = vmatprep.subr.bf16.mxu0 %v3577
        %5074 = vmatpush1.bf16.msra.mxu0 %v3576
        %5075 = vmatprep.subr.bf16.mxu0 %v3579
        %5076 = vmatpush1.bf16.msra.mxu0 %v3578
        %5077 = vmatprep.subr.bf16.mxu0 %v3581
        %5078 = vmatpush1.bf16.msra.mxu0 %v3580
        %5079 = vmatprep.subr.bf16.mxu0 %v3583
        %5080 = vmatpush1.bf16.msra.mxu0 %v3582
        %5081 = vmatprep.subr.bf16.mxu0 %v3585
        %5082 = vmatpush1.bf16.msra.mxu0 %v3584
        %5083 = vmatprep.subr.bf16.mxu0 %v3587
        %5084 = vmatpush1.bf16.msra.mxu0 %v3586
        %5085 = vmatprep.subr.bf16.mxu0 %v3589
        %5086 = vmatpush1.bf16.msra.mxu0 %v3588
        %5087 = vmatprep.subr.bf16.mxu0 %v3591
        %5088 = vmatpush1.bf16.msra.mxu0 %v3590
        %5089 = vmatprep.subr.bf16.mxu0 %v3593
        %5090 = vmatpush1.bf16.msra.mxu0 %v3592
        %5091 = vmatprep.subr.bf16.mxu0 %v3595
        %5092 = vmatpush1.bf16.msra.mxu0 %v3594
        %5093 = vmatprep.subr.bf16.mxu0 %v3597
        %5094 = vmatpush1.bf16.msra.mxu0 %v3596
        %5095 = vmatprep.subr.bf16.mxu0 %v3599
        %5096 = vmatpush1.bf16.msra.mxu0 %v3598
        %5097 = vmatprep.mubr.bf16.mxu0 %v317
        %5098 = vmatmul.mubr.bf16.gmra.mrb[0].mxu0 %v316
        %v5099 = vpop.f32.mrb[0].mxu0
        %v5100 = vadd.f32 %v5059, %v5099
        %v5101 = vpop.f32.mrb[0].mxu0
        %v5102 = vadd.f32 %v5061, %v5101
        %v5103 = vpop.f32.mrb[0].mxu0
        %v5104 = vpop.f32.mrb[0].mxu0
        %5105 = vdwg.mxu0
        %5106 = vmatprep.subr.bf16.mxu0 %v3601
        %5107 = vmatpush1.bf16.msra.mxu0 %v3600
        %5108 = vmatprep.subr.bf16.mxu0 %v3603
        %5109 = vmatpush1.bf16.msra.mxu0 %v3602
        %5110 = vmatprep.subr.bf16.mxu0 %v3605
        %5111 = vmatpush1.bf16.msra.mxu0 %v3604
        %5112 = vmatprep.subr.bf16.mxu0 %v3607
        %5113 = vmatpush1.bf16.msra.mxu0 %v3606
        %5114 = vmatprep.subr.bf16.mxu0 %v3609
        %5115 = vmatpush1.bf16.msra.mxu0 %v3608
        %5116 = vmatprep.subr.bf16.mxu0 %v3611
        %5117 = vmatpush1.bf16.msra.mxu0 %v3610
        %5118 = vmatprep.subr.bf16.mxu0 %v3613
        %5119 = vmatpush1.bf16.msra.mxu0 %v3612
        %5120 = vmatprep.subr.bf16.mxu0 %v3615
        %5121 = vmatpush1.bf16.msra.mxu0 %v3614
        %5122 = vmatprep.subr.bf16.mxu0 %v3617
        %5123 = vmatpush1.bf16.msra.mxu0 %v3616
        %5124 = vmatprep.subr.bf16.mxu0 %v3619
        %5125 = vmatpush1.bf16.msra.mxu0 %v3618
        %5126 = vmatprep.subr.bf16.mxu0 %v3621
        %5127 = vmatpush1.bf16.msra.mxu0 %v3620
        %5128 = vmatprep.subr.bf16.mxu0 %v3623
        %5129 = vmatpush1.bf16.msra.mxu0 %v3622
        %5130 = vmatprep.subr.bf16.mxu0 %v3625
        %5131 = vmatpush1.bf16.msra.mxu0 %v3624
        %5132 = vmatprep.subr.bf16.mxu0 %v3627
        %5133 = vmatpush1.bf16.msra.mxu0 %v3626
        %5134 = vmatprep.subr.bf16.mxu0 %v3629
        %5135 = vmatpush1.bf16.msra.mxu0 %v3628
        %5136 = vmatprep.subr.bf16.mxu0 %v3631
        %5137 = vmatpush1.bf16.msra.mxu0 %v3630
        %5138 = vmatprep.mubr.bf16.mxu0 %v319
        %5139 = vmatmul.mubr.bf16.gmra.mrb[0].mxu0 %v318
        %v5140 = vpop.f32.mrb[0].mxu0
        %v5141 = vadd.f32 %v5100, %v5140
        %v5142 = vpop.f32.mrb[0].mxu0
        %v5143 = vadd.f32 %v5102, %v5142
        %v5144 = vpop.f32.mrb[0].mxu0
        %v5145 = vpop.f32.mrb[0].mxu0
        %5146 = vdwg.mxu0
        %5147 = vmatprep.subr.bf16.mxu0 %v3633
        %5148 = vmatpush1.bf16.msra.mxu0 %v3632
        %5149 = vmatprep.subr.bf16.mxu0 %v3635
        %5150 = vmatpush1.bf16.msra.mxu0 %v3634
        %5151 = vmatprep.subr.bf16.mxu0 %v3637
        %5152 = vmatpush1.bf16.msra.mxu0 %v3636
        %5153 = vmatprep.subr.bf16.mxu0 %v3639
        %5154 = vmatpush1.bf16.msra.mxu0 %v3638
        %5155 = vmatprep.subr.bf16.mxu0 %v3641
        %5156 = vmatpush1.bf16.msra.mxu0 %v3640
        %5157 = vmatprep.subr.bf16.mxu0 %v3643
        %5158 = vmatpush1.bf16.msra.mxu0 %v3642
        %5159 = vmatprep.subr.bf16.mxu0 %v3645
        %5160 = vmatpush1.bf16.msra.mxu0 %v3644
        %5161 = vmatprep.subr.bf16.mxu0 %v3647
        %5162 = vmatpush1.bf16.msra.mxu0 %v3646
        %5163 = vmatprep.subr.bf16.mxu0 %v3649
        %5164 = vmatpush1.bf16.msra.mxu0 %v3648
        %5165 = vmatprep.subr.bf16.mxu0 %v3651
        %5166 = vmatpush1.bf16.msra.mxu0 %v3650
        %5167 = vmatprep.subr.bf16.mxu0 %v3653
        %5168 = vmatpush1.bf16.msra.mxu0 %v3652
        %5169 = vmatprep.subr.bf16.mxu0 %v3655
        %5170 = vmatpush1.bf16.msra.mxu0 %v3654
        %5171 = vmatprep.subr.bf16.mxu0 %v3657
        %5172 = vmatpush1.bf16.msra.mxu0 %v3656
        %5173 = vmatprep.subr.bf16.mxu0 %v3659
        %5174 = vmatpush1.bf16.msra.mxu0 %v3658
        %5175 = vmatprep.subr.bf16.mxu0 %v3661
        %5176 = vmatpush1.bf16.msra.mxu0 %v3660
        %5177 = vmatprep.subr.bf16.mxu0 %v3663
        %5178 = vmatpush1.bf16.msra.mxu0 %v3662
        %5179 = vmatprep.mubr.bf16.mxu0 %v321
        %5180 = vmatmul.mubr.bf16.gmra.mrb[0].mxu0 %v320
        %v5181 = vpop.f32.mrb[0].mxu0
        %v5182 = vadd.f32 %v5141, %v5181
        %v5183 = vpop.f32.mrb[0].mxu0
        %v5184 = vadd.f32 %v5143, %v5183
        %v5185 = vpop.f32.mrb[0].mxu0
        %v5186 = vpop.f32.mrb[0].mxu0
        %5187 = vdwg.mxu0
        %5188 = vmatprep.subr.bf16.mxu0 %v3665
        %5189 = vmatpush1.bf16.msra.mxu0 %v3664
        %5190 = vmatprep.subr.bf16.mxu0 %v3667
        %5191 = vmatpush1.bf16.msra.mxu0 %v3666
        %5192 = vmatprep.subr.bf16.mxu0 %v3669
        %5193 = vmatpush1.bf16.msra.mxu0 %v3668
        %5194 = vmatprep.subr.bf16.mxu0 %v3671
        %5195 = vmatpush1.bf16.msra.mxu0 %v3670
        %5196 = vmatprep.subr.bf16.mxu0 %v3673
        %5197 = vmatpush1.bf16.msra.mxu0 %v3672
        %5198 = vmatprep.subr.bf16.mxu0 %v3675
        %5199 = vmatpush1.bf16.msra.mxu0 %v3674
        %5200 = vmatprep.subr.bf16.mxu0 %v3677
        %5201 = vmatpush1.bf16.msra.mxu0 %v3676
        %5202 = vmatprep.subr.bf16.mxu0 %v3679
        %5203 = vmatpush1.bf16.msra.mxu0 %v3678
        %5204 = vmatprep.subr.bf16.mxu0 %v3681
        %5205 = vmatpush1.bf16.msra.mxu0 %v3680
        %5206 = vmatprep.subr.bf16.mxu0 %v3683
        %5207 = vmatpush1.bf16.msra.mxu0 %v3682
        %5208 = vmatprep.subr.bf16.mxu0 %v3685
        %5209 = vmatpush1.bf16.msra.mxu0 %v3684
        %5210 = vmatprep.subr.bf16.mxu0 %v3687
        %5211 = vmatpush1.bf16.msra.mxu0 %v3686
        %5212 = vmatprep.subr.bf16.mxu0 %v3689
        %5213 = vmatpush1.bf16.msra.mxu0 %v3688
        %5214 = vmatprep.subr.bf16.mxu0 %v3691
        %5215 = vmatpush1.bf16.msra.mxu0 %v3690
        %5216 = vmatprep.subr.bf16.mxu0 %v3693
        %5217 = vmatpush1.bf16.msra.mxu0 %v3692
        %5218 = vmatprep.subr.bf16.mxu0 %v3695
        %5219 = vmatpush1.bf16.msra.mxu0 %v3694
        %5220 = vmatprep.mubr.bf16.mxu0 %v323
        %5221 = vmatmul.mubr.bf16.gmra.mrb[0].mxu0 %v322
        %v5222 = vpop.f32.mrb[0].mxu0
        %v5223 = vadd.f32 %v5182, %v5222
        %v5224 = vpop.f32.mrb[0].mxu0
        %v5225 = vadd.f32 %v5184, %v5224
        %v5226 = vpop.f32.mrb[0].mxu0
        %v5227 = vpop.f32.mrb[0].mxu0
        %5228 = vdwg.mxu0
        %v5229 = vmax.f32 %v5223, 0.0
        %v5230 = vmax.f32 %v5225, 0.0
        %5231 = vst [vmem:[%s236] sm:$0xff] %v5229
        %5232 = vst [vmem:[%s236 + $0x8] sm:$0xff] %v5230
        %s5233 = sand.u32 %s102, 1
        %s5234 = scalar_lea.sflag [#allocation4], %s5233
        %s5235 = sand.u32 %s102, 1
        %s5236 = smul.addr %s5235, 16
        %s5237 = scalar_lea.vmem [#allocation8], %s5236
        // Predicated region
        $region45: #{tpu_custom_call.1} parent=31 // pred_check
          %p5238 = pneg %p112
        $region46: #{tpu_custom_call.1} parent=31 // pred_check_branch
          %5240 = sbr.rel (%p5238) target = $region48
        $region47: #{tpu_custom_call.1} parent=31 // pred_region
          %s5241 = smul.u32 2, %s21
          %s5243 = ssub.s32 256, 256
          %5244 = vsyncadd %s5234, %s5243
          %s5245 = smul.addr %s5241, 128
          %s5246 = scalar_lea.hbm %s3, %s5245
          %s5248 = sshll.u32 %s5237, 4
          %s5249 = int_to_ptr.vmem [resolvable:$true] %s5248
          %5251 = dma.vmem_to_hbm [thread:$0]  %s5249, 256, %s5246, %s5234
        $region48: #{tpu_custom_call.1} parent=31 // pred_fallthru
          _
      $region32: #{tpu_custom_call.1} parent=5 // pred_fallthru
        _
      %p5252 = scmp.le.s32.totalorder 2, %s16
      // Predicated region
      $region49: #{tpu_custom_call.1} parent=5 // pred_check
        %p5253 = pneg %p5252
      $region50: #{tpu_custom_call.1} parent=5 // pred_check_branch
        %5255 = sbr.rel (%p5253) target = $region52
      $region51: #{tpu_custom_call.1} parent=5 // pred_region
        %s5256 = ssub.s32 %s16, 2
        // Predicated region
        $region53: #{tpu_custom_call.1} parent=51 // pred_check
          %p5257 = pneg %p118
        $region54: #{tpu_custom_call.1} parent=51 // pred_check_branch
          %5259 = sbr.rel (%p5257) target = $region56
        $region55: #{tpu_custom_call.1} parent=51 // pred_region
          %s5260 = sand.u32 %s103, 1
          %s5261 = scalar_lea.sflag [#allocation4], %s5260
          %s5262 = sand.u32 %s103, 1
          %s5263 = smul.addr %s5262, 16
          %s5264 = scalar_lea.vmem [#allocation8], %s5263
          %5265 = dma.done %s5261, 256
        $region56: #{tpu_custom_call.1} parent=51 // pred_fallthru
          _
      $region52: #{tpu_custom_call.1} parent=5 // pred_fallthru
        _
    $region6: #{tpu_custom_call.1} parent=1 // loop_footer
      %s20 = sadd.s32 1, %s16
    $region7: #{tpu_custom_call.1} parent=1 // loop_footer_branch
      %15 = sbr.rel target = $region3
    $region8: #{tpu_custom_call.1} parent=1 // loop_exit
      _
    %5266 = vsyncpa [#allocation3], 1
    %s5267 = scalar_lea.sflag [#allocation3], 1
    %5268 = vsyncpa %s5267, 1
    %5269 = vsyncpa [#allocation6], 1
    %s5270 = scalar_lea.sflag [#allocation6], 1
    %5271 = vsyncpa %s5270, 1
    %5272 = vsyncpa [#allocation4], 1
    %s5273 = scalar_lea.sflag [#allocation4], 1
    %5274 = vsyncpa %s5273, 1

</llo_original>
